<compile_context>
chip_gen: v7x
topology: tpu7x:2x2x1
jax: 0.10.0
libtpu: 0.0.40
codegen_flags: <defaults>
</compile_context>

<pallas_src>
import jax
import jax.numpy as jnp
from jax.experimental import pallas as pl
from jax.experimental.pallas import tpu as pltpu

_LANES = 128            # points per lane row
_TM_MAX = 1024          # max rows per block: 3*1024*128*4 B = 1.5 MiB/block.
                        # Already on the ~85-86% roofline plateau; double-
                        # buffered in+out ~6 MiB -> safe under every chip's
                        # default scoped-VMEM limit (incl. v5e's 16 MiB).
# Below these sizes a single fused XLA elementwise op wins over kernel launch
# (+ layout passes for the AoS entry).
# TODO(synk): calibrate both thresholds per chip generation from an xprof sweep.
_MIN_KERNEL_POINTS_AOS = 32768   # AoS entry pays 2 extra HBM passes of layout
_MIN_KERNEL_POINTS_SOA = 1024    # SoA entry only pays kernel launch overhead


def _round_up(x, m):
    return (x + m - 1) // m * m


def _tensorcores_per_chip():
    """Best-effort TensorCores-per-chip probe (v7x: 2, v5e/v6e: 1)."""
    name = ""
    try:
        name = str(getattr(pltpu.get_tpu_info(), "chip_version", "") or "")
    except Exception:
        pass
    if not name:
        try:
            name = getattr(jax.devices()[0], "device_kind", "") or ""
        except Exception:
            pass
    return 2 if "7" in name.lower() else 1


def _observer_kernel(obs_ref, c_ref, o_ref):
    # obs_ref: (3,) f32 scalar-prefetch (SMEM).
    # c_ref / o_ref: (3, tm, 128) f32 VMEM blocks; c_ref[k] is a lane-dense slab.
    x = c_ref[0] - obs_ref[0]
    y = c_ref[1] - obs_ref[1]
    z = c_ref[2] - obs_ref[2]
    xy = x * x + y * y
    o_ref[0] = jnp.sqrt(xy + z * z)           # r
    o_ref[1] = jnp.arctan2(jnp.sqrt(xy), z)   # theta (colatitude from +z)
    o_ref[2] = jnp.arctan2(y, x)              # phi (azimuth)
    # TODO(synk): on v7x (~3.2 TB/s HBM) the binding unit may be the VALU chain
    # inside the two arctan2 lowerings rather than memory; if a bundle dump
    # confirms VALU saturation, move the divides to the EUP slot via
    # pl.reciprocal(..., approx=True) with explicit quadrant/zero guards.
    # Not worth it on mem-bound v5e/v6e.


def _reference(coords, obs_coord):
    """Pure-JAX reference, AoS (N, 3) layout."""
    c = coords - obs_coord.reshape(1, 3)
    x, y, z = c[..., 0], c[..., 1], c[..., 2]
    xy = x * x + y * y
    return jnp.stack(
        [jnp.sqrt(xy + z * z), jnp.arctan2(jnp.sqrt(xy), z), jnp.arctan2(y, x)], -1)


def _reference_soa(coords_soa, obs_coord):
    """Pure-JAX reference, SoA (3, N) layout."""
    x = coords_soa[0] - obs_coord[0]
    y = coords_soa[1] - obs_coord[1]
    z = coords_soa[2] - obs_coord[2]
    xy = x * x + y * y
    return jnp.stack(
        [jnp.sqrt(xy + z * z), jnp.arctan2(jnp.sqrt(xy), z), jnp.arctan2(y, x)], 0)


def _pick_tiling(rows, block_rows, n_cores):
    # Multi-TC chips (v7x): force the block count to a multiple of the core
    # count so ("parallel",) keeps both TensorCores busy.  Single-TC chips
    # (v5e/v6e) get the largest sublane-aligned block -> fewest grid steps.
    num_blocks = n_cores * pl.cdiv(rows, n_cores * block_rows)
    tm = _round_up(pl.cdiv(rows, num_blocks), 8)
    if tm > rows:                       # never request a block taller than the array
        tm = max(8, (rows // 8) * 8)
    grid = pl.cdiv(rows, tm)            # trailing partial block is bounds-masked
    return tm, grid


def _spherical_soa_blocks(c_blocks, obs_coord, *, block_rows=_TM_MAX,
                          cores=None, donate_input=False):
    """Core kernel: (3, rows, 128) f32 -> (3, rows, 128) f32 spherical."""
    three, rows, lanes = c_blocks.shape
    assert three == 3 and lanes == _LANES and rows >= 8
    n_cores = _tensorcores_per_chip() if cores is None else max(1, int(cores))
    tm, grid = _pick_tiling(rows, block_rows, n_cores)
    n_pts = rows * _LANES

    kwargs = {}
    if donate_input:
        # Input 1 (after the scalar-prefetch arg) aliases output 0: same
        # shape/dtype/index_map.  Only enable when the slab is a donatable
        # intermediate under jit -- otherwise XLA inserts a defensive copy.
        kwargs["input_output_aliases"] = {1: 0}

    return pl.pallas_call(
        _observer_kernel,
        out_shape=jax.ShapeDtypeStruct((3, rows, _LANES), jnp.float32),
        grid_spec=pltpu.PrefetchScalarGridSpec(
            num_scalar_prefetch=1,            # obs_coord -> SMEM
            grid=(grid,),
            in_specs=[pl.BlockSpec((3, tm, _LANES), lambda i, obs: (0, i, 0))],
            out_specs=pl.BlockSpec((3, tm, _LANES), lambda i, obs: (0, i, 0)),
        ),
        compiler_params=pltpu.CompilerParams(
            dimension_semantics=("parallel",)),
        cost_estimate=pl.CostEstimate(
            flops=10 * n_pts, transcendentals=4 * n_pts,
            bytes_accessed=24 * n_pts),
        **kwargs,
    )(obs_coord, c_blocks)


def observer_transform_soa(coords_soa, obs_coord, *, block_rows=_TM_MAX,
                           cores=None, min_kernel_points=_MIN_KERNEL_POINTS_SOA,
                           donate_input=False):
    """Preferred layout: coords_soa (3, N) f32, obs_coord (3,) -> (3, N).

    When N % 128 == 0 the reshape to (3, rows, 128) is metadata-only, so this
    path does exactly one HBM pass.  Keep the point cloud SoA end-to-end.
    """
    coords_soa = jnp.asarray(coords_soa, jnp.float32)
    obs_coord = jnp.asarray(obs_coord, jnp.float32).reshape(3)
    n = coords_soa.shape[1]
    if n < min_kernel_points:
        return _reference_soa(coords_soa, obs_coord)

    rows = pl.cdiv(n, _LANES)
    n_pad = rows * _LANES
    c = coords_soa if n_pad == n else jnp.pad(coords_soa, ((0, 0), (0, n_pad - n)))
    c_blocks = c.reshape(3, rows, _LANES)     # free when n_pad == n
    out = _spherical_soa_blocks(c_blocks, obs_coord, block_rows=block_rows,
                                cores=cores, donate_input=donate_input)
    out = out.reshape(3, n_pad)
    return out if n_pad == n else out[:, :n]


def observer_transform(coords, obs_coord, *, block_rows=_TM_MAX, cores=None,
                       min_kernel_points=_MIN_KERNEL_POINTS_AOS):
    """Module-faithful interface: coords (N, 3), obs_coord (3,) -> (N, 3).

    NOTE: this entry pays ~2 extra HBM passes for the AoS<->SoA conversion;
    large-scale callers should keep coords in (3, N) SoA layout and call
    observer_transform_soa() instead (zero wrapper-side layout work).
    """
    coords = jnp.asarray(coords, jnp.float32)
    obs_coord = jnp.asarray(obs_coord, jnp.float32).reshape(3)
    n = coords.shape[0]
    if n < min_kernel_points:
        return _reference(coords, obs_coord)

    rows = pl.cdiv(n, _LANES)
    n_pad = rows * _LANES
    # Single fused pad + transpose into the kernel's SoA layout.
    c_blocks = jnp.pad(coords, ((0, n_pad - n), (0, 0))).T.reshape(3, rows, _LANES)
    out = _spherical_soa_blocks(c_blocks, obs_coord, block_rows=block_rows,
                                cores=cores)
    return out.reshape(3, n_pad)[:, :n].T


if __name__ == "__main__":
    key = jax.random.PRNGKey(0)
    k1, k2, k3 = jax.random.split(key, 3)
    obs_coord = jax.random.normal(k2, (3,), jnp.float32)

    # 1) tiny cloud -> pure-JAX fast path (module-faithful (N, 3) interface)
    n_small = 256
    coords_s = jax.random.normal(k1, (n_small, 3), jnp.float32) * 2.0
    out_s = jax.block_until_ready(observer_transform(coords_s, obs_coord))
    ref_s = _reference(coords_s, obs_coord)
    assert out_s.shape == (n_small, 3) and out_s.dtype == jnp.float32
    assert jnp.allclose(out_s, ref_s, atol=1e-5, rtol=1e-5), "small-N mismatch"

    # 2) large cloud, module-faithful AoS interface -> Pallas kernel path
    n_big = 40_000
    coords_b = jax.random.normal(k1, (n_big, 3), jnp.float32) * 2.0
    out_b = jax.block_until_ready(observer_transform(coords_b, obs_coord))
    ref_b = _reference(coords_b, obs_coord)
    assert out_b.shape == (n_big, 3) and out_b.dtype == jnp.float32
    assert jnp.allclose(out_b, ref_b, atol=1e-5, rtol=1e-5), "AoS kernel mismatch"

    # 3) preferred SoA (3, N) interface -> kernel with zero wrapper layout work
    n_soa = 16_384   # multiple of 128 -> metadata-only reshape, one HBM pass
    coords_soa = jax.random.normal(k3, (3, n_soa), jnp.float32) * 2.0
    out_soa = jax.block_until_ready(observer_transform_soa(coords_soa, obs_coord))
    ref_soa = _reference_soa(coords_soa, obs_coord)
    assert out_soa.shape == (3, n_soa) and out_soa.dtype == jnp.float32
    assert jnp.allclose(out_soa, ref_soa, atol=1e-5, rtol=1e-5), "SoA kernel mismatch"

    print("KERNEL_OK")
</pallas_src>

<mosaic_0001>
module attributes {stable_mosaic.version = 11 : i64} {
  func.func @_observer_kernel(%arg0: i32, %arg1: memref<3xf32, #tpu.memory_space<smem>>, %arg2: memref<3x312x128xf32, #tpu.memory_space<vmem>>, %arg3: memref<3x312x128xf32, #tpu.memory_space<vmem>>) attributes {dimension_semantics = [#tpu.dimension_semantics<parallel>], iteration_bounds = array<i64: 2>, scalar_prefetch = 1 : i64, scratch_operands = 0 : i64, tpu.core_type = #tpu.core_type<tc>, window_params = [{transform_indices = @transform_0, window_bounds = array<i64: 3, 312, 128>}, {transform_indices = @transform_1, window_bounds = array<i64: 3, 312, 128>}]} {
    %c0 = arith.constant 0 : index
    %c0_0 = arith.constant 0 : index
    %c0_1 = arith.constant 0 : index
    %0 = vector.load %arg2[%c0, %c0_0, %c0_1] : memref<3x312x128xf32, #tpu.memory_space<vmem>>, vector<1x312x128xf32>
    %1 = vector.shape_cast %0 : vector<1x312x128xf32> to vector<312x128xf32>
    %c0_2 = arith.constant 0 : index
    %2 = memref.load %arg1[%c0_2] : memref<3xf32, #tpu.memory_space<smem>>
    %3 = vector.broadcast %2 : f32 to vector<312x128xf32>
    %4 = arith.subf %1, %3 : vector<312x128xf32>
    %c1 = arith.constant 1 : index
    %c0_3 = arith.constant 0 : index
    %c0_4 = arith.constant 0 : index
    %5 = vector.load %arg2[%c1, %c0_3, %c0_4] : memref<3x312x128xf32, #tpu.memory_space<vmem>>, vector<1x312x128xf32>
    %6 = vector.shape_cast %5 : vector<1x312x128xf32> to vector<312x128xf32>
    %c1_5 = arith.constant 1 : index
    %7 = memref.load %arg1[%c1_5] : memref<3xf32, #tpu.memory_space<smem>>
    %8 = vector.broadcast %7 : f32 to vector<312x128xf32>
    %9 = arith.subf %6, %8 : vector<312x128xf32>
    %c2 = arith.constant 2 : index
    %c0_6 = arith.constant 0 : index
    %c0_7 = arith.constant 0 : index
    %10 = vector.load %arg2[%c2, %c0_6, %c0_7] : memref<3x312x128xf32, #tpu.memory_space<vmem>>, vector<1x312x128xf32>
    %11 = vector.shape_cast %10 : vector<1x312x128xf32> to vector<312x128xf32>
    %c2_8 = arith.constant 2 : index
    %12 = memref.load %arg1[%c2_8] : memref<3xf32, #tpu.memory_space<smem>>
    %13 = vector.broadcast %12 : f32 to vector<312x128xf32>
    %14 = arith.subf %11, %13 : vector<312x128xf32>
    %15 = arith.mulf %4, %4 : vector<312x128xf32>
    %16 = arith.mulf %9, %9 : vector<312x128xf32>
    %17 = arith.addf %15, %16 : vector<312x128xf32>
    %18 = arith.mulf %14, %14 : vector<312x128xf32>
    %19 = arith.addf %17, %18 : vector<312x128xf32>
    %20 = math.sqrt %19 : vector<312x128xf32>
    %c0_9 = arith.constant 0 : index
    %c0_10 = arith.constant 0 : index
    %c0_11 = arith.constant 0 : index
    %21 = vector.load %arg3[%c0_9, %c0_10, %c0_11] : memref<3x312x128xf32, #tpu.memory_space<vmem>>, vector<1x312x128xf32>
    %22 = vector.shape_cast %21 : vector<1x312x128xf32> to vector<312x128xf32>
    %23 = vector.shape_cast %20 : vector<312x128xf32> to vector<1x312x128xf32>
    tpu.vector_store %arg3[%c0_9, %c0_10, %c0_11], %23 {strides = array<i32>} : memref<3x312x128xf32, #tpu.memory_space<vmem>>, vector<1x312x128xf32>,
    %24 = math.sqrt %17 : vector<312x128xf32>
    %25 = math.atan2 %24, %14 : vector<312x128xf32>
    %c1_12 = arith.constant 1 : index
    %c0_13 = arith.constant 0 : index
    %c0_14 = arith.constant 0 : index
    %26 = vector.load %arg3[%c1_12, %c0_13, %c0_14] : memref<3x312x128xf32, #tpu.memory_space<vmem>>, vector<1x312x128xf32>
    %27 = vector.shape_cast %26 : vector<1x312x128xf32> to vector<312x128xf32>
    %28 = vector.shape_cast %25 : vector<312x128xf32> to vector<1x312x128xf32>
    tpu.vector_store %arg3[%c1_12, %c0_13, %c0_14], %28 {strides = array<i32>} : memref<3x312x128xf32, #tpu.memory_space<vmem>>, vector<1x312x128xf32>,
    %29 = math.atan2 %9, %4 : vector<312x128xf32>
    %c2_15 = arith.constant 2 : index
    %c0_16 = arith.constant 0 : index
    %c0_17 = arith.constant 0 : index
    %30 = vector.load %arg3[%c2_15, %c0_16, %c0_17] : memref<3x312x128xf32, #tpu.memory_space<vmem>>, vector<1x312x128xf32>
    %31 = vector.shape_cast %30 : vector<1x312x128xf32> to vector<312x128xf32>
    %32 = vector.shape_cast %29 : vector<312x128xf32> to vector<1x312x128xf32>
    tpu.vector_store %arg3[%c2_15, %c0_16, %c0_17], %32 {strides = array<i32>} : memref<3x312x128xf32, #tpu.memory_space<vmem>>, vector<1x312x128xf32>,
    return
  }
  func.func @transform_0(%arg0: i32, %arg1: memref<3xf32, #tpu.memory_space<smem>>) -> (i32, i32, i32) {
    %c0_i32 = arith.constant 0 : i32
    %c0_i32_0 = arith.constant 0 : i32
    %c0_i32_1 = arith.constant 0 : i32
    return %c0_i32, %arg0, %c0_i32_0 : i32, i32, i32
  }
  func.func @transform_1(%arg0: i32, %arg1: memref<3xf32, #tpu.memory_space<smem>>) -> (i32, i32, i32) {
    %c0_i32 = arith.constant 0 : i32
    %c0_i32_0 = arith.constant 0 : i32
    %c0_i32_1 = arith.constant 0 : i32
    return %c0_i32, %arg0, %c0_i32_0 : i32, i32, i32
  }
}

</mosaic_0001>

<llo_original>
// kernel: tpu_custom_call.1
$region0: #{tpu_custom_call.1}
  #allocation0 [shape = 'u32[]', space=smem, size = 0x4, offset = 0x4, fixed_abs, tag = 'smem constant byte address 0x4 - core index']
  #allocation1 [shape = 'u32[144,128]{1,0:T(1,128)}', space=vmem, size = 0x12000, scoped, tag = 'internal scratch']
  #allocation2 [shape = 's32[1]{0}', space=sflag, size = 0x4, scoped, tag = 'scoped memory for tpu_custom_call.1']
  #allocation3 [shape = 'u8[512]{0}', space=smem, size = 0x200, scoped, tag = 'prefetched SMEM operand 0']
  #allocation8 [shape = 's32[]', space=sflag, size = 0x4, offset = 0, fixed_abs, tag = 'sflag constant byte address 0x0 - dummy sync flag']
  #allocation10 [shape = 's32[]', space=sflag, size = 0x4, offset = 0, fixed_abs, tag = 'sflag constant byte address 0x0 - dummy sync flag']
  %s0 = inlined_call_operand.hbm [shape: f32[3], index: 0, kind: input, shape index: {}]
  %s1 = inlined_call_operand.hbm [shape: f32[3,313,128], index: 1, kind: input, shape index: {}]
  %s2 = inlined_call_operand.hbm [shape: f32[3,313,128], index: 2, kind: output, shape index: {}]
  %s3 = sld [smem:[#allocation0]]
  $region41: #{tpu_custom_call.1} parent=0
    _
  %s5 = ssub.s32 1, %s3
  %s6 = scalar_select 0, %s5, %s3
  %8 = dma.hbm_to_smem %s0, 16, [#allocation3], [#allocation2]
  %9 = dma.done [#allocation2], 16
  %10 = sfence
  $region1: #{tpu_custom_call.1} parent=0
    #allocation4 [shape = 'u8[958464]{0}', space=vmem, size = 0xea000, scoped, tag = 'input window, operand 1']
    #allocation5 [shape = 's32[2]{0}', space=sflag, size = 0x8, scoped, tag = 'scoped memory for tpu_custom_call.1']
    #allocation6 [shape = 's32[2]{0}', space=sflag, size = 0x8, scoped, tag = 'scoped memory for tpu_custom_call.1']
    #allocation7 [shape = 'u8[958464]{0}', space=vmem, size = 0xea000, scoped, tag = 'output window, operand 0']
    %11 = vsyncpa [#allocation5], 0
    %s12 = scalar_lea.sflag [#allocation5], 1
    %13 = vsyncpa %s12, 0
    %14 = vsyncpa [#allocation6], 0
    %s15 = scalar_lea.sflag [#allocation6], 1
    %16 = vsyncpa %s15, 0
    loop: start=0, step=1, limit=4
    $region2: #{tpu_custom_call.1} parent=1 // loop_pre_header
      _
    $region3: #{tpu_custom_call.1} parent=1 // loop_header
      %s18 = sphi 0, %s22
      %p19 = scmp.ge.s32.totalorder %s18, 4
      %s28 = sphi 0, %s30
      %s31 = sphi 0, %s28
      %s32 = sphi 0, %s31
      %s48 = sphi 0, %s32
      %s54 = sphi 0, %s56
      %s57 = sphi 0, %s54
      %s58 = sphi 0, %s57
      %s74 = sphi 0, %s58
    $region4: #{tpu_custom_call.1} parent=1 // loop_header_branch
      %21 = sbr.rel (%p19) target = $region8
    $region5: #{tpu_custom_call.1} parent=1 // loop_body
      %s23 = ssub.s32 %s18, 1
      %s24 = ssub.s32 %s18, 2
      %s25 = sadd.s32 %s18, 1
      %s26 = ssub.s32 %s18, %s25
      %p27 = scmp.eq.s32.totalorder %s26, 0
      %s29 = sadd.s32 %s28, 1
      %s30 = scalar_select %p27, %s28, %s29
      %p33 = pneg %p27
      %p34 = scmp.eq.s32.totalorder %s18, 1
      %p35 = por %p33, %p34
      %p36 = scmp.ne.s32.totalorder %s28, %s31
      %p37 = scmp.eq.s32.totalorder %s18, 0
      %p38 = por %p36, %p37
      %p39 = scmp.ne.s32.totalorder %s28, %s31
      %p40 = scmp.eq.s32.totalorder %s23, 1
      %p41 = por %p39, %p40
      %p42 = scmp.ne.s32.totalorder %s31, %s32
      %p43 = scmp.eq.s32.totalorder %s23, 0
      %p44 = por %p42, %p43
      %p45 = scmp.ne.s32.totalorder %s31, %s32
      %p46 = scmp.eq.s32.totalorder %s24, 1
      %p47 = por %p45, %p46
      %p49 = scmp.ne.s32.totalorder %s32, %s48
      %p50 = scmp.eq.s32.totalorder %s24, 0
      %p51 = por %p49, %p50
      %s52 = ssub.s32 %s18, %s25
      %p53 = scmp.eq.s32.totalorder %s52, 0
      %s55 = sadd.s32 %s54, 1
      %s56 = scalar_select %p53, %s54, %s55
      %p59 = pneg %p53
      %p60 = scmp.eq.s32.totalorder %s18, 1
      %p61 = por %p59, %p60
      %p62 = scmp.ne.s32.totalorder %s54, %s57
      %p63 = scmp.eq.s32.totalorder %s18, 0
      %p64 = por %p62, %p63
      %p65 = scmp.ne.s32.totalorder %s54, %s57
      %p66 = scmp.eq.s32.totalorder %s23, 1
      %p67 = por %p65, %p66
      %p68 = scmp.ne.s32.totalorder %s57, %s58
      %p69 = scmp.eq.s32.totalorder %s23, 0
      %p70 = por %p68, %p69
      %p71 = scmp.ne.s32.totalorder %s57, %s58
      %p72 = scmp.eq.s32.totalorder %s24, 1
      %p73 = por %p71, %p72
      %p75 = scmp.ne.s32.totalorder %s58, %s74
      %p76 = scmp.eq.s32.totalorder %s24, 0
      %p77 = por %p75, %p76
      %p78 = scmp.le.s32.totalorder 1, %s18
      %p79 = scmp.lt.s32.totalorder %s18, 3
      %p80 = pnand %p78, %p79
      %p81 = pneg %p80
      // Predicated region
      $region9: #{tpu_custom_call.1} parent=5 // pred_check
        _
      $region10: #{tpu_custom_call.1} parent=5 // pred_check_branch
        %83 = sbr.rel (%p80) target = $region12
      $region11: #{tpu_custom_call.1} parent=5 // pred_region
        %s84 = ssub.s32 %s18, 1
      $region12: #{tpu_custom_call.1} parent=5 // pred_fallthru
        _
      %p85 = scmp.lt.s32.totalorder %s18, 2
      // Predicated region
      $region13: #{tpu_custom_call.1} parent=5 // pred_check
        %p86 = pneg %p85
      $region14: #{tpu_custom_call.1} parent=5 // pred_check_branch
        %88 = sbr.rel (%p86) target = $region16
      $region15: #{tpu_custom_call.1} parent=5 // pred_region
        // Predicated region
        $region17: #{tpu_custom_call.1} parent=15 // pred_check
          %p89 = pneg %p38
        $region18: #{tpu_custom_call.1} parent=15 // pred_check_branch
          %91 = sbr.rel (%p89) target = $region20
        $region19: #{tpu_custom_call.1} parent=15 // pred_region
          #allocation9 [shape = 'u32[6]{0}', space=smem, size = 0x18, scoped, tag = 'DMA stride descriptor']
          %s92 = sand.u32 %s28, 1
          %s93 = scalar_lea.sflag [#allocation5], %s92
          %s94 = sand.u32 %s28, 1
          %s95 = smul.addr %s94, 936
          %s96 = scalar_lea.vmem [#allocation4], %s95
          %s97 = smul.u32 39, %s18
          %s98 = ssub.s32 40, %s97
          %p99 = scmp.lt.s32.totalorder %s98, 39
          %s100 = scalar_select %p99, %s98, 39
          %s101 = smul.u32 384, %s100
          %s103 = ssub.s32 14976, %s101
          %104 = vsyncadd %s93, %s103
          %p105 = scmp.ne.s32.totalorder 0, %s101
          %s106 = smul.addr %s97, 128
          %s107 = scalar_lea.hbm %s1, %s106
          %s108 = smul.u32 8, %s100
          %s109 = smul.u32 %s108, 3
          %s111 = sshll.u32 1, 14
          %s112 = sxor.u32 4294967295, %s111
          %s114 = sld [smem:[#allocation0]]
          %s115 = sadd.s32 2, %s114
          %s117 = sshll.u32 7, 26
          %s118 = sxor.u32 4294967295, %s117
          %s119 = sand.u32 0, %s118
          %s120 = sshll.u32 %s115, 26
          %s121 = sor.u32 %s119, %s120
          %s122 = sshll.u32 %s96, 4
          %s123 = int_to_ptr.vmem [resolvable:$true] %s122
          %s124 = sshll.u32 %s109, 4
          %129 = sst [smem:[#allocation9]] 5120
          %s130 = scalar_lea.smem [#allocation9], 1
          %131 = sst [smem:[%s130]] 4992
          %s132 = scalar_lea.smem [#allocation9], 2
          %133 = sst [smem:[%s132]] %s100
          %s134 = scalar_lea.smem [#allocation9], 3
          %135 = sst [smem:[%s134]] 128
          %s136 = scalar_lea.smem [#allocation9], 4
          %137 = sst [smem:[%s136]] 128
          %s138 = scalar_lea.smem [#allocation9], 5
          %139 = sst [smem:[%s138]] 8
          %141 = dma.general (%p105), %s107, %s124, %s123, %s93, [#allocation8], [#allocation9], %s121, 0
        $region20: #{tpu_custom_call.1} parent=15 // pred_fallthru
          _
      $region16: #{tpu_custom_call.1} parent=5 // pred_fallthru
        _
      %p142 = scmp.le.s32.totalorder 1, %s18
      %p143 = scmp.lt.s32.totalorder %s18, 3
      %p144 = pnand %p142, %p143
      %p145 = pneg %p144
      // Predicated region
      $region21: #{tpu_custom_call.1} parent=5 // pred_check
        _
      $region22: #{tpu_custom_call.1} parent=5 // pred_check_branch
        %147 = sbr.rel (%p144) target = $region24
      $region23: #{tpu_custom_call.1} parent=5 // pred_region
        %s148 = ssub.s32 %s18, 1
        %s149 = sand.u32 %s31, 1
        %s150 = scalar_lea.sflag [#allocation5], %s149
        %s151 = sand.u32 %s31, 1
        %s152 = smul.addr %s151, 936
        %s153 = scalar_lea.vmem [#allocation4], %s152
        // Predicated region
        $region25: #{tpu_custom_call.1} parent=23 // pred_check
          %p154 = pneg %p44
        $region26: #{tpu_custom_call.1} parent=23 // pred_check_branch
          %156 = sbr.rel (%p154) target = $region28
        $region27: #{tpu_custom_call.1} parent=23 // pred_region
          %157 = dma.done %s150, 14976
        $region28: #{tpu_custom_call.1} parent=23 // pred_fallthru
          _
        %s158 = sand.u32 %s31, 1
        %s159 = scalar_lea.sflag [#allocation5], %s158
        %s160 = sand.u32 %s31, 1
        %s161 = smul.addr %s160, 936
        %s162 = scalar_lea.vmem [#allocation4], %s161
        %p163 = pneg %p44
        %p164 = pneg %p41
        %p165 = pneg %p70
        %p166 = pneg %p67
        %s167 = sand.u32 %s57, 1
        %s168 = scalar_lea.sflag [#allocation6], %s167
        %s169 = sand.u32 %s57, 1
        %s170 = smul.addr %s169, 936
        %s171 = scalar_lea.vmem [#allocation7], %s170
        %s172 = smul.u32 39, %s23
        %s173 = ssub.s32 40, %s172
        %p174 = scmp.lt.s32.totalorder %s173, 39
        %s175 = scalar_select %p174, %s173, 39
        %s176 = smul.u32 384, %s175
        %s177 = smul.u32 39, %s23
        %s178 = ssub.s32 40, %s177
        %p179 = scmp.lt.s32.totalorder %s178, 39
        %s180 = scalar_select %p179, %s178, 39
        %s181 = smul.u32 384, %s180
        %v182 = vld [vmem:[%s153] sm:$0xff]
        %v183 = vld [vmem:[%s153 + $0x8] sm:$0xff]
        %v184 = vld [vmem:[%s153 + $0x10] sm:$0xff]
        %v185 = vld [vmem:[%s153 + $0x18] sm:$0xff]
        %v186 = vld [vmem:[%s153 + $0x20] sm:$0xff]
        %v187 = vld [vmem:[%s153 + $0x28] sm:$0xff]
        %v188 = vld [vmem:[%s153 + $0x30] sm:$0xff]
        %v189 = vld [vmem:[%s153 + $0x38] sm:$0xff]
        %v190 = vld [vmem:[%s153 + $0x40] sm:$0xff]
        %v191 = vld [vmem:[%s153 + $0x48] sm:$0xff]
        %v192 = vld [vmem:[%s153 + $0x50] sm:$0xff]
        %v193 = vld [vmem:[%s153 + $0x58] sm:$0xff]
        %v194 = vld [vmem:[%s153 + $0x60] sm:$0xff]
        %v195 = vld [vmem:[%s153 + $0x68] sm:$0xff]
        %v196 = vld [vmem:[%s153 + $0x70] sm:$0xff]
        %v197 = vld [vmem:[%s153 + $0x78] sm:$0xff]
        %v198 = vld [vmem:[%s153 + $0x80] sm:$0xff]
        %v199 = vld [vmem:[%s153 + $0x88] sm:$0xff]
        %v200 = vld [vmem:[%s153 + $0x90] sm:$0xff]
        %v201 = vld [vmem:[%s153 + $0x98] sm:$0xff]
        %v202 = vld [vmem:[%s153 + $0xa0] sm:$0xff]
        %v203 = vld [vmem:[%s153 + $0xa8] sm:$0xff]
        %v204 = vld [vmem:[%s153 + $0xb0] sm:$0xff]
        %v205 = vld [vmem:[%s153 + $0xb8] sm:$0xff]
        %v206 = vld [vmem:[%s153 + $0xc0] sm:$0xff]
        %v207 = vld [vmem:[%s153 + $0xc8] sm:$0xff]
        %v208 = vld [vmem:[%s153 + $0xd0] sm:$0xff]
        %v209 = vld [vmem:[%s153 + $0xd8] sm:$0xff]
        %v210 = vld [vmem:[%s153 + $0xe0] sm:$0xff]
        %v211 = vld [vmem:[%s153 + $0xe8] sm:$0xff]
        %v212 = vld [vmem:[%s153 + $0xf0] sm:$0xff]
        %v213 = vld [vmem:[%s153 + $0xf8] sm:$0xff]
        %v214 = vld [vmem:[%s153 + $0x100] sm:$0xff]
        %v215 = vld [vmem:[%s153 + $0x108] sm:$0xff]
        %v216 = vld [vmem:[%s153 + $0x110] sm:$0xff]
        %v217 = vld [vmem:[%s153 + $0x118] sm:$0xff]
        %v218 = vld [vmem:[%s153 + $0x120] sm:$0xff]
        %v219 = vld [vmem:[%s153 + $0x128] sm:$0xff]
        %v220 = vld [vmem:[%s153 + $0x130] sm:$0xff]
        %s221 = sld [smem:[#allocation3]]
        %v222 = vstv %s221
        %v223 = vsub.f32 %v182, %v222
        %v224 = vsub.f32 %v183, %v222
        %v225 = vsub.f32 %v184, %v222
        %v226 = vsub.f32 %v185, %v222
        %v227 = vsub.f32 %v186, %v222
        %v228 = vsub.f32 %v187, %v222
        %v229 = vsub.f32 %v188, %v222
        %v230 = vsub.f32 %v189, %v222
        %v231 = vsub.f32 %v190, %v222
        %v232 = vsub.f32 %v191, %v222
        %v233 = vsub.f32 %v192, %v222
        %v234 = vsub.f32 %v193, %v222
        %v235 = vsub.f32 %v194, %v222
        %v236 = vsub.f32 %v195, %v222
        %v237 = vsub.f32 %v196, %v222
        %v238 = vsub.f32 %v197, %v222
        %v239 = vsub.f32 %v198, %v222
        %v240 = vsub.f32 %v199, %v222
        %v241 = vsub.f32 %v200, %v222
        %v242 = vsub.f32 %v201, %v222
        %v243 = vsub.f32 %v202, %v222
        %v244 = vsub.f32 %v203, %v222
        %v245 = vsub.f32 %v204, %v222
        %v246 = vsub.f32 %v205, %v222
        %v247 = vsub.f32 %v206, %v222
        %v248 = vsub.f32 %v207, %v222
        %v249 = vsub.f32 %v208, %v222
        %v250 = vsub.f32 %v209, %v222
        %v251 = vsub.f32 %v210, %v222
        %v252 = vsub.f32 %v211, %v222
        %v253 = vsub.f32 %v212, %v222
        %v254 = vsub.f32 %v213, %v222
        %v255 = vsub.f32 %v214, %v222
        %v256 = vsub.f32 %v215, %v222
        %v257 = vsub.f32 %v216, %v222
        %v258 = vsub.f32 %v217, %v222
        %v259 = vsub.f32 %v218, %v222
        %v260 = vsub.f32 %v219, %v222
        %v261 = vsub.f32 %v220, %v222
        %s262 = scalar_lea.vmem %s153, 312 [#allocation4]
        %v263 = vld [vmem:[%s262] sm:$0xff]
        %v264 = vld [vmem:[%s262 + $0x8] sm:$0xff]
        %v265 = vld [vmem:[%s262 + $0x10] sm:$0xff]
        %v266 = vld [vmem:[%s262 + $0x18] sm:$0xff]
        %v267 = vld [vmem:[%s262 + $0x20] sm:$0xff]
        %v268 = vld [vmem:[%s262 + $0x28] sm:$0xff]
        %v269 = vld [vmem:[%s262 + $0x30] sm:$0xff]
        %v270 = vld [vmem:[%s262 + $0x38] sm:$0xff]
        %v271 = vld [vmem:[%s262 + $0x40] sm:$0xff]
        %v272 = vld [vmem:[%s262 + $0x48] sm:$0xff]
        %v273 = vld [vmem:[%s262 + $0x50] sm:$0xff]
        %v274 = vld [vmem:[%s262 + $0x58] sm:$0xff]
        %v275 = vld [vmem:[%s262 + $0x60] sm:$0xff]
        %v276 = vld [vmem:[%s262 + $0x68] sm:$0xff]
        %v277 = vld [vmem:[%s262 + $0x70] sm:$0xff]
        %v278 = vld [vmem:[%s262 + $0x78] sm:$0xff]
        %v279 = vld [vmem:[%s262 + $0x80] sm:$0xff]
        %v280 = vld [vmem:[%s262 + $0x88] sm:$0xff]
        %v281 = vld [vmem:[%s262 + $0x90] sm:$0xff]
        %v282 = vld [vmem:[%s262 + $0x98] sm:$0xff]
        %v283 = vld [vmem:[%s262 + $0xa0] sm:$0xff]
        %v284 = vld [vmem:[%s262 + $0xa8] sm:$0xff]
        %v285 = vld [vmem:[%s262 + $0xb0] sm:$0xff]
        %v286 = vld [vmem:[%s262 + $0xb8] sm:$0xff]
        %v287 = vld [vmem:[%s262 + $0xc0] sm:$0xff]
        %v288 = vld [vmem:[%s262 + $0xc8] sm:$0xff]
        %v289 = vld [vmem:[%s262 + $0xd0] sm:$0xff]
        %v290 = vld [vmem:[%s262 + $0xd8] sm:$0xff]
        %v291 = vld [vmem:[%s262 + $0xe0] sm:$0xff]
        %v292 = vld [vmem:[%s262 + $0xe8] sm:$0xff]
        %v293 = vld [vmem:[%s262 + $0xf0] sm:$0xff]
        %v294 = vld [vmem:[%s262 + $0xf8] sm:$0xff]
        %v295 = vld [vmem:[%s262 + $0x100] sm:$0xff]
        %v296 = vld [vmem:[%s262 + $0x108] sm:$0xff]
        %v297 = vld [vmem:[%s262 + $0x110] sm:$0xff]
        %v298 = vld [vmem:[%s262 + $0x118] sm:$0xff]
        %v299 = vld [vmem:[%s262 + $0x120] sm:$0xff]
        %v300 = vld [vmem:[%s262 + $0x128] sm:$0xff]
        %v301 = vld [vmem:[%s262 + $0x130] sm:$0xff]
        %s302 = sld [smem:[#allocation3 + $0x1]]
        %v303 = vstv %s302
        %v304 = vsub.f32 %v263, %v303
        %v305 = vsub.f32 %v264, %v303
        %v306 = vsub.f32 %v265, %v303
        %v307 = vsub.f32 %v266, %v303
        %v308 = vsub.f32 %v267, %v303
        %v309 = vsub.f32 %v268, %v303
        %v310 = vsub.f32 %v269, %v303
        %v311 = vsub.f32 %v270, %v303
        %v312 = vsub.f32 %v271, %v303
        %v313 = vsub.f32 %v272, %v303
        %v314 = vsub.f32 %v273, %v303
        %v315 = vsub.f32 %v274, %v303
        %v316 = vsub.f32 %v275, %v303
        %v317 = vsub.f32 %v276, %v303
        %v318 = vsub.f32 %v277, %v303
        %v319 = vsub.f32 %v278, %v303
        %v320 = vsub.f32 %v279, %v303
        %v321 = vsub.f32 %v280, %v303
        %v322 = vsub.f32 %v281, %v303
        %v323 = vsub.f32 %v282, %v303
        %v324 = vsub.f32 %v283, %v303
        %v325 = vsub.f32 %v284, %v303
        %v326 = vsub.f32 %v285, %v303
        %v327 = vsub.f32 %v286, %v303
        %v328 = vsub.f32 %v287, %v303
        %v329 = vsub.f32 %v288, %v303
        %v330 = vsub.f32 %v289, %v303
        %v331 = vsub.f32 %v290, %v303
        %v332 = vsub.f32 %v291, %v303
        %v333 = vsub.f32 %v292, %v303
        %v334 = vsub.f32 %v293, %v303
        %v335 = vsub.f32 %v294, %v303
        %v336 = vsub.f32 %v295, %v303
        %v337 = vsub.f32 %v296, %v303
        %v338 = vsub.f32 %v297, %v303
        %v339 = vsub.f32 %v298, %v303
        %v340 = vsub.f32 %v299, %v303
        %v341 = vsub.f32 %v300, %v303
        %v342 = vsub.f32 %v301, %v303
        %s343 = scalar_lea.vmem %s153, 624 [#allocation4]
        %v344 = vld [vmem:[%s343] sm:$0xff]
        %v345 = vld [vmem:[%s343 + $0x8] sm:$0xff]
        %v346 = vld [vmem:[%s343 + $0x10] sm:$0xff]
        %v347 = vld [vmem:[%s343 + $0x18] sm:$0xff]
        %v348 = vld [vmem:[%s343 + $0x20] sm:$0xff]
        %v349 = vld [vmem:[%s343 + $0x28] sm:$0xff]
        %v350 = vld [vmem:[%s343 + $0x30] sm:$0xff]
        %v351 = vld [vmem:[%s343 + $0x38] sm:$0xff]
        %v352 = vld [vmem:[%s343 + $0x40] sm:$0xff]
        %v353 = vld [vmem:[%s343 + $0x48] sm:$0xff]
        %v354 = vld [vmem:[%s343 + $0x50] sm:$0xff]
        %v355 = vld [vmem:[%s343 + $0x58] sm:$0xff]
        %v356 = vld [vmem:[%s343 + $0x60] sm:$0xff]
        %v357 = vld [vmem:[%s343 + $0x68] sm:$0xff]
        %v358 = vld [vmem:[%s343 + $0x70] sm:$0xff]
        %v359 = vld [vmem:[%s343 + $0x78] sm:$0xff]
        %v360 = vld [vmem:[%s343 + $0x80] sm:$0xff]
        %v361 = vld [vmem:[%s343 + $0x88] sm:$0xff]
        %v362 = vld [vmem:[%s343 + $0x90] sm:$0xff]
        %v363 = vld [vmem:[%s343 + $0x98] sm:$0xff]
        %v364 = vld [vmem:[%s343 + $0xa0] sm:$0xff]
        %v365 = vld [vmem:[%s343 + $0xa8] sm:$0xff]
        %v366 = vld [vmem:[%s343 + $0xb0] sm:$0xff]
        %v367 = vld [vmem:[%s343 + $0xb8] sm:$0xff]
        %v368 = vld [vmem:[%s343 + $0xc0] sm:$0xff]
        %v369 = vld [vmem:[%s343 + $0xc8] sm:$0xff]
        %v370 = vld [vmem:[%s343 + $0xd0] sm:$0xff]
        %v371 = vld [vmem:[%s343 + $0xd8] sm:$0xff]
        %v372 = vld [vmem:[%s343 + $0xe0] sm:$0xff]
        %v373 = vld [vmem:[%s343 + $0xe8] sm:$0xff]
        %v374 = vld [vmem:[%s343 + $0xf0] sm:$0xff]
        %v375 = vld [vmem:[%s343 + $0xf8] sm:$0xff]
        %v376 = vld [vmem:[%s343 + $0x100] sm:$0xff]
        %v377 = vld [vmem:[%s343 + $0x108] sm:$0xff]
        %v378 = vld [vmem:[%s343 + $0x110] sm:$0xff]
        %v379 = vld [vmem:[%s343 + $0x118] sm:$0xff]
        %v380 = vld [vmem:[%s343 + $0x120] sm:$0xff]
        %v381 = vld [vmem:[%s343 + $0x128] sm:$0xff]
        %v382 = vld [vmem:[%s343 + $0x130] sm:$0xff]
        %s383 = sld [smem:[#allocation3 + $0x2]]
        %v384 = vstv %s383
        %v385 = vsub.f32 %v344, %v384
        %v386 = vsub.f32 %v345, %v384
        %v387 = vsub.f32 %v346, %v384
        %v388 = vsub.f32 %v347, %v384
        %v389 = vsub.f32 %v348, %v384
        %v390 = vsub.f32 %v349, %v384
        %v391 = vsub.f32 %v350, %v384
        %v392 = vsub.f32 %v351, %v384
        %v393 = vsub.f32 %v352, %v384
        %v394 = vsub.f32 %v353, %v384
        %v395 = vsub.f32 %v354, %v384
        %v396 = vsub.f32 %v355, %v384
        %v397 = vsub.f32 %v356, %v384
        %v398 = vsub.f32 %v357, %v384
        %v399 = vsub.f32 %v358, %v384
        %v400 = vsub.f32 %v359, %v384
        %v401 = vsub.f32 %v360, %v384
        %v402 = vsub.f32 %v361, %v384
        %v403 = vsub.f32 %v362, %v384
        %v404 = vsub.f32 %v363, %v384
        %v405 = vsub.f32 %v364, %v384
        %v406 = vsub.f32 %v365, %v384
        %v407 = vsub.f32 %v366, %v384
        %v408 = vsub.f32 %v367, %v384
        %v409 = vsub.f32 %v368, %v384
        %v410 = vsub.f32 %v369, %v384
        %v411 = vsub.f32 %v370, %v384
        %v412 = vsub.f32 %v371, %v384
        %v413 = vsub.f32 %v372, %v384
        %v414 = vsub.f32 %v373, %v384
        %v415 = vsub.f32 %v374, %v384
        %v416 = vsub.f32 %v375, %v384
        %v417 = vsub.f32 %v376, %v384
        %v418 = vsub.f32 %v377, %v384
        %v419 = vsub.f32 %v378, %v384
        %v420 = vsub.f32 %v379, %v384
        %v421 = vsub.f32 %v380, %v384
        %v422 = vsub.f32 %v381, %v384
        %v423 = vsub.f32 %v382, %v384
        %v424 = vmul.f32 %v223, %v223
        %v425 = vmul.f32 %v224, %v224
        %v426 = vmul.f32 %v225, %v225
        %v427 = vmul.f32 %v226, %v226
        %v428 = vmul.f32 %v227, %v227
        %v429 = vmul.f32 %v228, %v228
        %v430 = vmul.f32 %v229, %v229
        %v431 = vmul.f32 %v230, %v230
        %v432 = vmul.f32 %v231, %v231
        %v433 = vmul.f32 %v232, %v232
        %v434 = vmul.f32 %v233, %v233
        %v435 = vmul.f32 %v234, %v234
        %v436 = vmul.f32 %v235, %v235
        %v437 = vmul.f32 %v236, %v236
        %v438 = vmul.f32 %v237, %v237
        %v439 = vmul.f32 %v238, %v238
        %v440 = vmul.f32 %v239, %v239
        %v441 = vmul.f32 %v240, %v240
        %v442 = vmul.f32 %v241, %v241
        %v443 = vmul.f32 %v242, %v242
        %v444 = vmul.f32 %v243, %v243
        %v445 = vmul.f32 %v244, %v244
        %v446 = vmul.f32 %v245, %v245
        %v447 = vmul.f32 %v246, %v246
        %v448 = vmul.f32 %v247, %v247
        %v449 = vmul.f32 %v248, %v248
        %v450 = vmul.f32 %v249, %v249
        %v451 = vmul.f32 %v250, %v250
        %v452 = vmul.f32 %v251, %v251
        %v453 = vmul.f32 %v252, %v252
        %v454 = vmul.f32 %v253, %v253
        %v455 = vmul.f32 %v254, %v254
        %v456 = vmul.f32 %v255, %v255
        %v457 = vmul.f32 %v256, %v256
        %v458 = vmul.f32 %v257, %v257
        %v459 = vmul.f32 %v258, %v258
        %v460 = vmul.f32 %v259, %v259
        %v461 = vmul.f32 %v260, %v260
        %v462 = vmul.f32 %v261, %v261
        %v463 = vmul.f32 %v304, %v304
        %v464 = vmul.f32 %v305, %v305
        %v465 = vmul.f32 %v306, %v306
        %v466 = vmul.f32 %v307, %v307
        %v467 = vmul.f32 %v308, %v308
        %v468 = vmul.f32 %v309, %v309
        %v469 = vmul.f32 %v310, %v310
        %v470 = vmul.f32 %v311, %v311
        %v471 = vmul.f32 %v312, %v312
        %v472 = vmul.f32 %v313, %v313
        %v473 = vmul.f32 %v314, %v314
        %v474 = vmul.f32 %v315, %v315
        %v475 = vmul.f32 %v316, %v316
        %v476 = vmul.f32 %v317, %v317
        %v477 = vmul.f32 %v318, %v318
        %v478 = vmul.f32 %v319, %v319
        %v479 = vmul.f32 %v320, %v320
        %v480 = vmul.f32 %v321, %v321
        %v481 = vmul.f32 %v322, %v322
        %v482 = vmul.f32 %v323, %v323
        %v483 = vmul.f32 %v324, %v324
        %v484 = vmul.f32 %v325, %v325
        %v485 = vmul.f32 %v326, %v326
        %v486 = vmul.f32 %v327, %v327
        %v487 = vmul.f32 %v328, %v328
        %v488 = vmul.f32 %v329, %v329
        %v489 = vmul.f32 %v330, %v330
        %v490 = vmul.f32 %v331, %v331
        %v491 = vmul.f32 %v332, %v332
        %v492 = vmul.f32 %v333, %v333
        %v493 = vmul.f32 %v334, %v334
        %v494 = vmul.f32 %v335, %v335
        %v495 = vmul.f32 %v336, %v336
        %v496 = vmul.f32 %v337, %v337
        %v497 = vmul.f32 %v338, %v338
        %v498 = vmul.f32 %v339, %v339
        %v499 = vmul.f32 %v340, %v340
        %v500 = vmul.f32 %v341, %v341
        %v501 = vmul.f32 %v342, %v342
        %v502 = vadd.f32 %v424, %v463
        %v503 = vadd.f32 %v425, %v464
        %v504 = vadd.f32 %v426, %v465
        %v505 = vadd.f32 %v427, %v466
        %v506 = vadd.f32 %v428, %v467
        %v507 = vadd.f32 %v429, %v468
        %v508 = vadd.f32 %v430, %v469
        %v509 = vadd.f32 %v431, %v470
        %v510 = vadd.f32 %v432, %v471
        %v511 = vadd.f32 %v433, %v472
        %v512 = vadd.f32 %v434, %v473
        %v513 = vadd.f32 %v435, %v474
        %v514 = vadd.f32 %v436, %v475
        %v515 = vadd.f32 %v437, %v476
        %v516 = vadd.f32 %v438, %v477
        %v517 = vadd.f32 %v439, %v478
        %v518 = vadd.f32 %v440, %v479
        %v519 = vadd.f32 %v441, %v480
        %v520 = vadd.f32 %v442, %v481
        %v521 = vadd.f32 %v443, %v482
        %v522 = vadd.f32 %v444, %v483
        %v523 = vadd.f32 %v445, %v484
        %v524 = vadd.f32 %v446, %v485
        %v525 = vadd.f32 %v447, %v486
        %v526 = vadd.f32 %v448, %v487
        %v527 = vadd.f32 %v449, %v488
        %v528 = vadd.f32 %v450, %v489
        %v529 = vadd.f32 %v451, %v490
        %v530 = vadd.f32 %v452, %v491
        %v531 = vadd.f32 %v453, %v492
        %v532 = vadd.f32 %v454, %v493
        %v533 = vadd.f32 %v455, %v494
        %v534 = vadd.f32 %v456, %v495
        %v535 = vadd.f32 %v457, %v496
        %v536 = vadd.f32 %v458, %v497
        %v537 = vadd.f32 %v459, %v498
        %v538 = vadd.f32 %v460, %v499
        %v539 = vadd.f32 %v461, %v500
        %v540 = vadd.f32 %v462, %v501
        %v541 = vmul.f32 %v385, %v385
        %v542 = vmul.f32 %v386, %v386
        %v543 = vmul.f32 %v387, %v387
        %v544 = vmul.f32 %v388, %v388
        %v545 = vmul.f32 %v389, %v389
        %v546 = vmul.f32 %v390, %v390
        %v547 = vmul.f32 %v391, %v391
        %v548 = vmul.f32 %v392, %v392
        %v549 = vmul.f32 %v393, %v393
        %v550 = vmul.f32 %v394, %v394
        %v551 = vmul.f32 %v395, %v395
        %v552 = vmul.f32 %v396, %v396
        %v553 = vmul.f32 %v397, %v397
        %v554 = vmul.f32 %v398, %v398
        %v555 = vmul.f32 %v399, %v399
        %v556 = vmul.f32 %v400, %v400
        %v557 = vmul.f32 %v401, %v401
        %v558 = vmul.f32 %v402, %v402
        %v559 = vmul.f32 %v403, %v403
        %v560 = vmul.f32 %v404, %v404
        %v561 = vmul.f32 %v405, %v405
        %v562 = vmul.f32 %v406, %v406
        %v563 = vmul.f32 %v407, %v407
        %v564 = vmul.f32 %v408, %v408
        %v565 = vmul.f32 %v409, %v409
        %v566 = vmul.f32 %v410, %v410
        %v567 = vmul.f32 %v411, %v411
        %v568 = vmul.f32 %v412, %v412
        %v569 = vmul.f32 %v413, %v413
        %v570 = vmul.f32 %v414, %v414
        %v571 = vmul.f32 %v415, %v415
        %v572 = vmul.f32 %v416, %v416
        %v573 = vmul.f32 %v417, %v417
        %v574 = vmul.f32 %v418, %v418
        %v575 = vmul.f32 %v419, %v419
        %v576 = vmul.f32 %v420, %v420
        %v577 = vmul.f32 %v421, %v421
        %v578 = vmul.f32 %v422, %v422
        %v579 = vmul.f32 %v423, %v423
        %v580 = vadd.f32 %v502, %v541
        %v581 = vadd.f32 %v503, %v542
        %v582 = vadd.f32 %v504, %v543
        %v583 = vadd.f32 %v505, %v544
        %v584 = vadd.f32 %v506, %v545
        %v585 = vadd.f32 %v507, %v546
        %v586 = vadd.f32 %v508, %v547
        %v587 = vadd.f32 %v509, %v548
        %v588 = vadd.f32 %v510, %v549
        %v589 = vadd.f32 %v511, %v550
        %v590 = vadd.f32 %v512, %v551
        %v591 = vadd.f32 %v513, %v552
        %v592 = vadd.f32 %v514, %v553
        %v593 = vadd.f32 %v515, %v554
        %v594 = vadd.f32 %v516, %v555
        %v595 = vadd.f32 %v517, %v556
        %v596 = vadd.f32 %v518, %v557
        %v597 = vadd.f32 %v519, %v558
        %v598 = vadd.f32 %v520, %v559
        %v599 = vadd.f32 %v521, %v560
        %v600 = vadd.f32 %v522, %v561
        %v601 = vadd.f32 %v523, %v562
        %v602 = vadd.f32 %v524, %v563
        %v603 = vadd.f32 %v525, %v564
        %v604 = vadd.f32 %v526, %v565
        %v605 = vadd.f32 %v527, %v566
        %v606 = vadd.f32 %v528, %v567
        %v607 = vadd.f32 %v529, %v568
        %v608 = vadd.f32 %v530, %v569
        %v609 = vadd.f32 %v531, %v570
        %v610 = vadd.f32 %v532, %v571
        %v611 = vadd.f32 %v533, %v572
        %v612 = vadd.f32 %v534, %v573
        %v613 = vadd.f32 %v535, %v574
        %v614 = vadd.f32 %v536, %v575
        %v615 = vadd.f32 %v537, %v576
        %v616 = vadd.f32 %v538, %v577
        %v617 = vadd.f32 %v539, %v578
        %v618 = vadd.f32 %v540, %v579
        %v619 = vrsqrt.pop %v580
        %v620 = vmul.f32 %v580, %v619
        %vm621 = vcmp.eq.f32.partialorder %v580, inf
        %v622 = vsel %vm621, %v580, %v620
        %vm623 = vcmp.eq.f32.partialorder %v580, 0.0
        %v624 = vand.u32 %v580, 2147483648
        %v625 = vsel %vm623, %v624, %v622
        %v626 = vrsqrt.pop %v581
        %v627 = vmul.f32 %v581, %v626
        %vm628 = vcmp.eq.f32.partialorder %v581, inf
        %v629 = vsel %vm628, %v581, %v627
        %vm630 = vcmp.eq.f32.partialorder %v581, 0.0
        %v631 = vand.u32 %v581, 2147483648
        %v632 = vsel %vm630, %v631, %v629
        %v633 = vrsqrt.pop %v582
        %v634 = vmul.f32 %v582, %v633
        %vm635 = vcmp.eq.f32.partialorder %v582, inf
        %v636 = vsel %vm635, %v582, %v634
        %vm637 = vcmp.eq.f32.partialorder %v582, 0.0
        %v638 = vand.u32 %v582, 2147483648
        %v639 = vsel %vm637, %v638, %v636
        %v640 = vrsqrt.pop %v583
        %v641 = vmul.f32 %v583, %v640
        %vm642 = vcmp.eq.f32.partialorder %v583, inf
        %v643 = vsel %vm642, %v583, %v641
        %vm644 = vcmp.eq.f32.partialorder %v583, 0.0
        %v645 = vand.u32 %v583, 2147483648
        %v646 = vsel %vm644, %v645, %v643
        %v647 = vrsqrt.pop %v584
        %v648 = vmul.f32 %v584, %v647
        %vm649 = vcmp.eq.f32.partialorder %v584, inf
        %v650 = vsel %vm649, %v584, %v648
        %vm651 = vcmp.eq.f32.partialorder %v584, 0.0
        %v652 = vand.u32 %v584, 2147483648
        %v653 = vsel %vm651, %v652, %v650
        %v654 = vrsqrt.pop %v585
        %v655 = vmul.f32 %v585, %v654
        %vm656 = vcmp.eq.f32.partialorder %v585, inf
        %v657 = vsel %vm656, %v585, %v655
        %vm658 = vcmp.eq.f32.partialorder %v585, 0.0
        %v659 = vand.u32 %v585, 2147483648
        %v660 = vsel %vm658, %v659, %v657
        %v661 = vrsqrt.pop %v586
        %v662 = vmul.f32 %v586, %v661
        %vm663 = vcmp.eq.f32.partialorder %v586, inf
        %v664 = vsel %vm663, %v586, %v662
        %vm665 = vcmp.eq.f32.partialorder %v586, 0.0
        %v666 = vand.u32 %v586, 2147483648
        %v667 = vsel %vm665, %v666, %v664
        %v668 = vrsqrt.pop %v587
        %v669 = vmul.f32 %v587, %v668
        %vm670 = vcmp.eq.f32.partialorder %v587, inf
        %v671 = vsel %vm670, %v587, %v669
        %vm672 = vcmp.eq.f32.partialorder %v587, 0.0
        %v673 = vand.u32 %v587, 2147483648
        %v674 = vsel %vm672, %v673, %v671
        %v675 = vrsqrt.pop %v588
        %v676 = vmul.f32 %v588, %v675
        %vm677 = vcmp.eq.f32.partialorder %v588, inf
        %v678 = vsel %vm677, %v588, %v676
        %vm679 = vcmp.eq.f32.partialorder %v588, 0.0
        %v680 = vand.u32 %v588, 2147483648
        %v681 = vsel %vm679, %v680, %v678
        %v682 = vrsqrt.pop %v589
        %v683 = vmul.f32 %v589, %v682
        %vm684 = vcmp.eq.f32.partialorder %v589, inf
        %v685 = vsel %vm684, %v589, %v683
        %vm686 = vcmp.eq.f32.partialorder %v589, 0.0
        %v687 = vand.u32 %v589, 2147483648
        %v688 = vsel %vm686, %v687, %v685
        %v689 = vrsqrt.pop %v590
        %v690 = vmul.f32 %v590, %v689
        %vm691 = vcmp.eq.f32.partialorder %v590, inf
        %v692 = vsel %vm691, %v590, %v690
        %vm693 = vcmp.eq.f32.partialorder %v590, 0.0
        %v694 = vand.u32 %v590, 2147483648
        %v695 = vsel %vm693, %v694, %v692
        %v696 = vrsqrt.pop %v591
        %v697 = vmul.f32 %v591, %v696
        %vm698 = vcmp.eq.f32.partialorder %v591, inf
        %v699 = vsel %vm698, %v591, %v697
        %vm700 = vcmp.eq.f32.partialorder %v591, 0.0
        %v701 = vand.u32 %v591, 2147483648
        %v702 = vsel %vm700, %v701, %v699
        %v703 = vrsqrt.pop %v592
        %v704 = vmul.f32 %v592, %v703
        %vm705 = vcmp.eq.f32.partialorder %v592, inf
        %v706 = vsel %vm705, %v592, %v704
        %vm707 = vcmp.eq.f32.partialorder %v592, 0.0
        %v708 = vand.u32 %v592, 2147483648
        %v709 = vsel %vm707, %v708, %v706
        %v710 = vrsqrt.pop %v593
        %v711 = vmul.f32 %v593, %v710
        %vm712 = vcmp.eq.f32.partialorder %v593, inf
        %v713 = vsel %vm712, %v593, %v711
        %vm714 = vcmp.eq.f32.partialorder %v593, 0.0
        %v715 = vand.u32 %v593, 2147483648
        %v716 = vsel %vm714, %v715, %v713
        %v717 = vrsqrt.pop %v594
        %v718 = vmul.f32 %v594, %v717
        %vm719 = vcmp.eq.f32.partialorder %v594, inf
        %v720 = vsel %vm719, %v594, %v718
        %vm721 = vcmp.eq.f32.partialorder %v594, 0.0
        %v722 = vand.u32 %v594, 2147483648
        %v723 = vsel %vm721, %v722, %v720
        %v724 = vrsqrt.pop %v595
        %v725 = vmul.f32 %v595, %v724
        %vm726 = vcmp.eq.f32.partialorder %v595, inf
        %v727 = vsel %vm726, %v595, %v725
        %vm728 = vcmp.eq.f32.partialorder %v595, 0.0
        %v729 = vand.u32 %v595, 2147483648
        %v730 = vsel %vm728, %v729, %v727
        %v731 = vrsqrt.pop %v596
        %v732 = vmul.f32 %v596, %v731
        %vm733 = vcmp.eq.f32.partialorder %v596, inf
        %v734 = vsel %vm733, %v596, %v732
        %vm735 = vcmp.eq.f32.partialorder %v596, 0.0
        %v736 = vand.u32 %v596, 2147483648
        %v737 = vsel %vm735, %v736, %v734
        %v738 = vrsqrt.pop %v597
        %v739 = vmul.f32 %v597, %v738
        %vm740 = vcmp.eq.f32.partialorder %v597, inf
        %v741 = vsel %vm740, %v597, %v739
        %vm742 = vcmp.eq.f32.partialorder %v597, 0.0
        %v743 = vand.u32 %v597, 2147483648
        %v744 = vsel %vm742, %v743, %v741
        %v745 = vrsqrt.pop %v598
        %v746 = vmul.f32 %v598, %v745
        %vm747 = vcmp.eq.f32.partialorder %v598, inf
        %v748 = vsel %vm747, %v598, %v746
        %vm749 = vcmp.eq.f32.partialorder %v598, 0.0
        %v750 = vand.u32 %v598, 2147483648
        %v751 = vsel %vm749, %v750, %v748
        %v752 = vrsqrt.pop %v599
        %v753 = vmul.f32 %v599, %v752
        %vm754 = vcmp.eq.f32.partialorder %v599, inf
        %v755 = vsel %vm754, %v599, %v753
        %vm756 = vcmp.eq.f32.partialorder %v599, 0.0
        %v757 = vand.u32 %v599, 2147483648
        %v758 = vsel %vm756, %v757, %v755
        %v759 = vrsqrt.pop %v600
        %v760 = vmul.f32 %v600, %v759
        %vm761 = vcmp.eq.f32.partialorder %v600, inf
        %v762 = vsel %vm761, %v600, %v760
        %vm763 = vcmp.eq.f32.partialorder %v600, 0.0
        %v764 = vand.u32 %v600, 2147483648
        %v765 = vsel %vm763, %v764, %v762
        %v766 = vrsqrt.pop %v601
        %v767 = vmul.f32 %v601, %v766
        %vm768 = vcmp.eq.f32.partialorder %v601, inf
        %v769 = vsel %vm768, %v601, %v767
        %vm770 = vcmp.eq.f32.partialorder %v601, 0.0
        %v771 = vand.u32 %v601, 2147483648
        %v772 = vsel %vm770, %v771, %v769
        %v773 = vrsqrt.pop %v602
        %v774 = vmul.f32 %v602, %v773
        %vm775 = vcmp.eq.f32.partialorder %v602, inf
        %v776 = vsel %vm775, %v602, %v774
        %vm777 = vcmp.eq.f32.partialorder %v602, 0.0
        %v778 = vand.u32 %v602, 2147483648
        %v779 = vsel %vm777, %v778, %v776
        %v780 = vrsqrt.pop %v603
        %v781 = vmul.f32 %v603, %v780
        %vm782 = vcmp.eq.f32.partialorder %v603, inf
        %v783 = vsel %vm782, %v603, %v781
        %vm784 = vcmp.eq.f32.partialorder %v603, 0.0
        %v785 = vand.u32 %v603, 2147483648
        %v786 = vsel %vm784, %v785, %v783
        %v787 = vrsqrt.pop %v604
        %v788 = vmul.f32 %v604, %v787
        %vm789 = vcmp.eq.f32.partialorder %v604, inf
        %v790 = vsel %vm789, %v604, %v788
        %vm791 = vcmp.eq.f32.partialorder %v604, 0.0
        %v792 = vand.u32 %v604, 2147483648
        %v793 = vsel %vm791, %v792, %v790
        %v794 = vrsqrt.pop %v605
        %v795 = vmul.f32 %v605, %v794
        %vm796 = vcmp.eq.f32.partialorder %v605, inf
        %v797 = vsel %vm796, %v605, %v795
        %vm798 = vcmp.eq.f32.partialorder %v605, 0.0
        %v799 = vand.u32 %v605, 2147483648
        %v800 = vsel %vm798, %v799, %v797
        %v801 = vrsqrt.pop %v606
        %v802 = vmul.f32 %v606, %v801
        %vm803 = vcmp.eq.f32.partialorder %v606, inf
        %v804 = vsel %vm803, %v606, %v802
        %vm805 = vcmp.eq.f32.partialorder %v606, 0.0
        %v806 = vand.u32 %v606, 2147483648
        %v807 = vsel %vm805, %v806, %v804
        %v808 = vrsqrt.pop %v607
        %v809 = vmul.f32 %v607, %v808
        %vm810 = vcmp.eq.f32.partialorder %v607, inf
        %v811 = vsel %vm810, %v607, %v809
        %vm812 = vcmp.eq.f32.partialorder %v607, 0.0
        %v813 = vand.u32 %v607, 2147483648
        %v814 = vsel %vm812, %v813, %v811
        %v815 = vrsqrt.pop %v608
        %v816 = vmul.f32 %v608, %v815
        %vm817 = vcmp.eq.f32.partialorder %v608, inf
        %v818 = vsel %vm817, %v608, %v816
        %vm819 = vcmp.eq.f32.partialorder %v608, 0.0
        %v820 = vand.u32 %v608, 2147483648
        %v821 = vsel %vm819, %v820, %v818
        %v822 = vrsqrt.pop %v609
        %v823 = vmul.f32 %v609, %v822
        %vm824 = vcmp.eq.f32.partialorder %v609, inf
        %v825 = vsel %vm824, %v609, %v823
        %vm826 = vcmp.eq.f32.partialorder %v609, 0.0
        %v827 = vand.u32 %v609, 2147483648
        %v828 = vsel %vm826, %v827, %v825
        %v829 = vrsqrt.pop %v610
        %v830 = vmul.f32 %v610, %v829
        %vm831 = vcmp.eq.f32.partialorder %v610, inf
        %v832 = vsel %vm831, %v610, %v830
        %vm833 = vcmp.eq.f32.partialorder %v610, 0.0
        %v834 = vand.u32 %v610, 2147483648
        %v835 = vsel %vm833, %v834, %v832
        %v836 = vrsqrt.pop %v611
        %v837 = vmul.f32 %v611, %v836
        %vm838 = vcmp.eq.f32.partialorder %v611, inf
        %v839 = vsel %vm838, %v611, %v837
        %vm840 = vcmp.eq.f32.partialorder %v611, 0.0
        %v841 = vand.u32 %v611, 2147483648
        %v842 = vsel %vm840, %v841, %v839
        %v843 = vrsqrt.pop %v612
        %v844 = vmul.f32 %v612, %v843
        %vm845 = vcmp.eq.f32.partialorder %v612, inf
        %v846 = vsel %vm845, %v612, %v844
        %vm847 = vcmp.eq.f32.partialorder %v612, 0.0
        %v848 = vand.u32 %v612, 2147483648
        %v849 = vsel %vm847, %v848, %v846
        %v850 = vrsqrt.pop %v613
        %v851 = vmul.f32 %v613, %v850
        %vm852 = vcmp.eq.f32.partialorder %v613, inf
        %v853 = vsel %vm852, %v613, %v851
        %vm854 = vcmp.eq.f32.partialorder %v613, 0.0
        %v855 = vand.u32 %v613, 2147483648
        %v856 = vsel %vm854, %v855, %v853
        %v857 = vrsqrt.pop %v614
        %v858 = vmul.f32 %v614, %v857
        %vm859 = vcmp.eq.f32.partialorder %v614, inf
        %v860 = vsel %vm859, %v614, %v858
        %vm861 = vcmp.eq.f32.partialorder %v614, 0.0
        %v862 = vand.u32 %v614, 2147483648
        %v863 = vsel %vm861, %v862, %v860
        %v864 = vrsqrt.pop %v615
        %v865 = vmul.f32 %v615, %v864
        %vm866 = vcmp.eq.f32.partialorder %v615, inf
        %v867 = vsel %vm866, %v615, %v865
        %vm868 = vcmp.eq.f32.partialorder %v615, 0.0
        %v869 = vand.u32 %v615, 2147483648
        %v870 = vsel %vm868, %v869, %v867
        %v871 = vrsqrt.pop %v616
        %v872 = vmul.f32 %v616, %v871
        %vm873 = vcmp.eq.f32.partialorder %v616, inf
        %v874 = vsel %vm873, %v616, %v872
        %vm875 = vcmp.eq.f32.partialorder %v616, 0.0
        %v876 = vand.u32 %v616, 2147483648
        %v877 = vsel %vm875, %v876, %v874
        %v878 = vrsqrt.pop %v617
        %v879 = vmul.f32 %v617, %v878
        %vm880 = vcmp.eq.f32.partialorder %v617, inf
        %v881 = vsel %vm880, %v617, %v879
        %vm882 = vcmp.eq.f32.partialorder %v617, 0.0
        %v883 = vand.u32 %v617, 2147483648
        %v884 = vsel %vm882, %v883, %v881
        %v885 = vrsqrt.pop %v618
        %v886 = vmul.f32 %v618, %v885
        %vm887 = vcmp.eq.f32.partialorder %v618, inf
        %v888 = vsel %vm887, %v618, %v886
        %vm889 = vcmp.eq.f32.partialorder %v618, 0.0
        %v890 = vand.u32 %v618, 2147483648
        %v891 = vsel %vm889, %v890, %v888
        %892 = vst [vmem:[%s171] sm:$0xff] %v625
        %893 = vst [vmem:[%s171 + $0x8] sm:$0xff] %v632
        %894 = vst [vmem:[%s171 + $0x10] sm:$0xff] %v639
        %895 = vst [vmem:[%s171 + $0x18] sm:$0xff] %v646
        %896 = vst [vmem:[%s171 + $0x20] sm:$0xff] %v653
        %897 = vst [vmem:[%s171 + $0x28] sm:$0xff] %v660
        %898 = vst [vmem:[%s171 + $0x30] sm:$0xff] %v667
        %899 = vst [vmem:[%s171 + $0x38] sm:$0xff] %v674
        %900 = vst [vmem:[%s171 + $0x40] sm:$0xff] %v681
        %901 = vst [vmem:[%s171 + $0x48] sm:$0xff] %v688
        %902 = vst [vmem:[%s171 + $0x50] sm:$0xff] %v695
        %903 = vst [vmem:[%s171 + $0x58] sm:$0xff] %v702
        %904 = vst [vmem:[%s171 + $0x60] sm:$0xff] %v709
        %905 = vst [vmem:[%s171 + $0x68] sm:$0xff] %v716
        %906 = vst [vmem:[%s171 + $0x70] sm:$0xff] %v723
        %907 = vst [vmem:[%s171 + $0x78] sm:$0xff] %v730
        %908 = vst [vmem:[%s171 + $0x80] sm:$0xff] %v737
        %909 = vst [vmem:[%s171 + $0x88] sm:$0xff] %v744
        %910 = vst [vmem:[%s171 + $0x90] sm:$0xff] %v751
        %911 = vst [vmem:[%s171 + $0x98] sm:$0xff] %v758
        %912 = vst [vmem:[%s171 + $0xa0] sm:$0xff] %v765
        %913 = vst [vmem:[%s171 + $0xa8] sm:$0xff] %v772
        %914 = vst [vmem:[%s171 + $0xb0] sm:$0xff] %v779
        %915 = vst [vmem:[%s171 + $0xb8] sm:$0xff] %v786
        %916 = vst [vmem:[%s171 + $0xc0] sm:$0xff] %v793
        %917 = vst [vmem:[%s171 + $0xc8] sm:$0xff] %v800
        %918 = vst [vmem:[%s171 + $0xd0] sm:$0xff] %v807
        %919 = vst [vmem:[%s171 + $0xd8] sm:$0xff] %v814
        %920 = vst [vmem:[%s171 + $0xe0] sm:$0xff] %v821
        %921 = vst [vmem:[%s171 + $0xe8] sm:$0xff] %v828
        %922 = vst [vmem:[%s171 + $0xf0] sm:$0xff] %v835
        %923 = vst [vmem:[%s171 + $0xf8] sm:$0xff] %v842
        %924 = vst [vmem:[%s171 + $0x100] sm:$0xff] %v849
        %925 = vst [vmem:[%s171 + $0x108] sm:$0xff] %v856
        %926 = vst [vmem:[%s171 + $0x110] sm:$0xff] %v863
        %927 = vst [vmem:[%s171 + $0x118] sm:$0xff] %v870
        %928 = vst [vmem:[%s171 + $0x120] sm:$0xff] %v877
        %929 = vst [vmem:[%s171 + $0x128] sm:$0xff] %v884
        %930 = vst [vmem:[%s171 + $0x130] sm:$0xff] %v891
        %v931 = vrsqrt.pop %v502
        %v932 = vmul.f32 %v502, %v931
        %vm933 = vcmp.eq.f32.partialorder %v502, inf
        %v934 = vsel %vm933, %v502, %v932
        %vm935 = vcmp.eq.f32.partialorder %v502, 0.0
        %v936 = vand.u32 %v502, 2147483648
        %v937 = vsel %vm935, %v936, %v934
        %v938 = vrsqrt.pop %v503
        %v939 = vmul.f32 %v503, %v938
        %vm940 = vcmp.eq.f32.partialorder %v503, inf
        %v941 = vsel %vm940, %v503, %v939
        %vm942 = vcmp.eq.f32.partialorder %v503, 0.0
        %v943 = vand.u32 %v503, 2147483648
        %v944 = vsel %vm942, %v943, %v941
        %v945 = vrsqrt.pop %v504
        %v946 = vmul.f32 %v504, %v945
        %vm947 = vcmp.eq.f32.partialorder %v504, inf
        %v948 = vsel %vm947, %v504, %v946
        %vm949 = vcmp.eq.f32.partialorder %v504, 0.0
        %v950 = vand.u32 %v504, 2147483648
        %v951 = vsel %vm949, %v950, %v948
        %v952 = vrsqrt.pop %v505
        %v953 = vmul.f32 %v505, %v952
        %vm954 = vcmp.eq.f32.partialorder %v505, inf
        %v955 = vsel %vm954, %v505, %v953
        %vm956 = vcmp.eq.f32.partialorder %v505, 0.0
        %v957 = vand.u32 %v505, 2147483648
        %v958 = vsel %vm956, %v957, %v955
        %v959 = vrsqrt.pop %v506
        %v960 = vmul.f32 %v506, %v959
        %vm961 = vcmp.eq.f32.partialorder %v506, inf
        %v962 = vsel %vm961, %v506, %v960
        %vm963 = vcmp.eq.f32.partialorder %v506, 0.0
        %v964 = vand.u32 %v506, 2147483648
        %v965 = vsel %vm963, %v964, %v962
        %v966 = vrsqrt.pop %v507
        %v967 = vmul.f32 %v507, %v966
        %vm968 = vcmp.eq.f32.partialorder %v507, inf
        %v969 = vsel %vm968, %v507, %v967
        %vm970 = vcmp.eq.f32.partialorder %v507, 0.0
        %v971 = vand.u32 %v507, 2147483648
        %v972 = vsel %vm970, %v971, %v969
        %v973 = vrsqrt.pop %v508
        %v974 = vmul.f32 %v508, %v973
        %vm975 = vcmp.eq.f32.partialorder %v508, inf
        %v976 = vsel %vm975, %v508, %v974
        %vm977 = vcmp.eq.f32.partialorder %v508, 0.0
        %v978 = vand.u32 %v508, 2147483648
        %v979 = vsel %vm977, %v978, %v976
        %v980 = vrsqrt.pop %v509
        %v981 = vmul.f32 %v509, %v980
        %vm982 = vcmp.eq.f32.partialorder %v509, inf
        %v983 = vsel %vm982, %v509, %v981
        %vm984 = vcmp.eq.f32.partialorder %v509, 0.0
        %v985 = vand.u32 %v509, 2147483648
        %v986 = vsel %vm984, %v985, %v983
        %v987 = vrsqrt.pop %v510
        %v988 = vmul.f32 %v510, %v987
        %vm989 = vcmp.eq.f32.partialorder %v510, inf
        %v990 = vsel %vm989, %v510, %v988
        %vm991 = vcmp.eq.f32.partialorder %v510, 0.0
        %v992 = vand.u32 %v510, 2147483648
        %v993 = vsel %vm991, %v992, %v990
        %v994 = vrsqrt.pop %v511
        %v995 = vmul.f32 %v511, %v994
        %vm996 = vcmp.eq.f32.partialorder %v511, inf
        %v997 = vsel %vm996, %v511, %v995
        %vm998 = vcmp.eq.f32.partialorder %v511, 0.0
        %v999 = vand.u32 %v511, 2147483648
        %v1000 = vsel %vm998, %v999, %v997
        %v1001 = vrsqrt.pop %v512
        %v1002 = vmul.f32 %v512, %v1001
        %vm1003 = vcmp.eq.f32.partialorder %v512, inf
        %v1004 = vsel %vm1003, %v512, %v1002
        %vm1005 = vcmp.eq.f32.partialorder %v512, 0.0
        %v1006 = vand.u32 %v512, 2147483648
        %v1007 = vsel %vm1005, %v1006, %v1004
        %v1008 = vrsqrt.pop %v513
        %v1009 = vmul.f32 %v513, %v1008
        %vm1010 = vcmp.eq.f32.partialorder %v513, inf
        %v1011 = vsel %vm1010, %v513, %v1009
        %vm1012 = vcmp.eq.f32.partialorder %v513, 0.0
        %v1013 = vand.u32 %v513, 2147483648
        %v1014 = vsel %vm1012, %v1013, %v1011
        %v1015 = vrsqrt.pop %v514
        %v1016 = vmul.f32 %v514, %v1015
        %vm1017 = vcmp.eq.f32.partialorder %v514, inf
        %v1018 = vsel %vm1017, %v514, %v1016
        %vm1019 = vcmp.eq.f32.partialorder %v514, 0.0
        %v1020 = vand.u32 %v514, 2147483648
        %v1021 = vsel %vm1019, %v1020, %v1018
        %v1022 = vrsqrt.pop %v515
        %v1023 = vmul.f32 %v515, %v1022
        %vm1024 = vcmp.eq.f32.partialorder %v515, inf
        %v1025 = vsel %vm1024, %v515, %v1023
        %vm1026 = vcmp.eq.f32.partialorder %v515, 0.0
        %v1027 = vand.u32 %v515, 2147483648
        %v1028 = vsel %vm1026, %v1027, %v1025
        %v1029 = vrsqrt.pop %v516
        %v1030 = vmul.f32 %v516, %v1029
        %vm1031 = vcmp.eq.f32.partialorder %v516, inf
        %v1032 = vsel %vm1031, %v516, %v1030
        %vm1033 = vcmp.eq.f32.partialorder %v516, 0.0
        %v1034 = vand.u32 %v516, 2147483648
        %v1035 = vsel %vm1033, %v1034, %v1032
        %v1036 = vrsqrt.pop %v517
        %v1037 = vmul.f32 %v517, %v1036
        %vm1038 = vcmp.eq.f32.partialorder %v517, inf
        %v1039 = vsel %vm1038, %v517, %v1037
        %vm1040 = vcmp.eq.f32.partialorder %v517, 0.0
        %v1041 = vand.u32 %v517, 2147483648
        %v1042 = vsel %vm1040, %v1041, %v1039
        %v1043 = vrsqrt.pop %v518
        %v1044 = vmul.f32 %v518, %v1043
        %vm1045 = vcmp.eq.f32.partialorder %v518, inf
        %v1046 = vsel %vm1045, %v518, %v1044
        %vm1047 = vcmp.eq.f32.partialorder %v518, 0.0
        %v1048 = vand.u32 %v518, 2147483648
        %v1049 = vsel %vm1047, %v1048, %v1046
        %v1050 = vrsqrt.pop %v519
        %v1051 = vmul.f32 %v519, %v1050
        %vm1052 = vcmp.eq.f32.partialorder %v519, inf
        %v1053 = vsel %vm1052, %v519, %v1051
        %vm1054 = vcmp.eq.f32.partialorder %v519, 0.0
        %v1055 = vand.u32 %v519, 2147483648
        %v1056 = vsel %vm1054, %v1055, %v1053
        %v1057 = vrsqrt.pop %v520
        %v1058 = vmul.f32 %v520, %v1057
        %vm1059 = vcmp.eq.f32.partialorder %v520, inf
        %v1060 = vsel %vm1059, %v520, %v1058
        %vm1061 = vcmp.eq.f32.partialorder %v520, 0.0
        %v1062 = vand.u32 %v520, 2147483648
        %v1063 = vsel %vm1061, %v1062, %v1060
        %v1064 = vrsqrt.pop %v521
        %v1065 = vmul.f32 %v521, %v1064
        %vm1066 = vcmp.eq.f32.partialorder %v521, inf
        %v1067 = vsel %vm1066, %v521, %v1065
        %vm1068 = vcmp.eq.f32.partialorder %v521, 0.0
        %v1069 = vand.u32 %v521, 2147483648
        %v1070 = vsel %vm1068, %v1069, %v1067
        %v1071 = vrsqrt.pop %v522
        %v1072 = vmul.f32 %v522, %v1071
        %vm1073 = vcmp.eq.f32.partialorder %v522, inf
        %v1074 = vsel %vm1073, %v522, %v1072
        %vm1075 = vcmp.eq.f32.partialorder %v522, 0.0
        %v1076 = vand.u32 %v522, 2147483648
        %v1077 = vsel %vm1075, %v1076, %v1074
        %v1078 = vrsqrt.pop %v523
        %v1079 = vmul.f32 %v523, %v1078
        %vm1080 = vcmp.eq.f32.partialorder %v523, inf
        %v1081 = vsel %vm1080, %v523, %v1079
        %vm1082 = vcmp.eq.f32.partialorder %v523, 0.0
        %v1083 = vand.u32 %v523, 2147483648
        %v1084 = vsel %vm1082, %v1083, %v1081
        %v1085 = vrsqrt.pop %v524
        %v1086 = vmul.f32 %v524, %v1085
        %vm1087 = vcmp.eq.f32.partialorder %v524, inf
        %v1088 = vsel %vm1087, %v524, %v1086
        %vm1089 = vcmp.eq.f32.partialorder %v524, 0.0
        %v1090 = vand.u32 %v524, 2147483648
        %v1091 = vsel %vm1089, %v1090, %v1088
        %v1092 = vrsqrt.pop %v525
        %v1093 = vmul.f32 %v525, %v1092
        %vm1094 = vcmp.eq.f32.partialorder %v525, inf
        %v1095 = vsel %vm1094, %v525, %v1093
        %vm1096 = vcmp.eq.f32.partialorder %v525, 0.0
        %v1097 = vand.u32 %v525, 2147483648
        %v1098 = vsel %vm1096, %v1097, %v1095
        %v1099 = vrsqrt.pop %v526
        %v1100 = vmul.f32 %v526, %v1099
        %vm1101 = vcmp.eq.f32.partialorder %v526, inf
        %v1102 = vsel %vm1101, %v526, %v1100
        %vm1103 = vcmp.eq.f32.partialorder %v526, 0.0
        %v1104 = vand.u32 %v526, 2147483648
        %v1105 = vsel %vm1103, %v1104, %v1102
        %v1106 = vrsqrt.pop %v527
        %v1107 = vmul.f32 %v527, %v1106
        %vm1108 = vcmp.eq.f32.partialorder %v527, inf
        %v1109 = vsel %vm1108, %v527, %v1107
        %vm1110 = vcmp.eq.f32.partialorder %v527, 0.0
        %v1111 = vand.u32 %v527, 2147483648
        %v1112 = vsel %vm1110, %v1111, %v1109
        %v1113 = vrsqrt.pop %v528
        %v1114 = vmul.f32 %v528, %v1113
        %vm1115 = vcmp.eq.f32.partialorder %v528, inf
        %v1116 = vsel %vm1115, %v528, %v1114
        %vm1117 = vcmp.eq.f32.partialorder %v528, 0.0
        %v1118 = vand.u32 %v528, 2147483648
        %v1119 = vsel %vm1117, %v1118, %v1116
        %v1120 = vrsqrt.pop %v529
        %v1121 = vmul.f32 %v529, %v1120
        %vm1122 = vcmp.eq.f32.partialorder %v529, inf
        %v1123 = vsel %vm1122, %v529, %v1121
        %vm1124 = vcmp.eq.f32.partialorder %v529, 0.0
        %v1125 = vand.u32 %v529, 2147483648
        %v1126 = vsel %vm1124, %v1125, %v1123
        %v1127 = vrsqrt.pop %v530
        %v1128 = vmul.f32 %v530, %v1127
        %vm1129 = vcmp.eq.f32.partialorder %v530, inf
        %v1130 = vsel %vm1129, %v530, %v1128
        %vm1131 = vcmp.eq.f32.partialorder %v530, 0.0
        %v1132 = vand.u32 %v530, 2147483648
        %v1133 = vsel %vm1131, %v1132, %v1130
        %v1134 = vrsqrt.pop %v531
        %v1135 = vmul.f32 %v531, %v1134
        %vm1136 = vcmp.eq.f32.partialorder %v531, inf
        %v1137 = vsel %vm1136, %v531, %v1135
        %vm1138 = vcmp.eq.f32.partialorder %v531, 0.0
        %v1139 = vand.u32 %v531, 2147483648
        %v1140 = vsel %vm1138, %v1139, %v1137
        %v1141 = vrsqrt.pop %v532
        %v1142 = vmul.f32 %v532, %v1141
        %vm1143 = vcmp.eq.f32.partialorder %v532, inf
        %v1144 = vsel %vm1143, %v532, %v1142
        %vm1145 = vcmp.eq.f32.partialorder %v532, 0.0
        %v1146 = vand.u32 %v532, 2147483648
        %v1147 = vsel %vm1145, %v1146, %v1144
        %v1148 = vrsqrt.pop %v533
        %v1149 = vmul.f32 %v533, %v1148
        %vm1150 = vcmp.eq.f32.partialorder %v533, inf
        %v1151 = vsel %vm1150, %v533, %v1149
        %vm1152 = vcmp.eq.f32.partialorder %v533, 0.0
        %v1153 = vand.u32 %v533, 2147483648
        %v1154 = vsel %vm1152, %v1153, %v1151
        %v1155 = vrsqrt.pop %v534
        %v1156 = vmul.f32 %v534, %v1155
        %vm1157 = vcmp.eq.f32.partialorder %v534, inf
        %v1158 = vsel %vm1157, %v534, %v1156
        %vm1159 = vcmp.eq.f32.partialorder %v534, 0.0
        %v1160 = vand.u32 %v534, 2147483648
        %v1161 = vsel %vm1159, %v1160, %v1158
        %v1162 = vrsqrt.pop %v535
        %v1163 = vmul.f32 %v535, %v1162
        %vm1164 = vcmp.eq.f32.partialorder %v535, inf
        %v1165 = vsel %vm1164, %v535, %v1163
        %vm1166 = vcmp.eq.f32.partialorder %v535, 0.0
        %v1167 = vand.u32 %v535, 2147483648
        %v1168 = vsel %vm1166, %v1167, %v1165
        %v1169 = vrsqrt.pop %v536
        %v1170 = vmul.f32 %v536, %v1169
        %vm1171 = vcmp.eq.f32.partialorder %v536, inf
        %v1172 = vsel %vm1171, %v536, %v1170
        %vm1173 = vcmp.eq.f32.partialorder %v536, 0.0
        %v1174 = vand.u32 %v536, 2147483648
        %v1175 = vsel %vm1173, %v1174, %v1172
        %v1176 = vrsqrt.pop %v537
        %v1177 = vmul.f32 %v537, %v1176
        %vm1178 = vcmp.eq.f32.partialorder %v537, inf
        %v1179 = vsel %vm1178, %v537, %v1177
        %vm1180 = vcmp.eq.f32.partialorder %v537, 0.0
        %v1181 = vand.u32 %v537, 2147483648
        %v1182 = vsel %vm1180, %v1181, %v1179
        %v1183 = vrsqrt.pop %v538
        %v1184 = vmul.f32 %v538, %v1183
        %vm1185 = vcmp.eq.f32.partialorder %v538, inf
        %v1186 = vsel %vm1185, %v538, %v1184
        %vm1187 = vcmp.eq.f32.partialorder %v538, 0.0
        %v1188 = vand.u32 %v538, 2147483648
        %v1189 = vsel %vm1187, %v1188, %v1186
        %v1190 = vrsqrt.pop %v539
        %v1191 = vmul.f32 %v539, %v1190
        %vm1192 = vcmp.eq.f32.partialorder %v539, inf
        %v1193 = vsel %vm1192, %v539, %v1191
        %vm1194 = vcmp.eq.f32.partialorder %v539, 0.0
        %v1195 = vand.u32 %v539, 2147483648
        %v1196 = vsel %vm1194, %v1195, %v1193
        %v1197 = vrsqrt.pop %v540
        %v1198 = vmul.f32 %v540, %v1197
        %vm1199 = vcmp.eq.f32.partialorder %v540, inf
        %v1200 = vsel %vm1199, %v540, %v1198
        %vm1201 = vcmp.eq.f32.partialorder %v540, 0.0
        %v1202 = vand.u32 %v540, 2147483648
        %v1203 = vsel %vm1201, %v1202, %v1200
        %v1204 = vand.u32 2147483647, %v385
        %v1205 = vand.u32 2147483647, %v937
        %v1206 = vmin.f32 %v1204, %v1205
        %v1207 = vmax.f32 %v1204, %v1205
        %v1208 = vrcp.pop %v1207
        %v1209 = vmul.f32 %v1206, %v1208
        %v1210 = vmul.f32 %v1209, %v1209
        %v1211 = vmul.f32 0.002785687, %v1210
        %v1212 = vadd.f32 %v1211, -0.015866
        %v1213 = vmul.f32 %v1212, %v1210
        %v1214 = vadd.f32 %v1213, 0.04247222
        %v1215 = vmul.f32 %v1214, %v1210
        %v1216 = vadd.f32 %v1215, -0.074975304
        %v1217 = vmul.f32 %v1216, %v1210
        %v1218 = vadd.f32 %v1217, 0.1064488
        %v1219 = vmul.f32 %v1218, %v1210
        %v1220 = vadd.f32 %v1219, -0.14207031
        %v1221 = vmul.f32 %v1220, %v1210
        %v1222 = vadd.f32 %v1221, 0.19993454
        %v1223 = vmul.f32 %v1222, %v1210
        %v1224 = vadd.f32 %v1223, -0.33333147
        %v1225 = vmul.f32 %v1224, %v1210
        %v1226 = vmul.f32 %v1225, %v1209
        %v1227 = vadd.f32 %v1226, %v1209
        %vm1228 = vcmp.gt.f32.partialorder %v1205, %v1204
        %v1229 = vsub.f32 1.5707964, %v1227
        %v1230 = vsel %vm1228, %v1229, %v1227
        %vm1231 = vcmp.lt.f32.partialorder %v385, 0.0
        %v1232 = vsub.f32 3.1415927, %v1230
        %v1233 = vsel %vm1231, %v1232, %v1230
        %vm1234 = vcmp.lt.s32.totalorder %v385, 0
        %v1235 = vsel %vm1234, 3.1415927, 0.0
        %vm1236 = vcmp.eq.f32.partialorder %v937, 0.0
        %v1237 = vsel %vm1236, %v1235, %v1233
        %vm1238 = vcmp.ne.f32.partialorder %v385, %v385
        %vm1239 = vcmp.ne.f32.partialorder %v937, %v937
        %vm1240 = vmor %vm1238, %vm1239
        %v1241 = vsel %vm1240, nan, %v1237
        %vm1242 = vcmp.lt.f32.partialorder %v385, 0.0
        %v1243 = vsel %vm1242, 2.3561945, 0.7853982
        %vm1244 = vcmp.eq.s32.totalorder %v1204, inf
        %vm1245 = vcmp.eq.s32.totalorder %v1205, inf
        %vm1246 = vmand %vm1244, %vm1245
        %v1247 = vsel %vm1246, %v1243, %v1241
        %v1248 = vand.u32 2147483647, %v1247
        %v1249 = vand.u32 %v937, 2147483648
        %v1250 = vor.u32 %v1248, %v1249
        %v1251 = vand.u32 2147483647, %v386
        %v1252 = vand.u32 2147483647, %v944
        %v1253 = vmin.f32 %v1251, %v1252
        %v1254 = vmax.f32 %v1251, %v1252
        %v1255 = vrcp.pop %v1254
        %v1256 = vmul.f32 %v1253, %v1255
        %v1257 = vmul.f32 %v1256, %v1256
        %v1258 = vmul.f32 0.002785687, %v1257
        %v1259 = vadd.f32 %v1258, -0.015866
        %v1260 = vmul.f32 %v1259, %v1257
        %v1261 = vadd.f32 %v1260, 0.04247222
        %v1262 = vmul.f32 %v1261, %v1257
        %v1263 = vadd.f32 %v1262, -0.074975304
        %v1264 = vmul.f32 %v1263, %v1257
        %v1265 = vadd.f32 %v1264, 0.1064488
        %v1266 = vmul.f32 %v1265, %v1257
        %v1267 = vadd.f32 %v1266, -0.14207031
        %v1268 = vmul.f32 %v1267, %v1257
        %v1269 = vadd.f32 %v1268, 0.19993454
        %v1270 = vmul.f32 %v1269, %v1257
        %v1271 = vadd.f32 %v1270, -0.33333147
        %v1272 = vmul.f32 %v1271, %v1257
        %v1273 = vmul.f32 %v1272, %v1256
        %v1274 = vadd.f32 %v1273, %v1256
        %vm1275 = vcmp.gt.f32.partialorder %v1252, %v1251
        %v1276 = vsub.f32 1.5707964, %v1274
        %v1277 = vsel %vm1275, %v1276, %v1274
        %vm1278 = vcmp.lt.f32.partialorder %v386, 0.0
        %v1279 = vsub.f32 3.1415927, %v1277
        %v1280 = vsel %vm1278, %v1279, %v1277
        %vm1281 = vcmp.lt.s32.totalorder %v386, 0
        %v1282 = vsel %vm1281, 3.1415927, 0.0
        %vm1283 = vcmp.eq.f32.partialorder %v944, 0.0
        %v1284 = vsel %vm1283, %v1282, %v1280
        %vm1285 = vcmp.ne.f32.partialorder %v386, %v386
        %vm1286 = vcmp.ne.f32.partialorder %v944, %v944
        %vm1287 = vmor %vm1285, %vm1286
        %v1288 = vsel %vm1287, nan, %v1284
        %vm1289 = vcmp.lt.f32.partialorder %v386, 0.0
        %v1290 = vsel %vm1289, 2.3561945, 0.7853982
        %vm1291 = vcmp.eq.s32.totalorder %v1251, inf
        %vm1292 = vcmp.eq.s32.totalorder %v1252, inf
        %vm1293 = vmand %vm1291, %vm1292
        %v1294 = vsel %vm1293, %v1290, %v1288
        %v1295 = vand.u32 2147483647, %v1294
        %v1296 = vand.u32 %v944, 2147483648
        %v1297 = vor.u32 %v1295, %v1296
        %v1298 = vand.u32 2147483647, %v387
        %v1299 = vand.u32 2147483647, %v951
        %v1300 = vmin.f32 %v1298, %v1299
        %v1301 = vmax.f32 %v1298, %v1299
        %v1302 = vrcp.pop %v1301
        %v1303 = vmul.f32 %v1300, %v1302
        %v1304 = vmul.f32 %v1303, %v1303
        %v1305 = vmul.f32 0.002785687, %v1304
        %v1306 = vadd.f32 %v1305, -0.015866
        %v1307 = vmul.f32 %v1306, %v1304
        %v1308 = vadd.f32 %v1307, 0.04247222
        %v1309 = vmul.f32 %v1308, %v1304
        %v1310 = vadd.f32 %v1309, -0.074975304
        %v1311 = vmul.f32 %v1310, %v1304
        %v1312 = vadd.f32 %v1311, 0.1064488
        %v1313 = vmul.f32 %v1312, %v1304
        %v1314 = vadd.f32 %v1313, -0.14207031
        %v1315 = vmul.f32 %v1314, %v1304
        %v1316 = vadd.f32 %v1315, 0.19993454
        %v1317 = vmul.f32 %v1316, %v1304
        %v1318 = vadd.f32 %v1317, -0.33333147
        %v1319 = vmul.f32 %v1318, %v1304
        %v1320 = vmul.f32 %v1319, %v1303
        %v1321 = vadd.f32 %v1320, %v1303
        %vm1322 = vcmp.gt.f32.partialorder %v1299, %v1298
        %v1323 = vsub.f32 1.5707964, %v1321
        %v1324 = vsel %vm1322, %v1323, %v1321
        %vm1325 = vcmp.lt.f32.partialorder %v387, 0.0
        %v1326 = vsub.f32 3.1415927, %v1324
        %v1327 = vsel %vm1325, %v1326, %v1324
        %vm1328 = vcmp.lt.s32.totalorder %v387, 0
        %v1329 = vsel %vm1328, 3.1415927, 0.0
        %vm1330 = vcmp.eq.f32.partialorder %v951, 0.0
        %v1331 = vsel %vm1330, %v1329, %v1327
        %vm1332 = vcmp.ne.f32.partialorder %v387, %v387
        %vm1333 = vcmp.ne.f32.partialorder %v951, %v951
        %vm1334 = vmor %vm1332, %vm1333
        %v1335 = vsel %vm1334, nan, %v1331
        %vm1336 = vcmp.lt.f32.partialorder %v387, 0.0
        %v1337 = vsel %vm1336, 2.3561945, 0.7853982
        %vm1338 = vcmp.eq.s32.totalorder %v1298, inf
        %vm1339 = vcmp.eq.s32.totalorder %v1299, inf
        %vm1340 = vmand %vm1338, %vm1339
        %v1341 = vsel %vm1340, %v1337, %v1335
        %v1342 = vand.u32 2147483647, %v1341
        %v1343 = vand.u32 %v951, 2147483648
        %v1344 = vor.u32 %v1342, %v1343
        %v1345 = vand.u32 2147483647, %v388
        %v1346 = vand.u32 2147483647, %v958
        %v1347 = vmin.f32 %v1345, %v1346
        %v1348 = vmax.f32 %v1345, %v1346
        %v1349 = vrcp.pop %v1348
        %v1350 = vmul.f32 %v1347, %v1349
        %v1351 = vmul.f32 %v1350, %v1350
        %v1352 = vmul.f32 0.002785687, %v1351
        %v1353 = vadd.f32 %v1352, -0.015866
        %v1354 = vmul.f32 %v1353, %v1351
        %v1355 = vadd.f32 %v1354, 0.04247222
        %v1356 = vmul.f32 %v1355, %v1351
        %v1357 = vadd.f32 %v1356, -0.074975304
        %v1358 = vmul.f32 %v1357, %v1351
        %v1359 = vadd.f32 %v1358, 0.1064488
        %v1360 = vmul.f32 %v1359, %v1351
        %v1361 = vadd.f32 %v1360, -0.14207031
        %v1362 = vmul.f32 %v1361, %v1351
        %v1363 = vadd.f32 %v1362, 0.19993454
        %v1364 = vmul.f32 %v1363, %v1351
        %v1365 = vadd.f32 %v1364, -0.33333147
        %v1366 = vmul.f32 %v1365, %v1351
        %v1367 = vmul.f32 %v1366, %v1350
        %v1368 = vadd.f32 %v1367, %v1350
        %vm1369 = vcmp.gt.f32.partialorder %v1346, %v1345
        %v1370 = vsub.f32 1.5707964, %v1368
        %v1371 = vsel %vm1369, %v1370, %v1368
        %vm1372 = vcmp.lt.f32.partialorder %v388, 0.0
        %v1373 = vsub.f32 3.1415927, %v1371
        %v1374 = vsel %vm1372, %v1373, %v1371
        %vm1375 = vcmp.lt.s32.totalorder %v388, 0
        %v1376 = vsel %vm1375, 3.1415927, 0.0
        %vm1377 = vcmp.eq.f32.partialorder %v958, 0.0
        %v1378 = vsel %vm1377, %v1376, %v1374
        %vm1379 = vcmp.ne.f32.partialorder %v388, %v388
        %vm1380 = vcmp.ne.f32.partialorder %v958, %v958
        %vm1381 = vmor %vm1379, %vm1380
        %v1382 = vsel %vm1381, nan, %v1378
        %vm1383 = vcmp.lt.f32.partialorder %v388, 0.0
        %v1384 = vsel %vm1383, 2.3561945, 0.7853982
        %vm1385 = vcmp.eq.s32.totalorder %v1345, inf
        %vm1386 = vcmp.eq.s32.totalorder %v1346, inf
        %vm1387 = vmand %vm1385, %vm1386
        %v1388 = vsel %vm1387, %v1384, %v1382
        %v1389 = vand.u32 2147483647, %v1388
        %v1390 = vand.u32 %v958, 2147483648
        %v1391 = vor.u32 %v1389, %v1390
        %v1392 = vand.u32 2147483647, %v389
        %v1393 = vand.u32 2147483647, %v965
        %v1394 = vmin.f32 %v1392, %v1393
        %v1395 = vmax.f32 %v1392, %v1393
        %v1396 = vrcp.pop %v1395
        %v1397 = vmul.f32 %v1394, %v1396
        %v1398 = vmul.f32 %v1397, %v1397
        %v1399 = vmul.f32 0.002785687, %v1398
        %v1400 = vadd.f32 %v1399, -0.015866
        %v1401 = vmul.f32 %v1400, %v1398
        %v1402 = vadd.f32 %v1401, 0.04247222
        %v1403 = vmul.f32 %v1402, %v1398
        %v1404 = vadd.f32 %v1403, -0.074975304
        %v1405 = vmul.f32 %v1404, %v1398
        %v1406 = vadd.f32 %v1405, 0.1064488
        %v1407 = vmul.f32 %v1406, %v1398
        %v1408 = vadd.f32 %v1407, -0.14207031
        %v1409 = vmul.f32 %v1408, %v1398
        %v1410 = vadd.f32 %v1409, 0.19993454
        %v1411 = vmul.f32 %v1410, %v1398
        %v1412 = vadd.f32 %v1411, -0.33333147
        %v1413 = vmul.f32 %v1412, %v1398
        %v1414 = vmul.f32 %v1413, %v1397
        %v1415 = vadd.f32 %v1414, %v1397
        %vm1416 = vcmp.gt.f32.partialorder %v1393, %v1392
        %v1417 = vsub.f32 1.5707964, %v1415
        %v1418 = vsel %vm1416, %v1417, %v1415
        %vm1419 = vcmp.lt.f32.partialorder %v389, 0.0
        %v1420 = vsub.f32 3.1415927, %v1418
        %v1421 = vsel %vm1419, %v1420, %v1418
        %vm1422 = vcmp.lt.s32.totalorder %v389, 0
        %v1423 = vsel %vm1422, 3.1415927, 0.0
        %vm1424 = vcmp.eq.f32.partialorder %v965, 0.0
        %v1425 = vsel %vm1424, %v1423, %v1421
        %vm1426 = vcmp.ne.f32.partialorder %v389, %v389
        %vm1427 = vcmp.ne.f32.partialorder %v965, %v965
        %vm1428 = vmor %vm1426, %vm1427
        %v1429 = vsel %vm1428, nan, %v1425
        %vm1430 = vcmp.lt.f32.partialorder %v389, 0.0
        %v1431 = vsel %vm1430, 2.3561945, 0.7853982
        %vm1432 = vcmp.eq.s32.totalorder %v1392, inf
        %vm1433 = vcmp.eq.s32.totalorder %v1393, inf
        %vm1434 = vmand %vm1432, %vm1433
        %v1435 = vsel %vm1434, %v1431, %v1429
        %v1436 = vand.u32 2147483647, %v1435
        %v1437 = vand.u32 %v965, 2147483648
        %v1438 = vor.u32 %v1436, %v1437
        %v1439 = vand.u32 2147483647, %v390
        %v1440 = vand.u32 2147483647, %v972
        %v1441 = vmin.f32 %v1439, %v1440
        %v1442 = vmax.f32 %v1439, %v1440
        %v1443 = vrcp.pop %v1442
        %v1444 = vmul.f32 %v1441, %v1443
        %v1445 = vmul.f32 %v1444, %v1444
        %v1446 = vmul.f32 0.002785687, %v1445
        %v1447 = vadd.f32 %v1446, -0.015866
        %v1448 = vmul.f32 %v1447, %v1445
        %v1449 = vadd.f32 %v1448, 0.04247222
        %v1450 = vmul.f32 %v1449, %v1445
        %v1451 = vadd.f32 %v1450, -0.074975304
        %v1452 = vmul.f32 %v1451, %v1445
        %v1453 = vadd.f32 %v1452, 0.1064488
        %v1454 = vmul.f32 %v1453, %v1445
        %v1455 = vadd.f32 %v1454, -0.14207031
        %v1456 = vmul.f32 %v1455, %v1445
        %v1457 = vadd.f32 %v1456, 0.19993454
        %v1458 = vmul.f32 %v1457, %v1445
        %v1459 = vadd.f32 %v1458, -0.33333147
        %v1460 = vmul.f32 %v1459, %v1445
        %v1461 = vmul.f32 %v1460, %v1444
        %v1462 = vadd.f32 %v1461, %v1444
        %vm1463 = vcmp.gt.f32.partialorder %v1440, %v1439
        %v1464 = vsub.f32 1.5707964, %v1462
        %v1465 = vsel %vm1463, %v1464, %v1462
        %vm1466 = vcmp.lt.f32.partialorder %v390, 0.0
        %v1467 = vsub.f32 3.1415927, %v1465
        %v1468 = vsel %vm1466, %v1467, %v1465
        %vm1469 = vcmp.lt.s32.totalorder %v390, 0
        %v1470 = vsel %vm1469, 3.1415927, 0.0
        %vm1471 = vcmp.eq.f32.partialorder %v972, 0.0
        %v1472 = vsel %vm1471, %v1470, %v1468
        %vm1473 = vcmp.ne.f32.partialorder %v390, %v390
        %vm1474 = vcmp.ne.f32.partialorder %v972, %v972
        %vm1475 = vmor %vm1473, %vm1474
        %v1476 = vsel %vm1475, nan, %v1472
        %vm1477 = vcmp.lt.f32.partialorder %v390, 0.0
        %v1478 = vsel %vm1477, 2.3561945, 0.7853982
        %vm1479 = vcmp.eq.s32.totalorder %v1439, inf
        %vm1480 = vcmp.eq.s32.totalorder %v1440, inf
        %vm1481 = vmand %vm1479, %vm1480
        %v1482 = vsel %vm1481, %v1478, %v1476
        %v1483 = vand.u32 2147483647, %v1482
        %v1484 = vand.u32 %v972, 2147483648
        %v1485 = vor.u32 %v1483, %v1484
        %v1486 = vand.u32 2147483647, %v391
        %v1487 = vand.u32 2147483647, %v979
        %v1488 = vmin.f32 %v1486, %v1487
        %v1489 = vmax.f32 %v1486, %v1487
        %v1490 = vrcp.pop %v1489
        %v1491 = vmul.f32 %v1488, %v1490
        %v1492 = vmul.f32 %v1491, %v1491
        %v1493 = vmul.f32 0.002785687, %v1492
        %v1494 = vadd.f32 %v1493, -0.015866
        %v1495 = vmul.f32 %v1494, %v1492
        %v1496 = vadd.f32 %v1495, 0.04247222
        %v1497 = vmul.f32 %v1496, %v1492
        %v1498 = vadd.f32 %v1497, -0.074975304
        %v1499 = vmul.f32 %v1498, %v1492
        %v1500 = vadd.f32 %v1499, 0.1064488
        %v1501 = vmul.f32 %v1500, %v1492
        %v1502 = vadd.f32 %v1501, -0.14207031
        %v1503 = vmul.f32 %v1502, %v1492
        %v1504 = vadd.f32 %v1503, 0.19993454
        %v1505 = vmul.f32 %v1504, %v1492
        %v1506 = vadd.f32 %v1505, -0.33333147
        %v1507 = vmul.f32 %v1506, %v1492
        %v1508 = vmul.f32 %v1507, %v1491
        %v1509 = vadd.f32 %v1508, %v1491
        %vm1510 = vcmp.gt.f32.partialorder %v1487, %v1486
        %v1511 = vsub.f32 1.5707964, %v1509
        %v1512 = vsel %vm1510, %v1511, %v1509
        %vm1513 = vcmp.lt.f32.partialorder %v391, 0.0
        %v1514 = vsub.f32 3.1415927, %v1512
        %v1515 = vsel %vm1513, %v1514, %v1512
        %vm1516 = vcmp.lt.s32.totalorder %v391, 0
        %v1517 = vsel %vm1516, 3.1415927, 0.0
        %vm1518 = vcmp.eq.f32.partialorder %v979, 0.0
        %v1519 = vsel %vm1518, %v1517, %v1515
        %vm1520 = vcmp.ne.f32.partialorder %v391, %v391
        %vm1521 = vcmp.ne.f32.partialorder %v979, %v979
        %vm1522 = vmor %vm1520, %vm1521
        %v1523 = vsel %vm1522, nan, %v1519
        %vm1524 = vcmp.lt.f32.partialorder %v391, 0.0
        %v1525 = vsel %vm1524, 2.3561945, 0.7853982
        %vm1526 = vcmp.eq.s32.totalorder %v1486, inf
        %vm1527 = vcmp.eq.s32.totalorder %v1487, inf
        %vm1528 = vmand %vm1526, %vm1527
        %v1529 = vsel %vm1528, %v1525, %v1523
        %v1530 = vand.u32 2147483647, %v1529
        %v1531 = vand.u32 %v979, 2147483648
        %v1532 = vor.u32 %v1530, %v1531
        %v1533 = vand.u32 2147483647, %v392
        %v1534 = vand.u32 2147483647, %v986
        %v1535 = vmin.f32 %v1533, %v1534
        %v1536 = vmax.f32 %v1533, %v1534
        %v1537 = vrcp.pop %v1536
        %v1538 = vmul.f32 %v1535, %v1537
        %v1539 = vmul.f32 %v1538, %v1538
        %v1540 = vmul.f32 0.002785687, %v1539
        %v1541 = vadd.f32 %v1540, -0.015866
        %v1542 = vmul.f32 %v1541, %v1539
        %v1543 = vadd.f32 %v1542, 0.04247222
        %v1544 = vmul.f32 %v1543, %v1539
        %v1545 = vadd.f32 %v1544, -0.074975304
        %v1546 = vmul.f32 %v1545, %v1539
        %v1547 = vadd.f32 %v1546, 0.1064488
        %v1548 = vmul.f32 %v1547, %v1539
        %v1549 = vadd.f32 %v1548, -0.14207031
        %v1550 = vmul.f32 %v1549, %v1539
        %v1551 = vadd.f32 %v1550, 0.19993454
        %v1552 = vmul.f32 %v1551, %v1539
        %v1553 = vadd.f32 %v1552, -0.33333147
        %v1554 = vmul.f32 %v1553, %v1539
        %v1555 = vmul.f32 %v1554, %v1538
        %v1556 = vadd.f32 %v1555, %v1538
        %vm1557 = vcmp.gt.f32.partialorder %v1534, %v1533
        %v1558 = vsub.f32 1.5707964, %v1556
        %v1559 = vsel %vm1557, %v1558, %v1556
        %vm1560 = vcmp.lt.f32.partialorder %v392, 0.0
        %v1561 = vsub.f32 3.1415927, %v1559
        %v1562 = vsel %vm1560, %v1561, %v1559
        %vm1563 = vcmp.lt.s32.totalorder %v392, 0
        %v1564 = vsel %vm1563, 3.1415927, 0.0
        %vm1565 = vcmp.eq.f32.partialorder %v986, 0.0
        %v1566 = vsel %vm1565, %v1564, %v1562
        %vm1567 = vcmp.ne.f32.partialorder %v392, %v392
        %vm1568 = vcmp.ne.f32.partialorder %v986, %v986
        %vm1569 = vmor %vm1567, %vm1568
        %v1570 = vsel %vm1569, nan, %v1566
        %vm1571 = vcmp.lt.f32.partialorder %v392, 0.0
        %v1572 = vsel %vm1571, 2.3561945, 0.7853982
        %vm1573 = vcmp.eq.s32.totalorder %v1533, inf
        %vm1574 = vcmp.eq.s32.totalorder %v1534, inf
        %vm1575 = vmand %vm1573, %vm1574
        %v1576 = vsel %vm1575, %v1572, %v1570
        %v1577 = vand.u32 2147483647, %v1576
        %v1578 = vand.u32 %v986, 2147483648
        %v1579 = vor.u32 %v1577, %v1578
        %v1580 = vand.u32 2147483647, %v393
        %v1581 = vand.u32 2147483647, %v993
        %v1582 = vmin.f32 %v1580, %v1581
        %v1583 = vmax.f32 %v1580, %v1581
        %v1584 = vrcp.pop %v1583
        %v1585 = vmul.f32 %v1582, %v1584
        %v1586 = vmul.f32 %v1585, %v1585
        %v1587 = vmul.f32 0.002785687, %v1586
        %v1588 = vadd.f32 %v1587, -0.015866
        %v1589 = vmul.f32 %v1588, %v1586
        %v1590 = vadd.f32 %v1589, 0.04247222
        %v1591 = vmul.f32 %v1590, %v1586
        %v1592 = vadd.f32 %v1591, -0.074975304
        %v1593 = vmul.f32 %v1592, %v1586
        %v1594 = vadd.f32 %v1593, 0.1064488
        %v1595 = vmul.f32 %v1594, %v1586
        %v1596 = vadd.f32 %v1595, -0.14207031
        %v1597 = vmul.f32 %v1596, %v1586
        %v1598 = vadd.f32 %v1597, 0.19993454
        %v1599 = vmul.f32 %v1598, %v1586
        %v1600 = vadd.f32 %v1599, -0.33333147
        %v1601 = vmul.f32 %v1600, %v1586
        %v1602 = vmul.f32 %v1601, %v1585
        %v1603 = vadd.f32 %v1602, %v1585
        %vm1604 = vcmp.gt.f32.partialorder %v1581, %v1580
        %v1605 = vsub.f32 1.5707964, %v1603
        %v1606 = vsel %vm1604, %v1605, %v1603
        %vm1607 = vcmp.lt.f32.partialorder %v393, 0.0
        %v1608 = vsub.f32 3.1415927, %v1606
        %v1609 = vsel %vm1607, %v1608, %v1606
        %vm1610 = vcmp.lt.s32.totalorder %v393, 0
        %v1611 = vsel %vm1610, 3.1415927, 0.0
        %vm1612 = vcmp.eq.f32.partialorder %v993, 0.0
        %v1613 = vsel %vm1612, %v1611, %v1609
        %vm1614 = vcmp.ne.f32.partialorder %v393, %v393
        %vm1615 = vcmp.ne.f32.partialorder %v993, %v993
        %vm1616 = vmor %vm1614, %vm1615
        %v1617 = vsel %vm1616, nan, %v1613
        %vm1618 = vcmp.lt.f32.partialorder %v393, 0.0
        %v1619 = vsel %vm1618, 2.3561945, 0.7853982
        %vm1620 = vcmp.eq.s32.totalorder %v1580, inf
        %vm1621 = vcmp.eq.s32.totalorder %v1581, inf
        %vm1622 = vmand %vm1620, %vm1621
        %v1623 = vsel %vm1622, %v1619, %v1617
        %v1624 = vand.u32 2147483647, %v1623
        %v1625 = vand.u32 %v993, 2147483648
        %v1626 = vor.u32 %v1624, %v1625
        %v1627 = vand.u32 2147483647, %v394
        %v1628 = vand.u32 2147483647, %v1000
        %v1629 = vmin.f32 %v1627, %v1628
        %v1630 = vmax.f32 %v1627, %v1628
        %v1631 = vrcp.pop %v1630
        %v1632 = vmul.f32 %v1629, %v1631
        %v1633 = vmul.f32 %v1632, %v1632
        %v1634 = vmul.f32 0.002785687, %v1633
        %v1635 = vadd.f32 %v1634, -0.015866
        %v1636 = vmul.f32 %v1635, %v1633
        %v1637 = vadd.f32 %v1636, 0.04247222
        %v1638 = vmul.f32 %v1637, %v1633
        %v1639 = vadd.f32 %v1638, -0.074975304
        %v1640 = vmul.f32 %v1639, %v1633
        %v1641 = vadd.f32 %v1640, 0.1064488
        %v1642 = vmul.f32 %v1641, %v1633
        %v1643 = vadd.f32 %v1642, -0.14207031
        %v1644 = vmul.f32 %v1643, %v1633
        %v1645 = vadd.f32 %v1644, 0.19993454
        %v1646 = vmul.f32 %v1645, %v1633
        %v1647 = vadd.f32 %v1646, -0.33333147
        %v1648 = vmul.f32 %v1647, %v1633
        %v1649 = vmul.f32 %v1648, %v1632
        %v1650 = vadd.f32 %v1649, %v1632
        %vm1651 = vcmp.gt.f32.partialorder %v1628, %v1627
        %v1652 = vsub.f32 1.5707964, %v1650
        %v1653 = vsel %vm1651, %v1652, %v1650
        %vm1654 = vcmp.lt.f32.partialorder %v394, 0.0
        %v1655 = vsub.f32 3.1415927, %v1653
        %v1656 = vsel %vm1654, %v1655, %v1653
        %vm1657 = vcmp.lt.s32.totalorder %v394, 0
        %v1658 = vsel %vm1657, 3.1415927, 0.0
        %vm1659 = vcmp.eq.f32.partialorder %v1000, 0.0
        %v1660 = vsel %vm1659, %v1658, %v1656
        %vm1661 = vcmp.ne.f32.partialorder %v394, %v394
        %vm1662 = vcmp.ne.f32.partialorder %v1000, %v1000
        %vm1663 = vmor %vm1661, %vm1662
        %v1664 = vsel %vm1663, nan, %v1660
        %vm1665 = vcmp.lt.f32.partialorder %v394, 0.0
        %v1666 = vsel %vm1665, 2.3561945, 0.7853982
        %vm1667 = vcmp.eq.s32.totalorder %v1627, inf
        %vm1668 = vcmp.eq.s32.totalorder %v1628, inf
        %vm1669 = vmand %vm1667, %vm1668
        %v1670 = vsel %vm1669, %v1666, %v1664
        %v1671 = vand.u32 2147483647, %v1670
        %v1672 = vand.u32 %v1000, 2147483648
        %v1673 = vor.u32 %v1671, %v1672
        %v1674 = vand.u32 2147483647, %v395
        %v1675 = vand.u32 2147483647, %v1007
        %v1676 = vmin.f32 %v1674, %v1675
        %v1677 = vmax.f32 %v1674, %v1675
        %v1678 = vrcp.pop %v1677
        %v1679 = vmul.f32 %v1676, %v1678
        %v1680 = vmul.f32 %v1679, %v1679
        %v1681 = vmul.f32 0.002785687, %v1680
        %v1682 = vadd.f32 %v1681, -0.015866
        %v1683 = vmul.f32 %v1682, %v1680
        %v1684 = vadd.f32 %v1683, 0.04247222
        %v1685 = vmul.f32 %v1684, %v1680
        %v1686 = vadd.f32 %v1685, -0.074975304
        %v1687 = vmul.f32 %v1686, %v1680
        %v1688 = vadd.f32 %v1687, 0.1064488
        %v1689 = vmul.f32 %v1688, %v1680
        %v1690 = vadd.f32 %v1689, -0.14207031
        %v1691 = vmul.f32 %v1690, %v1680
        %v1692 = vadd.f32 %v1691, 0.19993454
        %v1693 = vmul.f32 %v1692, %v1680
        %v1694 = vadd.f32 %v1693, -0.33333147
        %v1695 = vmul.f32 %v1694, %v1680
        %v1696 = vmul.f32 %v1695, %v1679
        %v1697 = vadd.f32 %v1696, %v1679
        %vm1698 = vcmp.gt.f32.partialorder %v1675, %v1674
        %v1699 = vsub.f32 1.5707964, %v1697
        %v1700 = vsel %vm1698, %v1699, %v1697
        %vm1701 = vcmp.lt.f32.partialorder %v395, 0.0
        %v1702 = vsub.f32 3.1415927, %v1700
        %v1703 = vsel %vm1701, %v1702, %v1700
        %vm1704 = vcmp.lt.s32.totalorder %v395, 0
        %v1705 = vsel %vm1704, 3.1415927, 0.0
        %vm1706 = vcmp.eq.f32.partialorder %v1007, 0.0
        %v1707 = vsel %vm1706, %v1705, %v1703
        %vm1708 = vcmp.ne.f32.partialorder %v395, %v395
        %vm1709 = vcmp.ne.f32.partialorder %v1007, %v1007
        %vm1710 = vmor %vm1708, %vm1709
        %v1711 = vsel %vm1710, nan, %v1707
        %vm1712 = vcmp.lt.f32.partialorder %v395, 0.0
        %v1713 = vsel %vm1712, 2.3561945, 0.7853982
        %vm1714 = vcmp.eq.s32.totalorder %v1674, inf
        %vm1715 = vcmp.eq.s32.totalorder %v1675, inf
        %vm1716 = vmand %vm1714, %vm1715
        %v1717 = vsel %vm1716, %v1713, %v1711
        %v1718 = vand.u32 2147483647, %v1717
        %v1719 = vand.u32 %v1007, 2147483648
        %v1720 = vor.u32 %v1718, %v1719
        %v1721 = vand.u32 2147483647, %v396
        %v1722 = vand.u32 2147483647, %v1014
        %v1723 = vmin.f32 %v1721, %v1722
        %v1724 = vmax.f32 %v1721, %v1722
        %v1725 = vrcp.pop %v1724
        %v1726 = vmul.f32 %v1723, %v1725
        %v1727 = vmul.f32 %v1726, %v1726
        %v1728 = vmul.f32 0.002785687, %v1727
        %v1729 = vadd.f32 %v1728, -0.015866
        %v1730 = vmul.f32 %v1729, %v1727
        %v1731 = vadd.f32 %v1730, 0.04247222
        %v1732 = vmul.f32 %v1731, %v1727
        %v1733 = vadd.f32 %v1732, -0.074975304
        %v1734 = vmul.f32 %v1733, %v1727
        %v1735 = vadd.f32 %v1734, 0.1064488
        %v1736 = vmul.f32 %v1735, %v1727
        %v1737 = vadd.f32 %v1736, -0.14207031
        %v1738 = vmul.f32 %v1737, %v1727
        %v1739 = vadd.f32 %v1738, 0.19993454
        %v1740 = vmul.f32 %v1739, %v1727
        %v1741 = vadd.f32 %v1740, -0.33333147
        %v1742 = vmul.f32 %v1741, %v1727
        %v1743 = vmul.f32 %v1742, %v1726
        %v1744 = vadd.f32 %v1743, %v1726
        %vm1745 = vcmp.gt.f32.partialorder %v1722, %v1721
        %v1746 = vsub.f32 1.5707964, %v1744
        %v1747 = vsel %vm1745, %v1746, %v1744
        %vm1748 = vcmp.lt.f32.partialorder %v396, 0.0
        %v1749 = vsub.f32 3.1415927, %v1747
        %v1750 = vsel %vm1748, %v1749, %v1747
        %vm1751 = vcmp.lt.s32.totalorder %v396, 0
        %v1752 = vsel %vm1751, 3.1415927, 0.0
        %vm1753 = vcmp.eq.f32.partialorder %v1014, 0.0
        %v1754 = vsel %vm1753, %v1752, %v1750
        %vm1755 = vcmp.ne.f32.partialorder %v396, %v396
        %vm1756 = vcmp.ne.f32.partialorder %v1014, %v1014
        %vm1757 = vmor %vm1755, %vm1756
        %v1758 = vsel %vm1757, nan, %v1754
        %vm1759 = vcmp.lt.f32.partialorder %v396, 0.0
        %v1760 = vsel %vm1759, 2.3561945, 0.7853982
        %vm1761 = vcmp.eq.s32.totalorder %v1721, inf
        %vm1762 = vcmp.eq.s32.totalorder %v1722, inf
        %vm1763 = vmand %vm1761, %vm1762
        %v1764 = vsel %vm1763, %v1760, %v1758
        %v1765 = vand.u32 2147483647, %v1764
        %v1766 = vand.u32 %v1014, 2147483648
        %v1767 = vor.u32 %v1765, %v1766
        %v1768 = vand.u32 2147483647, %v397
        %v1769 = vand.u32 2147483647, %v1021
        %v1770 = vmin.f32 %v1768, %v1769
        %v1771 = vmax.f32 %v1768, %v1769
        %v1772 = vrcp.pop %v1771
        %v1773 = vmul.f32 %v1770, %v1772
        %v1774 = vmul.f32 %v1773, %v1773
        %v1775 = vmul.f32 0.002785687, %v1774
        %v1776 = vadd.f32 %v1775, -0.015866
        %v1777 = vmul.f32 %v1776, %v1774
        %v1778 = vadd.f32 %v1777, 0.04247222
        %v1779 = vmul.f32 %v1778, %v1774
        %v1780 = vadd.f32 %v1779, -0.074975304
        %v1781 = vmul.f32 %v1780, %v1774
        %v1782 = vadd.f32 %v1781, 0.1064488
        %v1783 = vmul.f32 %v1782, %v1774
        %v1784 = vadd.f32 %v1783, -0.14207031
        %v1785 = vmul.f32 %v1784, %v1774
        %v1786 = vadd.f32 %v1785, 0.19993454
        %v1787 = vmul.f32 %v1786, %v1774
        %v1788 = vadd.f32 %v1787, -0.33333147
        %v1789 = vmul.f32 %v1788, %v1774
        %v1790 = vmul.f32 %v1789, %v1773
        %v1791 = vadd.f32 %v1790, %v1773
        %vm1792 = vcmp.gt.f32.partialorder %v1769, %v1768
        %v1793 = vsub.f32 1.5707964, %v1791
        %v1794 = vsel %vm1792, %v1793, %v1791
        %vm1795 = vcmp.lt.f32.partialorder %v397, 0.0
        %v1796 = vsub.f32 3.1415927, %v1794
        %v1797 = vsel %vm1795, %v1796, %v1794
        %vm1798 = vcmp.lt.s32.totalorder %v397, 0
        %v1799 = vsel %vm1798, 3.1415927, 0.0
        %vm1800 = vcmp.eq.f32.partialorder %v1021, 0.0
        %v1801 = vsel %vm1800, %v1799, %v1797
        %vm1802 = vcmp.ne.f32.partialorder %v397, %v397
        %vm1803 = vcmp.ne.f32.partialorder %v1021, %v1021
        %vm1804 = vmor %vm1802, %vm1803
        %v1805 = vsel %vm1804, nan, %v1801
        %vm1806 = vcmp.lt.f32.partialorder %v397, 0.0
        %v1807 = vsel %vm1806, 2.3561945, 0.7853982
        %vm1808 = vcmp.eq.s32.totalorder %v1768, inf
        %vm1809 = vcmp.eq.s32.totalorder %v1769, inf
        %vm1810 = vmand %vm1808, %vm1809
        %v1811 = vsel %vm1810, %v1807, %v1805
        %v1812 = vand.u32 2147483647, %v1811
        %v1813 = vand.u32 %v1021, 2147483648
        %v1814 = vor.u32 %v1812, %v1813
        %v1815 = vand.u32 2147483647, %v398
        %v1816 = vand.u32 2147483647, %v1028
        %v1817 = vmin.f32 %v1815, %v1816
        %v1818 = vmax.f32 %v1815, %v1816
        %v1819 = vrcp.pop %v1818
        %v1820 = vmul.f32 %v1817, %v1819
        %v1821 = vmul.f32 %v1820, %v1820
        %v1822 = vmul.f32 0.002785687, %v1821
        %v1823 = vadd.f32 %v1822, -0.015866
        %v1824 = vmul.f32 %v1823, %v1821
        %v1825 = vadd.f32 %v1824, 0.04247222
        %v1826 = vmul.f32 %v1825, %v1821
        %v1827 = vadd.f32 %v1826, -0.074975304
        %v1828 = vmul.f32 %v1827, %v1821
        %v1829 = vadd.f32 %v1828, 0.1064488
        %v1830 = vmul.f32 %v1829, %v1821
        %v1831 = vadd.f32 %v1830, -0.14207031
        %v1832 = vmul.f32 %v1831, %v1821
        %v1833 = vadd.f32 %v1832, 0.19993454
        %v1834 = vmul.f32 %v1833, %v1821
        %v1835 = vadd.f32 %v1834, -0.33333147
        %v1836 = vmul.f32 %v1835, %v1821
        %v1837 = vmul.f32 %v1836, %v1820
        %v1838 = vadd.f32 %v1837, %v1820
        %vm1839 = vcmp.gt.f32.partialorder %v1816, %v1815
        %v1840 = vsub.f32 1.5707964, %v1838
        %v1841 = vsel %vm1839, %v1840, %v1838
        %vm1842 = vcmp.lt.f32.partialorder %v398, 0.0
        %v1843 = vsub.f32 3.1415927, %v1841
        %v1844 = vsel %vm1842, %v1843, %v1841
        %vm1845 = vcmp.lt.s32.totalorder %v398, 0
        %v1846 = vsel %vm1845, 3.1415927, 0.0
        %vm1847 = vcmp.eq.f32.partialorder %v1028, 0.0
        %v1848 = vsel %vm1847, %v1846, %v1844
        %vm1849 = vcmp.ne.f32.partialorder %v398, %v398
        %vm1850 = vcmp.ne.f32.partialorder %v1028, %v1028
        %vm1851 = vmor %vm1849, %vm1850
        %v1852 = vsel %vm1851, nan, %v1848
        %vm1853 = vcmp.lt.f32.partialorder %v398, 0.0
        %v1854 = vsel %vm1853, 2.3561945, 0.7853982
        %vm1855 = vcmp.eq.s32.totalorder %v1815, inf
        %vm1856 = vcmp.eq.s32.totalorder %v1816, inf
        %vm1857 = vmand %vm1855, %vm1856
        %v1858 = vsel %vm1857, %v1854, %v1852
        %v1859 = vand.u32 2147483647, %v1858
        %v1860 = vand.u32 %v1028, 2147483648
        %v1861 = vor.u32 %v1859, %v1860
        %v1862 = vand.u32 2147483647, %v399
        %v1863 = vand.u32 2147483647, %v1035
        %v1864 = vmin.f32 %v1862, %v1863
        %v1865 = vmax.f32 %v1862, %v1863
        %v1866 = vrcp.pop %v1865
        %v1867 = vmul.f32 %v1864, %v1866
        %v1868 = vmul.f32 %v1867, %v1867
        %v1869 = vmul.f32 0.002785687, %v1868
        %v1870 = vadd.f32 %v1869, -0.015866
        %v1871 = vmul.f32 %v1870, %v1868
        %v1872 = vadd.f32 %v1871, 0.04247222
        %v1873 = vmul.f32 %v1872, %v1868
        %v1874 = vadd.f32 %v1873, -0.074975304
        %v1875 = vmul.f32 %v1874, %v1868
        %v1876 = vadd.f32 %v1875, 0.1064488
        %v1877 = vmul.f32 %v1876, %v1868
        %v1878 = vadd.f32 %v1877, -0.14207031
        %v1879 = vmul.f32 %v1878, %v1868
        %v1880 = vadd.f32 %v1879, 0.19993454
        %v1881 = vmul.f32 %v1880, %v1868
        %v1882 = vadd.f32 %v1881, -0.33333147
        %v1883 = vmul.f32 %v1882, %v1868
        %v1884 = vmul.f32 %v1883, %v1867
        %v1885 = vadd.f32 %v1884, %v1867
        %vm1886 = vcmp.gt.f32.partialorder %v1863, %v1862
        %v1887 = vsub.f32 1.5707964, %v1885
        %v1888 = vsel %vm1886, %v1887, %v1885
        %vm1889 = vcmp.lt.f32.partialorder %v399, 0.0
        %v1890 = vsub.f32 3.1415927, %v1888
        %v1891 = vsel %vm1889, %v1890, %v1888
        %vm1892 = vcmp.lt.s32.totalorder %v399, 0
        %v1893 = vsel %vm1892, 3.1415927, 0.0
        %vm1894 = vcmp.eq.f32.partialorder %v1035, 0.0
        %v1895 = vsel %vm1894, %v1893, %v1891
        %vm1896 = vcmp.ne.f32.partialorder %v399, %v399
        %vm1897 = vcmp.ne.f32.partialorder %v1035, %v1035
        %vm1898 = vmor %vm1896, %vm1897
        %v1899 = vsel %vm1898, nan, %v1895
        %vm1900 = vcmp.lt.f32.partialorder %v399, 0.0
        %v1901 = vsel %vm1900, 2.3561945, 0.7853982
        %vm1902 = vcmp.eq.s32.totalorder %v1862, inf
        %vm1903 = vcmp.eq.s32.totalorder %v1863, inf
        %vm1904 = vmand %vm1902, %vm1903
        %v1905 = vsel %vm1904, %v1901, %v1899
        %v1906 = vand.u32 2147483647, %v1905
        %v1907 = vand.u32 %v1035, 2147483648
        %v1908 = vor.u32 %v1906, %v1907
        %v1909 = vand.u32 2147483647, %v400
        %v1910 = vand.u32 2147483647, %v1042
        %v1911 = vmin.f32 %v1909, %v1910
        %v1912 = vmax.f32 %v1909, %v1910
        %v1913 = vrcp.pop %v1912
        %v1914 = vmul.f32 %v1911, %v1913
        %v1915 = vmul.f32 %v1914, %v1914
        %v1916 = vmul.f32 0.002785687, %v1915
        %v1917 = vadd.f32 %v1916, -0.015866
        %v1918 = vmul.f32 %v1917, %v1915
        %v1919 = vadd.f32 %v1918, 0.04247222
        %v1920 = vmul.f32 %v1919, %v1915
        %v1921 = vadd.f32 %v1920, -0.074975304
        %v1922 = vmul.f32 %v1921, %v1915
        %v1923 = vadd.f32 %v1922, 0.1064488
        %v1924 = vmul.f32 %v1923, %v1915
        %v1925 = vadd.f32 %v1924, -0.14207031
        %v1926 = vmul.f32 %v1925, %v1915
        %v1927 = vadd.f32 %v1926, 0.19993454
        %v1928 = vmul.f32 %v1927, %v1915
        %v1929 = vadd.f32 %v1928, -0.33333147
        %v1930 = vmul.f32 %v1929, %v1915
        %v1931 = vmul.f32 %v1930, %v1914
        %v1932 = vadd.f32 %v1931, %v1914
        %vm1933 = vcmp.gt.f32.partialorder %v1910, %v1909
        %v1934 = vsub.f32 1.5707964, %v1932
        %v1935 = vsel %vm1933, %v1934, %v1932
        %vm1936 = vcmp.lt.f32.partialorder %v400, 0.0
        %v1937 = vsub.f32 3.1415927, %v1935
        %v1938 = vsel %vm1936, %v1937, %v1935
        %vm1939 = vcmp.lt.s32.totalorder %v400, 0
        %v1940 = vsel %vm1939, 3.1415927, 0.0
        %vm1941 = vcmp.eq.f32.partialorder %v1042, 0.0
        %v1942 = vsel %vm1941, %v1940, %v1938
        %vm1943 = vcmp.ne.f32.partialorder %v400, %v400
        %vm1944 = vcmp.ne.f32.partialorder %v1042, %v1042
        %vm1945 = vmor %vm1943, %vm1944
        %v1946 = vsel %vm1945, nan, %v1942
        %vm1947 = vcmp.lt.f32.partialorder %v400, 0.0
        %v1948 = vsel %vm1947, 2.3561945, 0.7853982
        %vm1949 = vcmp.eq.s32.totalorder %v1909, inf
        %vm1950 = vcmp.eq.s32.totalorder %v1910, inf
        %vm1951 = vmand %vm1949, %vm1950
        %v1952 = vsel %vm1951, %v1948, %v1946
        %v1953 = vand.u32 2147483647, %v1952
        %v1954 = vand.u32 %v1042, 2147483648
        %v1955 = vor.u32 %v1953, %v1954
        %v1956 = vand.u32 2147483647, %v401
        %v1957 = vand.u32 2147483647, %v1049
        %v1958 = vmin.f32 %v1956, %v1957
        %v1959 = vmax.f32 %v1956, %v1957
        %v1960 = vrcp.pop %v1959
        %v1961 = vmul.f32 %v1958, %v1960
        %v1962 = vmul.f32 %v1961, %v1961
        %v1963 = vmul.f32 0.002785687, %v1962
        %v1964 = vadd.f32 %v1963, -0.015866
        %v1965 = vmul.f32 %v1964, %v1962
        %v1966 = vadd.f32 %v1965, 0.04247222
        %v1967 = vmul.f32 %v1966, %v1962
        %v1968 = vadd.f32 %v1967, -0.074975304
        %v1969 = vmul.f32 %v1968, %v1962
        %v1970 = vadd.f32 %v1969, 0.1064488
        %v1971 = vmul.f32 %v1970, %v1962
        %v1972 = vadd.f32 %v1971, -0.14207031
        %v1973 = vmul.f32 %v1972, %v1962
        %v1974 = vadd.f32 %v1973, 0.19993454
        %v1975 = vmul.f32 %v1974, %v1962
        %v1976 = vadd.f32 %v1975, -0.33333147
        %v1977 = vmul.f32 %v1976, %v1962
        %v1978 = vmul.f32 %v1977, %v1961
        %v1979 = vadd.f32 %v1978, %v1961
        %vm1980 = vcmp.gt.f32.partialorder %v1957, %v1956
        %v1981 = vsub.f32 1.5707964, %v1979
        %v1982 = vsel %vm1980, %v1981, %v1979
        %vm1983 = vcmp.lt.f32.partialorder %v401, 0.0
        %v1984 = vsub.f32 3.1415927, %v1982
        %v1985 = vsel %vm1983, %v1984, %v1982
        %vm1986 = vcmp.lt.s32.totalorder %v401, 0
        %v1987 = vsel %vm1986, 3.1415927, 0.0
        %vm1988 = vcmp.eq.f32.partialorder %v1049, 0.0
        %v1989 = vsel %vm1988, %v1987, %v1985
        %vm1990 = vcmp.ne.f32.partialorder %v401, %v401
        %vm1991 = vcmp.ne.f32.partialorder %v1049, %v1049
        %vm1992 = vmor %vm1990, %vm1991
        %v1993 = vsel %vm1992, nan, %v1989
        %vm1994 = vcmp.lt.f32.partialorder %v401, 0.0
        %v1995 = vsel %vm1994, 2.3561945, 0.7853982
        %vm1996 = vcmp.eq.s32.totalorder %v1956, inf
        %vm1997 = vcmp.eq.s32.totalorder %v1957, inf
        %vm1998 = vmand %vm1996, %vm1997
        %v1999 = vsel %vm1998, %v1995, %v1993
        %v2000 = vand.u32 2147483647, %v1999
        %v2001 = vand.u32 %v1049, 2147483648
        %v2002 = vor.u32 %v2000, %v2001
        %v2003 = vand.u32 2147483647, %v402
        %v2004 = vand.u32 2147483647, %v1056
        %v2005 = vmin.f32 %v2003, %v2004
        %v2006 = vmax.f32 %v2003, %v2004
        %v2007 = vrcp.pop %v2006
        %v2008 = vmul.f32 %v2005, %v2007
        %v2009 = vmul.f32 %v2008, %v2008
        %v2010 = vmul.f32 0.002785687, %v2009
        %v2011 = vadd.f32 %v2010, -0.015866
        %v2012 = vmul.f32 %v2011, %v2009
        %v2013 = vadd.f32 %v2012, 0.04247222
        %v2014 = vmul.f32 %v2013, %v2009
        %v2015 = vadd.f32 %v2014, -0.074975304
        %v2016 = vmul.f32 %v2015, %v2009
        %v2017 = vadd.f32 %v2016, 0.1064488
        %v2018 = vmul.f32 %v2017, %v2009
        %v2019 = vadd.f32 %v2018, -0.14207031
        %v2020 = vmul.f32 %v2019, %v2009
        %v2021 = vadd.f32 %v2020, 0.19993454
        %v2022 = vmul.f32 %v2021, %v2009
        %v2023 = vadd.f32 %v2022, -0.33333147
        %v2024 = vmul.f32 %v2023, %v2009
        %v2025 = vmul.f32 %v2024, %v2008
        %v2026 = vadd.f32 %v2025, %v2008
        %vm2027 = vcmp.gt.f32.partialorder %v2004, %v2003
        %v2028 = vsub.f32 1.5707964, %v2026
        %v2029 = vsel %vm2027, %v2028, %v2026
        %vm2030 = vcmp.lt.f32.partialorder %v402, 0.0
        %v2031 = vsub.f32 3.1415927, %v2029
        %v2032 = vsel %vm2030, %v2031, %v2029
        %vm2033 = vcmp.lt.s32.totalorder %v402, 0
        %v2034 = vsel %vm2033, 3.1415927, 0.0
        %vm2035 = vcmp.eq.f32.partialorder %v1056, 0.0
        %v2036 = vsel %vm2035, %v2034, %v2032
        %vm2037 = vcmp.ne.f32.partialorder %v402, %v402
        %vm2038 = vcmp.ne.f32.partialorder %v1056, %v1056
        %vm2039 = vmor %vm2037, %vm2038
        %v2040 = vsel %vm2039, nan, %v2036
        %vm2041 = vcmp.lt.f32.partialorder %v402, 0.0
        %v2042 = vsel %vm2041, 2.3561945, 0.7853982
        %vm2043 = vcmp.eq.s32.totalorder %v2003, inf
        %vm2044 = vcmp.eq.s32.totalorder %v2004, inf
        %vm2045 = vmand %vm2043, %vm2044
        %v2046 = vsel %vm2045, %v2042, %v2040
        %v2047 = vand.u32 2147483647, %v2046
        %v2048 = vand.u32 %v1056, 2147483648
        %v2049 = vor.u32 %v2047, %v2048
        %v2050 = vand.u32 2147483647, %v403
        %v2051 = vand.u32 2147483647, %v1063
        %v2052 = vmin.f32 %v2050, %v2051
        %v2053 = vmax.f32 %v2050, %v2051
        %v2054 = vrcp.pop %v2053
        %v2055 = vmul.f32 %v2052, %v2054
        %v2056 = vmul.f32 %v2055, %v2055
        %v2057 = vmul.f32 0.002785687, %v2056
        %v2058 = vadd.f32 %v2057, -0.015866
        %v2059 = vmul.f32 %v2058, %v2056
        %v2060 = vadd.f32 %v2059, 0.04247222
        %v2061 = vmul.f32 %v2060, %v2056
        %v2062 = vadd.f32 %v2061, -0.074975304
        %v2063 = vmul.f32 %v2062, %v2056
        %v2064 = vadd.f32 %v2063, 0.1064488
        %v2065 = vmul.f32 %v2064, %v2056
        %v2066 = vadd.f32 %v2065, -0.14207031
        %v2067 = vmul.f32 %v2066, %v2056
        %v2068 = vadd.f32 %v2067, 0.19993454
        %v2069 = vmul.f32 %v2068, %v2056
        %v2070 = vadd.f32 %v2069, -0.33333147
        %v2071 = vmul.f32 %v2070, %v2056
        %v2072 = vmul.f32 %v2071, %v2055
        %v2073 = vadd.f32 %v2072, %v2055
        %vm2074 = vcmp.gt.f32.partialorder %v2051, %v2050
        %v2075 = vsub.f32 1.5707964, %v2073
        %v2076 = vsel %vm2074, %v2075, %v2073
        %vm2077 = vcmp.lt.f32.partialorder %v403, 0.0
        %v2078 = vsub.f32 3.1415927, %v2076
        %v2079 = vsel %vm2077, %v2078, %v2076
        %vm2080 = vcmp.lt.s32.totalorder %v403, 0
        %v2081 = vsel %vm2080, 3.1415927, 0.0
        %vm2082 = vcmp.eq.f32.partialorder %v1063, 0.0
        %v2083 = vsel %vm2082, %v2081, %v2079
        %vm2084 = vcmp.ne.f32.partialorder %v403, %v403
        %vm2085 = vcmp.ne.f32.partialorder %v1063, %v1063
        %vm2086 = vmor %vm2084, %vm2085
        %v2087 = vsel %vm2086, nan, %v2083
        %vm2088 = vcmp.lt.f32.partialorder %v403, 0.0
        %v2089 = vsel %vm2088, 2.3561945, 0.7853982
        %vm2090 = vcmp.eq.s32.totalorder %v2050, inf
        %vm2091 = vcmp.eq.s32.totalorder %v2051, inf
        %vm2092 = vmand %vm2090, %vm2091
        %v2093 = vsel %vm2092, %v2089, %v2087
        %v2094 = vand.u32 2147483647, %v2093
        %v2095 = vand.u32 %v1063, 2147483648
        %v2096 = vor.u32 %v2094, %v2095
        %v2097 = vand.u32 2147483647, %v404
        %v2098 = vand.u32 2147483647, %v1070
        %v2099 = vmin.f32 %v2097, %v2098
        %v2100 = vmax.f32 %v2097, %v2098
        %v2101 = vrcp.pop %v2100
        %v2102 = vmul.f32 %v2099, %v2101
        %v2103 = vmul.f32 %v2102, %v2102
        %v2104 = vmul.f32 0.002785687, %v2103
        %v2105 = vadd.f32 %v2104, -0.015866
        %v2106 = vmul.f32 %v2105, %v2103
        %v2107 = vadd.f32 %v2106, 0.04247222
        %v2108 = vmul.f32 %v2107, %v2103
        %v2109 = vadd.f32 %v2108, -0.074975304
        %v2110 = vmul.f32 %v2109, %v2103
        %v2111 = vadd.f32 %v2110, 0.1064488
        %v2112 = vmul.f32 %v2111, %v2103
        %v2113 = vadd.f32 %v2112, -0.14207031
        %v2114 = vmul.f32 %v2113, %v2103
        %v2115 = vadd.f32 %v2114, 0.19993454
        %v2116 = vmul.f32 %v2115, %v2103
        %v2117 = vadd.f32 %v2116, -0.33333147
        %v2118 = vmul.f32 %v2117, %v2103
        %v2119 = vmul.f32 %v2118, %v2102
        %v2120 = vadd.f32 %v2119, %v2102
        %vm2121 = vcmp.gt.f32.partialorder %v2098, %v2097
        %v2122 = vsub.f32 1.5707964, %v2120
        %v2123 = vsel %vm2121, %v2122, %v2120
        %vm2124 = vcmp.lt.f32.partialorder %v404, 0.0
        %v2125 = vsub.f32 3.1415927, %v2123
        %v2126 = vsel %vm2124, %v2125, %v2123
        %vm2127 = vcmp.lt.s32.totalorder %v404, 0
        %v2128 = vsel %vm2127, 3.1415927, 0.0
        %vm2129 = vcmp.eq.f32.partialorder %v1070, 0.0
        %v2130 = vsel %vm2129, %v2128, %v2126
        %vm2131 = vcmp.ne.f32.partialorder %v404, %v404
        %vm2132 = vcmp.ne.f32.partialorder %v1070, %v1070
        %vm2133 = vmor %vm2131, %vm2132
        %v2134 = vsel %vm2133, nan, %v2130
        %vm2135 = vcmp.lt.f32.partialorder %v404, 0.0
        %v2136 = vsel %vm2135, 2.3561945, 0.7853982
        %vm2137 = vcmp.eq.s32.totalorder %v2097, inf
        %vm2138 = vcmp.eq.s32.totalorder %v2098, inf
        %vm2139 = vmand %vm2137, %vm2138
        %v2140 = vsel %vm2139, %v2136, %v2134
        %v2141 = vand.u32 2147483647, %v2140
        %v2142 = vand.u32 %v1070, 2147483648
        %v2143 = vor.u32 %v2141, %v2142
        %v2144 = vand.u32 2147483647, %v405
        %v2145 = vand.u32 2147483647, %v1077
        %v2146 = vmin.f32 %v2144, %v2145
        %v2147 = vmax.f32 %v2144, %v2145
        %v2148 = vrcp.pop %v2147
        %v2149 = vmul.f32 %v2146, %v2148
        %v2150 = vmul.f32 %v2149, %v2149
        %v2151 = vmul.f32 0.002785687, %v2150
        %v2152 = vadd.f32 %v2151, -0.015866
        %v2153 = vmul.f32 %v2152, %v2150
        %v2154 = vadd.f32 %v2153, 0.04247222
        %v2155 = vmul.f32 %v2154, %v2150
        %v2156 = vadd.f32 %v2155, -0.074975304
        %v2157 = vmul.f32 %v2156, %v2150
        %v2158 = vadd.f32 %v2157, 0.1064488
        %v2159 = vmul.f32 %v2158, %v2150
        %v2160 = vadd.f32 %v2159, -0.14207031
        %v2161 = vmul.f32 %v2160, %v2150
        %v2162 = vadd.f32 %v2161, 0.19993454
        %v2163 = vmul.f32 %v2162, %v2150
        %v2164 = vadd.f32 %v2163, -0.33333147
        %v2165 = vmul.f32 %v2164, %v2150
        %v2166 = vmul.f32 %v2165, %v2149
        %v2167 = vadd.f32 %v2166, %v2149
        %vm2168 = vcmp.gt.f32.partialorder %v2145, %v2144
        %v2169 = vsub.f32 1.5707964, %v2167
        %v2170 = vsel %vm2168, %v2169, %v2167
        %vm2171 = vcmp.lt.f32.partialorder %v405, 0.0
        %v2172 = vsub.f32 3.1415927, %v2170
        %v2173 = vsel %vm2171, %v2172, %v2170
        %vm2174 = vcmp.lt.s32.totalorder %v405, 0
        %v2175 = vsel %vm2174, 3.1415927, 0.0
        %vm2176 = vcmp.eq.f32.partialorder %v1077, 0.0
        %v2177 = vsel %vm2176, %v2175, %v2173
        %vm2178 = vcmp.ne.f32.partialorder %v405, %v405
        %vm2179 = vcmp.ne.f32.partialorder %v1077, %v1077
        %vm2180 = vmor %vm2178, %vm2179
        %v2181 = vsel %vm2180, nan, %v2177
        %vm2182 = vcmp.lt.f32.partialorder %v405, 0.0
        %v2183 = vsel %vm2182, 2.3561945, 0.7853982
        %vm2184 = vcmp.eq.s32.totalorder %v2144, inf
        %vm2185 = vcmp.eq.s32.totalorder %v2145, inf
        %vm2186 = vmand %vm2184, %vm2185
        %v2187 = vsel %vm2186, %v2183, %v2181
        %v2188 = vand.u32 2147483647, %v2187
        %v2189 = vand.u32 %v1077, 2147483648
        %v2190 = vor.u32 %v2188, %v2189
        %v2191 = vand.u32 2147483647, %v406
        %v2192 = vand.u32 2147483647, %v1084
        %v2193 = vmin.f32 %v2191, %v2192
        %v2194 = vmax.f32 %v2191, %v2192
        %v2195 = vrcp.pop %v2194
        %v2196 = vmul.f32 %v2193, %v2195
        %v2197 = vmul.f32 %v2196, %v2196
        %v2198 = vmul.f32 0.002785687, %v2197
        %v2199 = vadd.f32 %v2198, -0.015866
        %v2200 = vmul.f32 %v2199, %v2197
        %v2201 = vadd.f32 %v2200, 0.04247222
        %v2202 = vmul.f32 %v2201, %v2197
        %v2203 = vadd.f32 %v2202, -0.074975304
        %v2204 = vmul.f32 %v2203, %v2197
        %v2205 = vadd.f32 %v2204, 0.1064488
        %v2206 = vmul.f32 %v2205, %v2197
        %v2207 = vadd.f32 %v2206, -0.14207031
        %v2208 = vmul.f32 %v2207, %v2197
        %v2209 = vadd.f32 %v2208, 0.19993454
        %v2210 = vmul.f32 %v2209, %v2197
        %v2211 = vadd.f32 %v2210, -0.33333147
        %v2212 = vmul.f32 %v2211, %v2197
        %v2213 = vmul.f32 %v2212, %v2196
        %v2214 = vadd.f32 %v2213, %v2196
        %vm2215 = vcmp.gt.f32.partialorder %v2192, %v2191
        %v2216 = vsub.f32 1.5707964, %v2214
        %v2217 = vsel %vm2215, %v2216, %v2214
        %vm2218 = vcmp.lt.f32.partialorder %v406, 0.0
        %v2219 = vsub.f32 3.1415927, %v2217
        %v2220 = vsel %vm2218, %v2219, %v2217
        %vm2221 = vcmp.lt.s32.totalorder %v406, 0
        %v2222 = vsel %vm2221, 3.1415927, 0.0
        %vm2223 = vcmp.eq.f32.partialorder %v1084, 0.0
        %v2224 = vsel %vm2223, %v2222, %v2220
        %vm2225 = vcmp.ne.f32.partialorder %v406, %v406
        %vm2226 = vcmp.ne.f32.partialorder %v1084, %v1084
        %vm2227 = vmor %vm2225, %vm2226
        %v2228 = vsel %vm2227, nan, %v2224
        %vm2229 = vcmp.lt.f32.partialorder %v406, 0.0
        %v2230 = vsel %vm2229, 2.3561945, 0.7853982
        %vm2231 = vcmp.eq.s32.totalorder %v2191, inf
        %vm2232 = vcmp.eq.s32.totalorder %v2192, inf
        %vm2233 = vmand %vm2231, %vm2232
        %v2234 = vsel %vm2233, %v2230, %v2228
        %v2235 = vand.u32 2147483647, %v2234
        %v2236 = vand.u32 %v1084, 2147483648
        %v2237 = vor.u32 %v2235, %v2236
        %v2238 = vand.u32 2147483647, %v407
        %v2239 = vand.u32 2147483647, %v1091
        %v2240 = vmin.f32 %v2238, %v2239
        %v2241 = vmax.f32 %v2238, %v2239
        %v2242 = vrcp.pop %v2241
        %v2243 = vmul.f32 %v2240, %v2242
        %v2244 = vmul.f32 %v2243, %v2243
        %v2245 = vmul.f32 0.002785687, %v2244
        %v2246 = vadd.f32 %v2245, -0.015866
        %v2247 = vmul.f32 %v2246, %v2244
        %v2248 = vadd.f32 %v2247, 0.04247222
        %v2249 = vmul.f32 %v2248, %v2244
        %v2250 = vadd.f32 %v2249, -0.074975304
        %v2251 = vmul.f32 %v2250, %v2244
        %v2252 = vadd.f32 %v2251, 0.1064488
        %v2253 = vmul.f32 %v2252, %v2244
        %v2254 = vadd.f32 %v2253, -0.14207031
        %v2255 = vmul.f32 %v2254, %v2244
        %v2256 = vadd.f32 %v2255, 0.19993454
        %v2257 = vmul.f32 %v2256, %v2244
        %v2258 = vadd.f32 %v2257, -0.33333147
        %v2259 = vmul.f32 %v2258, %v2244
        %v2260 = vmul.f32 %v2259, %v2243
        %v2261 = vadd.f32 %v2260, %v2243
        %vm2262 = vcmp.gt.f32.partialorder %v2239, %v2238
        %v2263 = vsub.f32 1.5707964, %v2261
        %v2264 = vsel %vm2262, %v2263, %v2261
        %vm2265 = vcmp.lt.f32.partialorder %v407, 0.0
        %v2266 = vsub.f32 3.1415927, %v2264
        %v2267 = vsel %vm2265, %v2266, %v2264
        %vm2268 = vcmp.lt.s32.totalorder %v407, 0
        %v2269 = vsel %vm2268, 3.1415927, 0.0
        %vm2270 = vcmp.eq.f32.partialorder %v1091, 0.0
        %v2271 = vsel %vm2270, %v2269, %v2267
        %vm2272 = vcmp.ne.f32.partialorder %v407, %v407
        %vm2273 = vcmp.ne.f32.partialorder %v1091, %v1091
        %vm2274 = vmor %vm2272, %vm2273
        %v2275 = vsel %vm2274, nan, %v2271
        %vm2276 = vcmp.lt.f32.partialorder %v407, 0.0
        %v2277 = vsel %vm2276, 2.3561945, 0.7853982
        %vm2278 = vcmp.eq.s32.totalorder %v2238, inf
        %vm2279 = vcmp.eq.s32.totalorder %v2239, inf
        %vm2280 = vmand %vm2278, %vm2279
        %v2281 = vsel %vm2280, %v2277, %v2275
        %v2282 = vand.u32 2147483647, %v2281
        %v2283 = vand.u32 %v1091, 2147483648
        %v2284 = vor.u32 %v2282, %v2283
        %v2285 = vand.u32 2147483647, %v408
        %v2286 = vand.u32 2147483647, %v1098
        %v2287 = vmin.f32 %v2285, %v2286
        %v2288 = vmax.f32 %v2285, %v2286
        %v2289 = vrcp.pop %v2288
        %v2290 = vmul.f32 %v2287, %v2289
        %v2291 = vmul.f32 %v2290, %v2290
        %v2292 = vmul.f32 0.002785687, %v2291
        %v2293 = vadd.f32 %v2292, -0.015866
        %v2294 = vmul.f32 %v2293, %v2291
        %v2295 = vadd.f32 %v2294, 0.04247222
        %v2296 = vmul.f32 %v2295, %v2291
        %v2297 = vadd.f32 %v2296, -0.074975304
        %v2298 = vmul.f32 %v2297, %v2291
        %v2299 = vadd.f32 %v2298, 0.1064488
        %v2300 = vmul.f32 %v2299, %v2291
        %v2301 = vadd.f32 %v2300, -0.14207031
        %v2302 = vmul.f32 %v2301, %v2291
        %v2303 = vadd.f32 %v2302, 0.19993454
        %v2304 = vmul.f32 %v2303, %v2291
        %v2305 = vadd.f32 %v2304, -0.33333147
        %v2306 = vmul.f32 %v2305, %v2291
        %v2307 = vmul.f32 %v2306, %v2290
        %v2308 = vadd.f32 %v2307, %v2290
        %vm2309 = vcmp.gt.f32.partialorder %v2286, %v2285
        %v2310 = vsub.f32 1.5707964, %v2308
        %v2311 = vsel %vm2309, %v2310, %v2308
        %vm2312 = vcmp.lt.f32.partialorder %v408, 0.0
        %v2313 = vsub.f32 3.1415927, %v2311
        %v2314 = vsel %vm2312, %v2313, %v2311
        %vm2315 = vcmp.lt.s32.totalorder %v408, 0
        %v2316 = vsel %vm2315, 3.1415927, 0.0
        %vm2317 = vcmp.eq.f32.partialorder %v1098, 0.0
        %v2318 = vsel %vm2317, %v2316, %v2314
        %vm2319 = vcmp.ne.f32.partialorder %v408, %v408
        %vm2320 = vcmp.ne.f32.partialorder %v1098, %v1098
        %vm2321 = vmor %vm2319, %vm2320
        %v2322 = vsel %vm2321, nan, %v2318
        %vm2323 = vcmp.lt.f32.partialorder %v408, 0.0
        %v2324 = vsel %vm2323, 2.3561945, 0.7853982
        %vm2325 = vcmp.eq.s32.totalorder %v2285, inf
        %vm2326 = vcmp.eq.s32.totalorder %v2286, inf
        %vm2327 = vmand %vm2325, %vm2326
        %v2328 = vsel %vm2327, %v2324, %v2322
        %v2329 = vand.u32 2147483647, %v2328
        %v2330 = vand.u32 %v1098, 2147483648
        %v2331 = vor.u32 %v2329, %v2330
        %v2332 = vand.u32 2147483647, %v409
        %v2333 = vand.u32 2147483647, %v1105
        %v2334 = vmin.f32 %v2332, %v2333
        %v2335 = vmax.f32 %v2332, %v2333
        %v2336 = vrcp.pop %v2335
        %v2337 = vmul.f32 %v2334, %v2336
        %v2338 = vmul.f32 %v2337, %v2337
        %v2339 = vmul.f32 0.002785687, %v2338
        %v2340 = vadd.f32 %v2339, -0.015866
        %v2341 = vmul.f32 %v2340, %v2338
        %v2342 = vadd.f32 %v2341, 0.04247222
        %v2343 = vmul.f32 %v2342, %v2338
        %v2344 = vadd.f32 %v2343, -0.074975304
        %v2345 = vmul.f32 %v2344, %v2338
        %v2346 = vadd.f32 %v2345, 0.1064488
        %v2347 = vmul.f32 %v2346, %v2338
        %v2348 = vadd.f32 %v2347, -0.14207031
        %v2349 = vmul.f32 %v2348, %v2338
        %v2350 = vadd.f32 %v2349, 0.19993454
        %v2351 = vmul.f32 %v2350, %v2338
        %v2352 = vadd.f32 %v2351, -0.33333147
        %v2353 = vmul.f32 %v2352, %v2338
        %v2354 = vmul.f32 %v2353, %v2337
        %v2355 = vadd.f32 %v2354, %v2337
        %vm2356 = vcmp.gt.f32.partialorder %v2333, %v2332
        %v2357 = vsub.f32 1.5707964, %v2355
        %v2358 = vsel %vm2356, %v2357, %v2355
        %vm2359 = vcmp.lt.f32.partialorder %v409, 0.0
        %v2360 = vsub.f32 3.1415927, %v2358
        %v2361 = vsel %vm2359, %v2360, %v2358
        %vm2362 = vcmp.lt.s32.totalorder %v409, 0
        %v2363 = vsel %vm2362, 3.1415927, 0.0
        %vm2364 = vcmp.eq.f32.partialorder %v1105, 0.0
        %v2365 = vsel %vm2364, %v2363, %v2361
        %vm2366 = vcmp.ne.f32.partialorder %v409, %v409
        %vm2367 = vcmp.ne.f32.partialorder %v1105, %v1105
        %vm2368 = vmor %vm2366, %vm2367
        %v2369 = vsel %vm2368, nan, %v2365
        %vm2370 = vcmp.lt.f32.partialorder %v409, 0.0
        %v2371 = vsel %vm2370, 2.3561945, 0.7853982
        %vm2372 = vcmp.eq.s32.totalorder %v2332, inf
        %vm2373 = vcmp.eq.s32.totalorder %v2333, inf
        %vm2374 = vmand %vm2372, %vm2373
        %v2375 = vsel %vm2374, %v2371, %v2369
        %v2376 = vand.u32 2147483647, %v2375
        %v2377 = vand.u32 %v1105, 2147483648
        %v2378 = vor.u32 %v2376, %v2377
        %v2379 = vand.u32 2147483647, %v410
        %v2380 = vand.u32 2147483647, %v1112
        %v2381 = vmin.f32 %v2379, %v2380
        %v2382 = vmax.f32 %v2379, %v2380
        %v2383 = vrcp.pop %v2382
        %v2384 = vmul.f32 %v2381, %v2383
        %v2385 = vmul.f32 %v2384, %v2384
        %v2386 = vmul.f32 0.002785687, %v2385
        %v2387 = vadd.f32 %v2386, -0.015866
        %v2388 = vmul.f32 %v2387, %v2385
        %v2389 = vadd.f32 %v2388, 0.04247222
        %v2390 = vmul.f32 %v2389, %v2385
        %v2391 = vadd.f32 %v2390, -0.074975304
        %v2392 = vmul.f32 %v2391, %v2385
        %v2393 = vadd.f32 %v2392, 0.1064488
        %v2394 = vmul.f32 %v2393, %v2385
        %v2395 = vadd.f32 %v2394, -0.14207031
        %v2396 = vmul.f32 %v2395, %v2385
        %v2397 = vadd.f32 %v2396, 0.19993454
        %v2398 = vmul.f32 %v2397, %v2385
        %v2399 = vadd.f32 %v2398, -0.33333147
        %v2400 = vmul.f32 %v2399, %v2385
        %v2401 = vmul.f32 %v2400, %v2384
        %v2402 = vadd.f32 %v2401, %v2384
        %vm2403 = vcmp.gt.f32.partialorder %v2380, %v2379
        %v2404 = vsub.f32 1.5707964, %v2402
        %v2405 = vsel %vm2403, %v2404, %v2402
        %vm2406 = vcmp.lt.f32.partialorder %v410, 0.0
        %v2407 = vsub.f32 3.1415927, %v2405
        %v2408 = vsel %vm2406, %v2407, %v2405
        %vm2409 = vcmp.lt.s32.totalorder %v410, 0
        %v2410 = vsel %vm2409, 3.1415927, 0.0
        %vm2411 = vcmp.eq.f32.partialorder %v1112, 0.0
        %v2412 = vsel %vm2411, %v2410, %v2408
        %vm2413 = vcmp.ne.f32.partialorder %v410, %v410
        %vm2414 = vcmp.ne.f32.partialorder %v1112, %v1112
        %vm2415 = vmor %vm2413, %vm2414
        %v2416 = vsel %vm2415, nan, %v2412
        %vm2417 = vcmp.lt.f32.partialorder %v410, 0.0
        %v2418 = vsel %vm2417, 2.3561945, 0.7853982
        %vm2419 = vcmp.eq.s32.totalorder %v2379, inf
        %vm2420 = vcmp.eq.s32.totalorder %v2380, inf
        %vm2421 = vmand %vm2419, %vm2420
        %v2422 = vsel %vm2421, %v2418, %v2416
        %v2423 = vand.u32 2147483647, %v2422
        %v2424 = vand.u32 %v1112, 2147483648
        %v2425 = vor.u32 %v2423, %v2424
        %v2426 = vand.u32 2147483647, %v411
        %v2427 = vand.u32 2147483647, %v1119
        %v2428 = vmin.f32 %v2426, %v2427
        %v2429 = vmax.f32 %v2426, %v2427
        %v2430 = vrcp.pop %v2429
        %v2431 = vmul.f32 %v2428, %v2430
        %v2432 = vmul.f32 %v2431, %v2431
        %v2433 = vmul.f32 0.002785687, %v2432
        %v2434 = vadd.f32 %v2433, -0.015866
        %v2435 = vmul.f32 %v2434, %v2432
        %v2436 = vadd.f32 %v2435, 0.04247222
        %v2437 = vmul.f32 %v2436, %v2432
        %v2438 = vadd.f32 %v2437, -0.074975304
        %v2439 = vmul.f32 %v2438, %v2432
        %v2440 = vadd.f32 %v2439, 0.1064488
        %v2441 = vmul.f32 %v2440, %v2432
        %v2442 = vadd.f32 %v2441, -0.14207031
        %v2443 = vmul.f32 %v2442, %v2432
        %v2444 = vadd.f32 %v2443, 0.19993454
        %v2445 = vmul.f32 %v2444, %v2432
        %v2446 = vadd.f32 %v2445, -0.33333147
        %v2447 = vmul.f32 %v2446, %v2432
        %v2448 = vmul.f32 %v2447, %v2431
        %v2449 = vadd.f32 %v2448, %v2431
        %vm2450 = vcmp.gt.f32.partialorder %v2427, %v2426
        %v2451 = vsub.f32 1.5707964, %v2449
        %v2452 = vsel %vm2450, %v2451, %v2449
        %vm2453 = vcmp.lt.f32.partialorder %v411, 0.0
        %v2454 = vsub.f32 3.1415927, %v2452
        %v2455 = vsel %vm2453, %v2454, %v2452
        %vm2456 = vcmp.lt.s32.totalorder %v411, 0
        %v2457 = vsel %vm2456, 3.1415927, 0.0
        %vm2458 = vcmp.eq.f32.partialorder %v1119, 0.0
        %v2459 = vsel %vm2458, %v2457, %v2455
        %vm2460 = vcmp.ne.f32.partialorder %v411, %v411
        %vm2461 = vcmp.ne.f32.partialorder %v1119, %v1119
        %vm2462 = vmor %vm2460, %vm2461
        %v2463 = vsel %vm2462, nan, %v2459
        %vm2464 = vcmp.lt.f32.partialorder %v411, 0.0
        %v2465 = vsel %vm2464, 2.3561945, 0.7853982
        %vm2466 = vcmp.eq.s32.totalorder %v2426, inf
        %vm2467 = vcmp.eq.s32.totalorder %v2427, inf
        %vm2468 = vmand %vm2466, %vm2467
        %v2469 = vsel %vm2468, %v2465, %v2463
        %v2470 = vand.u32 2147483647, %v2469
        %v2471 = vand.u32 %v1119, 2147483648
        %v2472 = vor.u32 %v2470, %v2471
        %v2473 = vand.u32 2147483647, %v412
        %v2474 = vand.u32 2147483647, %v1126
        %v2475 = vmin.f32 %v2473, %v2474
        %v2476 = vmax.f32 %v2473, %v2474
        %v2477 = vrcp.pop %v2476
        %v2478 = vmul.f32 %v2475, %v2477
        %v2479 = vmul.f32 %v2478, %v2478
        %v2480 = vmul.f32 0.002785687, %v2479
        %v2481 = vadd.f32 %v2480, -0.015866
        %v2482 = vmul.f32 %v2481, %v2479
        %v2483 = vadd.f32 %v2482, 0.04247222
        %v2484 = vmul.f32 %v2483, %v2479
        %v2485 = vadd.f32 %v2484, -0.074975304
        %v2486 = vmul.f32 %v2485, %v2479
        %v2487 = vadd.f32 %v2486, 0.1064488
        %v2488 = vmul.f32 %v2487, %v2479
        %v2489 = vadd.f32 %v2488, -0.14207031
        %v2490 = vmul.f32 %v2489, %v2479
        %v2491 = vadd.f32 %v2490, 0.19993454
        %v2492 = vmul.f32 %v2491, %v2479
        %v2493 = vadd.f32 %v2492, -0.33333147
        %v2494 = vmul.f32 %v2493, %v2479
        %v2495 = vmul.f32 %v2494, %v2478
        %v2496 = vadd.f32 %v2495, %v2478
        %vm2497 = vcmp.gt.f32.partialorder %v2474, %v2473
        %v2498 = vsub.f32 1.5707964, %v2496
        %v2499 = vsel %vm2497, %v2498, %v2496
        %vm2500 = vcmp.lt.f32.partialorder %v412, 0.0
        %v2501 = vsub.f32 3.1415927, %v2499
        %v2502 = vsel %vm2500, %v2501, %v2499
        %vm2503 = vcmp.lt.s32.totalorder %v412, 0
        %v2504 = vsel %vm2503, 3.1415927, 0.0
        %vm2505 = vcmp.eq.f32.partialorder %v1126, 0.0
        %v2506 = vsel %vm2505, %v2504, %v2502
        %vm2507 = vcmp.ne.f32.partialorder %v412, %v412
        %vm2508 = vcmp.ne.f32.partialorder %v1126, %v1126
        %vm2509 = vmor %vm2507, %vm2508
        %v2510 = vsel %vm2509, nan, %v2506
        %vm2511 = vcmp.lt.f32.partialorder %v412, 0.0
        %v2512 = vsel %vm2511, 2.3561945, 0.7853982
        %vm2513 = vcmp.eq.s32.totalorder %v2473, inf
        %vm2514 = vcmp.eq.s32.totalorder %v2474, inf
        %vm2515 = vmand %vm2513, %vm2514
        %v2516 = vsel %vm2515, %v2512, %v2510
        %v2517 = vand.u32 2147483647, %v2516
        %v2518 = vand.u32 %v1126, 2147483648
        %v2519 = vor.u32 %v2517, %v2518
        %v2520 = vand.u32 2147483647, %v413
        %v2521 = vand.u32 2147483647, %v1133
        %v2522 = vmin.f32 %v2520, %v2521
        %v2523 = vmax.f32 %v2520, %v2521
        %v2524 = vrcp.pop %v2523
        %v2525 = vmul.f32 %v2522, %v2524
        %v2526 = vmul.f32 %v2525, %v2525
        %v2527 = vmul.f32 0.002785687, %v2526
        %v2528 = vadd.f32 %v2527, -0.015866
        %v2529 = vmul.f32 %v2528, %v2526
        %v2530 = vadd.f32 %v2529, 0.04247222
        %v2531 = vmul.f32 %v2530, %v2526
        %v2532 = vadd.f32 %v2531, -0.074975304
        %v2533 = vmul.f32 %v2532, %v2526
        %v2534 = vadd.f32 %v2533, 0.1064488
        %v2535 = vmul.f32 %v2534, %v2526
        %v2536 = vadd.f32 %v2535, -0.14207031
        %v2537 = vmul.f32 %v2536, %v2526
        %v2538 = vadd.f32 %v2537, 0.19993454
        %v2539 = vmul.f32 %v2538, %v2526
        %v2540 = vadd.f32 %v2539, -0.33333147
        %v2541 = vmul.f32 %v2540, %v2526
        %v2542 = vmul.f32 %v2541, %v2525
        %v2543 = vadd.f32 %v2542, %v2525
        %vm2544 = vcmp.gt.f32.partialorder %v2521, %v2520
        %v2545 = vsub.f32 1.5707964, %v2543
        %v2546 = vsel %vm2544, %v2545, %v2543
        %vm2547 = vcmp.lt.f32.partialorder %v413, 0.0
        %v2548 = vsub.f32 3.1415927, %v2546
        %v2549 = vsel %vm2547, %v2548, %v2546
        %vm2550 = vcmp.lt.s32.totalorder %v413, 0
        %v2551 = vsel %vm2550, 3.1415927, 0.0
        %vm2552 = vcmp.eq.f32.partialorder %v1133, 0.0
        %v2553 = vsel %vm2552, %v2551, %v2549
        %vm2554 = vcmp.ne.f32.partialorder %v413, %v413
        %vm2555 = vcmp.ne.f32.partialorder %v1133, %v1133
        %vm2556 = vmor %vm2554, %vm2555
        %v2557 = vsel %vm2556, nan, %v2553
        %vm2558 = vcmp.lt.f32.partialorder %v413, 0.0
        %v2559 = vsel %vm2558, 2.3561945, 0.7853982
        %vm2560 = vcmp.eq.s32.totalorder %v2520, inf
        %vm2561 = vcmp.eq.s32.totalorder %v2521, inf
        %vm2562 = vmand %vm2560, %vm2561
        %v2563 = vsel %vm2562, %v2559, %v2557
        %v2564 = vand.u32 2147483647, %v2563
        %v2565 = vand.u32 %v1133, 2147483648
        %v2566 = vor.u32 %v2564, %v2565
        %v2567 = vand.u32 2147483647, %v414
        %v2568 = vand.u32 2147483647, %v1140
        %v2569 = vmin.f32 %v2567, %v2568
        %v2570 = vmax.f32 %v2567, %v2568
        %v2571 = vrcp.pop %v2570
        %v2572 = vmul.f32 %v2569, %v2571
        %v2573 = vmul.f32 %v2572, %v2572
        %v2574 = vmul.f32 0.002785687, %v2573
        %v2575 = vadd.f32 %v2574, -0.015866
        %v2576 = vmul.f32 %v2575, %v2573
        %v2577 = vadd.f32 %v2576, 0.04247222
        %v2578 = vmul.f32 %v2577, %v2573
        %v2579 = vadd.f32 %v2578, -0.074975304
        %v2580 = vmul.f32 %v2579, %v2573
        %v2581 = vadd.f32 %v2580, 0.1064488
        %v2582 = vmul.f32 %v2581, %v2573
        %v2583 = vadd.f32 %v2582, -0.14207031
        %v2584 = vmul.f32 %v2583, %v2573
        %v2585 = vadd.f32 %v2584, 0.19993454
        %v2586 = vmul.f32 %v2585, %v2573
        %v2587 = vadd.f32 %v2586, -0.33333147
        %v2588 = vmul.f32 %v2587, %v2573
        %v2589 = vmul.f32 %v2588, %v2572
        %v2590 = vadd.f32 %v2589, %v2572
        %vm2591 = vcmp.gt.f32.partialorder %v2568, %v2567
        %v2592 = vsub.f32 1.5707964, %v2590
        %v2593 = vsel %vm2591, %v2592, %v2590
        %vm2594 = vcmp.lt.f32.partialorder %v414, 0.0
        %v2595 = vsub.f32 3.1415927, %v2593
        %v2596 = vsel %vm2594, %v2595, %v2593
        %vm2597 = vcmp.lt.s32.totalorder %v414, 0
        %v2598 = vsel %vm2597, 3.1415927, 0.0
        %vm2599 = vcmp.eq.f32.partialorder %v1140, 0.0
        %v2600 = vsel %vm2599, %v2598, %v2596
        %vm2601 = vcmp.ne.f32.partialorder %v414, %v414
        %vm2602 = vcmp.ne.f32.partialorder %v1140, %v1140
        %vm2603 = vmor %vm2601, %vm2602
        %v2604 = vsel %vm2603, nan, %v2600
        %vm2605 = vcmp.lt.f32.partialorder %v414, 0.0
        %v2606 = vsel %vm2605, 2.3561945, 0.7853982
        %vm2607 = vcmp.eq.s32.totalorder %v2567, inf
        %vm2608 = vcmp.eq.s32.totalorder %v2568, inf
        %vm2609 = vmand %vm2607, %vm2608
        %v2610 = vsel %vm2609, %v2606, %v2604
        %v2611 = vand.u32 2147483647, %v2610
        %v2612 = vand.u32 %v1140, 2147483648
        %v2613 = vor.u32 %v2611, %v2612
        %v2614 = vand.u32 2147483647, %v415
        %v2615 = vand.u32 2147483647, %v1147
        %v2616 = vmin.f32 %v2614, %v2615
        %v2617 = vmax.f32 %v2614, %v2615
        %v2618 = vrcp.pop %v2617
        %v2619 = vmul.f32 %v2616, %v2618
        %v2620 = vmul.f32 %v2619, %v2619
        %v2621 = vmul.f32 0.002785687, %v2620
        %v2622 = vadd.f32 %v2621, -0.015866
        %v2623 = vmul.f32 %v2622, %v2620
        %v2624 = vadd.f32 %v2623, 0.04247222
        %v2625 = vmul.f32 %v2624, %v2620
        %v2626 = vadd.f32 %v2625, -0.074975304
        %v2627 = vmul.f32 %v2626, %v2620
        %v2628 = vadd.f32 %v2627, 0.1064488
        %v2629 = vmul.f32 %v2628, %v2620
        %v2630 = vadd.f32 %v2629, -0.14207031
        %v2631 = vmul.f32 %v2630, %v2620
        %v2632 = vadd.f32 %v2631, 0.19993454
        %v2633 = vmul.f32 %v2632, %v2620
        %v2634 = vadd.f32 %v2633, -0.33333147
        %v2635 = vmul.f32 %v2634, %v2620
        %v2636 = vmul.f32 %v2635, %v2619
        %v2637 = vadd.f32 %v2636, %v2619
        %vm2638 = vcmp.gt.f32.partialorder %v2615, %v2614
        %v2639 = vsub.f32 1.5707964, %v2637
        %v2640 = vsel %vm2638, %v2639, %v2637
        %vm2641 = vcmp.lt.f32.partialorder %v415, 0.0
        %v2642 = vsub.f32 3.1415927, %v2640
        %v2643 = vsel %vm2641, %v2642, %v2640
        %vm2644 = vcmp.lt.s32.totalorder %v415, 0
        %v2645 = vsel %vm2644, 3.1415927, 0.0
        %vm2646 = vcmp.eq.f32.partialorder %v1147, 0.0
        %v2647 = vsel %vm2646, %v2645, %v2643
        %vm2648 = vcmp.ne.f32.partialorder %v415, %v415
        %vm2649 = vcmp.ne.f32.partialorder %v1147, %v1147
        %vm2650 = vmor %vm2648, %vm2649
        %v2651 = vsel %vm2650, nan, %v2647
        %vm2652 = vcmp.lt.f32.partialorder %v415, 0.0
        %v2653 = vsel %vm2652, 2.3561945, 0.7853982
        %vm2654 = vcmp.eq.s32.totalorder %v2614, inf
        %vm2655 = vcmp.eq.s32.totalorder %v2615, inf
        %vm2656 = vmand %vm2654, %vm2655
        %v2657 = vsel %vm2656, %v2653, %v2651
        %v2658 = vand.u32 2147483647, %v2657
        %v2659 = vand.u32 %v1147, 2147483648
        %v2660 = vor.u32 %v2658, %v2659
        %v2661 = vand.u32 2147483647, %v416
        %v2662 = vand.u32 2147483647, %v1154
        %v2663 = vmin.f32 %v2661, %v2662
        %v2664 = vmax.f32 %v2661, %v2662
        %v2665 = vrcp.pop %v2664
        %v2666 = vmul.f32 %v2663, %v2665
        %v2667 = vmul.f32 %v2666, %v2666
        %v2668 = vmul.f32 0.002785687, %v2667
        %v2669 = vadd.f32 %v2668, -0.015866
        %v2670 = vmul.f32 %v2669, %v2667
        %v2671 = vadd.f32 %v2670, 0.04247222
        %v2672 = vmul.f32 %v2671, %v2667
        %v2673 = vadd.f32 %v2672, -0.074975304
        %v2674 = vmul.f32 %v2673, %v2667
        %v2675 = vadd.f32 %v2674, 0.1064488
        %v2676 = vmul.f32 %v2675, %v2667
        %v2677 = vadd.f32 %v2676, -0.14207031
        %v2678 = vmul.f32 %v2677, %v2667
        %v2679 = vadd.f32 %v2678, 0.19993454
        %v2680 = vmul.f32 %v2679, %v2667
        %v2681 = vadd.f32 %v2680, -0.33333147
        %v2682 = vmul.f32 %v2681, %v2667
        %v2683 = vmul.f32 %v2682, %v2666
        %v2684 = vadd.f32 %v2683, %v2666
        %vm2685 = vcmp.gt.f32.partialorder %v2662, %v2661
        %v2686 = vsub.f32 1.5707964, %v2684
        %v2687 = vsel %vm2685, %v2686, %v2684
        %vm2688 = vcmp.lt.f32.partialorder %v416, 0.0
        %v2689 = vsub.f32 3.1415927, %v2687
        %v2690 = vsel %vm2688, %v2689, %v2687
        %vm2691 = vcmp.lt.s32.totalorder %v416, 0
        %v2692 = vsel %vm2691, 3.1415927, 0.0
        %vm2693 = vcmp.eq.f32.partialorder %v1154, 0.0
        %v2694 = vsel %vm2693, %v2692, %v2690
        %vm2695 = vcmp.ne.f32.partialorder %v416, %v416
        %vm2696 = vcmp.ne.f32.partialorder %v1154, %v1154
        %vm2697 = vmor %vm2695, %vm2696
        %v2698 = vsel %vm2697, nan, %v2694
        %vm2699 = vcmp.lt.f32.partialorder %v416, 0.0
        %v2700 = vsel %vm2699, 2.3561945, 0.7853982
        %vm2701 = vcmp.eq.s32.totalorder %v2661, inf
        %vm2702 = vcmp.eq.s32.totalorder %v2662, inf
        %vm2703 = vmand %vm2701, %vm2702
        %v2704 = vsel %vm2703, %v2700, %v2698
        %v2705 = vand.u32 2147483647, %v2704
        %v2706 = vand.u32 %v1154, 2147483648
        %v2707 = vor.u32 %v2705, %v2706
        %v2708 = vand.u32 2147483647, %v417
        %v2709 = vand.u32 2147483647, %v1161
        %v2710 = vmin.f32 %v2708, %v2709
        %v2711 = vmax.f32 %v2708, %v2709
        %v2712 = vrcp.pop %v2711
        %v2713 = vmul.f32 %v2710, %v2712
        %v2714 = vmul.f32 %v2713, %v2713
        %v2715 = vmul.f32 0.002785687, %v2714
        %v2716 = vadd.f32 %v2715, -0.015866
        %v2717 = vmul.f32 %v2716, %v2714
        %v2718 = vadd.f32 %v2717, 0.04247222
        %v2719 = vmul.f32 %v2718, %v2714
        %v2720 = vadd.f32 %v2719, -0.074975304
        %v2721 = vmul.f32 %v2720, %v2714
        %v2722 = vadd.f32 %v2721, 0.1064488
        %v2723 = vmul.f32 %v2722, %v2714
        %v2724 = vadd.f32 %v2723, -0.14207031
        %v2725 = vmul.f32 %v2724, %v2714
        %v2726 = vadd.f32 %v2725, 0.19993454
        %v2727 = vmul.f32 %v2726, %v2714
        %v2728 = vadd.f32 %v2727, -0.33333147
        %v2729 = vmul.f32 %v2728, %v2714
        %v2730 = vmul.f32 %v2729, %v2713
        %v2731 = vadd.f32 %v2730, %v2713
        %vm2732 = vcmp.gt.f32.partialorder %v2709, %v2708
        %v2733 = vsub.f32 1.5707964, %v2731
        %v2734 = vsel %vm2732, %v2733, %v2731
        %vm2735 = vcmp.lt.f32.partialorder %v417, 0.0
        %v2736 = vsub.f32 3.1415927, %v2734
        %v2737 = vsel %vm2735, %v2736, %v2734
        %vm2738 = vcmp.lt.s32.totalorder %v417, 0
        %v2739 = vsel %vm2738, 3.1415927, 0.0
        %vm2740 = vcmp.eq.f32.partialorder %v1161, 0.0
        %v2741 = vsel %vm2740, %v2739, %v2737
        %vm2742 = vcmp.ne.f32.partialorder %v417, %v417
        %vm2743 = vcmp.ne.f32.partialorder %v1161, %v1161
        %vm2744 = vmor %vm2742, %vm2743
        %v2745 = vsel %vm2744, nan, %v2741
        %vm2746 = vcmp.lt.f32.partialorder %v417, 0.0
        %v2747 = vsel %vm2746, 2.3561945, 0.7853982
        %vm2748 = vcmp.eq.s32.totalorder %v2708, inf
        %vm2749 = vcmp.eq.s32.totalorder %v2709, inf
        %vm2750 = vmand %vm2748, %vm2749
        %v2751 = vsel %vm2750, %v2747, %v2745
        %v2752 = vand.u32 2147483647, %v2751
        %v2753 = vand.u32 %v1161, 2147483648
        %v2754 = vor.u32 %v2752, %v2753
        %v2755 = vand.u32 2147483647, %v418
        %v2756 = vand.u32 2147483647, %v1168
        %v2757 = vmin.f32 %v2755, %v2756
        %v2758 = vmax.f32 %v2755, %v2756
        %v2759 = vrcp.pop %v2758
        %v2760 = vmul.f32 %v2757, %v2759
        %v2761 = vmul.f32 %v2760, %v2760
        %v2762 = vmul.f32 0.002785687, %v2761
        %v2763 = vadd.f32 %v2762, -0.015866
        %v2764 = vmul.f32 %v2763, %v2761
        %v2765 = vadd.f32 %v2764, 0.04247222
        %v2766 = vmul.f32 %v2765, %v2761
        %v2767 = vadd.f32 %v2766, -0.074975304
        %v2768 = vmul.f32 %v2767, %v2761
        %v2769 = vadd.f32 %v2768, 0.1064488
        %v2770 = vmul.f32 %v2769, %v2761
        %v2771 = vadd.f32 %v2770, -0.14207031
        %v2772 = vmul.f32 %v2771, %v2761
        %v2773 = vadd.f32 %v2772, 0.19993454
        %v2774 = vmul.f32 %v2773, %v2761
        %v2775 = vadd.f32 %v2774, -0.33333147
        %v2776 = vmul.f32 %v2775, %v2761
        %v2777 = vmul.f32 %v2776, %v2760
        %v2778 = vadd.f32 %v2777, %v2760
        %vm2779 = vcmp.gt.f32.partialorder %v2756, %v2755
        %v2780 = vsub.f32 1.5707964, %v2778
        %v2781 = vsel %vm2779, %v2780, %v2778
        %vm2782 = vcmp.lt.f32.partialorder %v418, 0.0
        %v2783 = vsub.f32 3.1415927, %v2781
        %v2784 = vsel %vm2782, %v2783, %v2781
        %vm2785 = vcmp.lt.s32.totalorder %v418, 0
        %v2786 = vsel %vm2785, 3.1415927, 0.0
        %vm2787 = vcmp.eq.f32.partialorder %v1168, 0.0
        %v2788 = vsel %vm2787, %v2786, %v2784
        %vm2789 = vcmp.ne.f32.partialorder %v418, %v418
        %vm2790 = vcmp.ne.f32.partialorder %v1168, %v1168
        %vm2791 = vmor %vm2789, %vm2790
        %v2792 = vsel %vm2791, nan, %v2788
        %vm2793 = vcmp.lt.f32.partialorder %v418, 0.0
        %v2794 = vsel %vm2793, 2.3561945, 0.7853982
        %vm2795 = vcmp.eq.s32.totalorder %v2755, inf
        %vm2796 = vcmp.eq.s32.totalorder %v2756, inf
        %vm2797 = vmand %vm2795, %vm2796
        %v2798 = vsel %vm2797, %v2794, %v2792
        %v2799 = vand.u32 2147483647, %v2798
        %v2800 = vand.u32 %v1168, 2147483648
        %v2801 = vor.u32 %v2799, %v2800
        %v2802 = vand.u32 2147483647, %v419
        %v2803 = vand.u32 2147483647, %v1175
        %v2804 = vmin.f32 %v2802, %v2803
        %v2805 = vmax.f32 %v2802, %v2803
        %v2806 = vrcp.pop %v2805
        %v2807 = vmul.f32 %v2804, %v2806
        %v2808 = vmul.f32 %v2807, %v2807
        %v2809 = vmul.f32 0.002785687, %v2808
        %v2810 = vadd.f32 %v2809, -0.015866
        %v2811 = vmul.f32 %v2810, %v2808
        %v2812 = vadd.f32 %v2811, 0.04247222
        %v2813 = vmul.f32 %v2812, %v2808
        %v2814 = vadd.f32 %v2813, -0.074975304
        %v2815 = vmul.f32 %v2814, %v2808
        %v2816 = vadd.f32 %v2815, 0.1064488
        %v2817 = vmul.f32 %v2816, %v2808
        %v2818 = vadd.f32 %v2817, -0.14207031
        %v2819 = vmul.f32 %v2818, %v2808
        %v2820 = vadd.f32 %v2819, 0.19993454
        %v2821 = vmul.f32 %v2820, %v2808
        %v2822 = vadd.f32 %v2821, -0.33333147
        %v2823 = vmul.f32 %v2822, %v2808
        %v2824 = vmul.f32 %v2823, %v2807
        %v2825 = vadd.f32 %v2824, %v2807
        %vm2826 = vcmp.gt.f32.partialorder %v2803, %v2802
        %v2827 = vsub.f32 1.5707964, %v2825
        %v2828 = vsel %vm2826, %v2827, %v2825
        %vm2829 = vcmp.lt.f32.partialorder %v419, 0.0
        %v2830 = vsub.f32 3.1415927, %v2828
        %v2831 = vsel %vm2829, %v2830, %v2828
        %vm2832 = vcmp.lt.s32.totalorder %v419, 0
        %v2833 = vsel %vm2832, 3.1415927, 0.0
        %vm2834 = vcmp.eq.f32.partialorder %v1175, 0.0
        %v2835 = vsel %vm2834, %v2833, %v2831
        %vm2836 = vcmp.ne.f32.partialorder %v419, %v419
        %vm2837 = vcmp.ne.f32.partialorder %v1175, %v1175
        %vm2838 = vmor %vm2836, %vm2837
        %v2839 = vsel %vm2838, nan, %v2835
        %vm2840 = vcmp.lt.f32.partialorder %v419, 0.0
        %v2841 = vsel %vm2840, 2.3561945, 0.7853982
        %vm2842 = vcmp.eq.s32.totalorder %v2802, inf
        %vm2843 = vcmp.eq.s32.totalorder %v2803, inf
        %vm2844 = vmand %vm2842, %vm2843
        %v2845 = vsel %vm2844, %v2841, %v2839
        %v2846 = vand.u32 2147483647, %v2845
        %v2847 = vand.u32 %v1175, 2147483648
        %v2848 = vor.u32 %v2846, %v2847
        %v2849 = vand.u32 2147483647, %v420
        %v2850 = vand.u32 2147483647, %v1182
        %v2851 = vmin.f32 %v2849, %v2850
        %v2852 = vmax.f32 %v2849, %v2850
        %v2853 = vrcp.pop %v2852
        %v2854 = vmul.f32 %v2851, %v2853
        %v2855 = vmul.f32 %v2854, %v2854
        %v2856 = vmul.f32 0.002785687, %v2855
        %v2857 = vadd.f32 %v2856, -0.015866
        %v2858 = vmul.f32 %v2857, %v2855
        %v2859 = vadd.f32 %v2858, 0.04247222
        %v2860 = vmul.f32 %v2859, %v2855
        %v2861 = vadd.f32 %v2860, -0.074975304
        %v2862 = vmul.f32 %v2861, %v2855
        %v2863 = vadd.f32 %v2862, 0.1064488
        %v2864 = vmul.f32 %v2863, %v2855
        %v2865 = vadd.f32 %v2864, -0.14207031
        %v2866 = vmul.f32 %v2865, %v2855
        %v2867 = vadd.f32 %v2866, 0.19993454
        %v2868 = vmul.f32 %v2867, %v2855
        %v2869 = vadd.f32 %v2868, -0.33333147
        %v2870 = vmul.f32 %v2869, %v2855
        %v2871 = vmul.f32 %v2870, %v2854
        %v2872 = vadd.f32 %v2871, %v2854
        %vm2873 = vcmp.gt.f32.partialorder %v2850, %v2849
        %v2874 = vsub.f32 1.5707964, %v2872
        %v2875 = vsel %vm2873, %v2874, %v2872
        %vm2876 = vcmp.lt.f32.partialorder %v420, 0.0
        %v2877 = vsub.f32 3.1415927, %v2875
        %v2878 = vsel %vm2876, %v2877, %v2875
        %vm2879 = vcmp.lt.s32.totalorder %v420, 0
        %v2880 = vsel %vm2879, 3.1415927, 0.0
        %vm2881 = vcmp.eq.f32.partialorder %v1182, 0.0
        %v2882 = vsel %vm2881, %v2880, %v2878
        %vm2883 = vcmp.ne.f32.partialorder %v420, %v420
        %vm2884 = vcmp.ne.f32.partialorder %v1182, %v1182
        %vm2885 = vmor %vm2883, %vm2884
        %v2886 = vsel %vm2885, nan, %v2882
        %vm2887 = vcmp.lt.f32.partialorder %v420, 0.0
        %v2888 = vsel %vm2887, 2.3561945, 0.7853982
        %vm2889 = vcmp.eq.s32.totalorder %v2849, inf
        %vm2890 = vcmp.eq.s32.totalorder %v2850, inf
        %vm2891 = vmand %vm2889, %vm2890
        %v2892 = vsel %vm2891, %v2888, %v2886
        %v2893 = vand.u32 2147483647, %v2892
        %v2894 = vand.u32 %v1182, 2147483648
        %v2895 = vor.u32 %v2893, %v2894
        %v2896 = vand.u32 2147483647, %v421
        %v2897 = vand.u32 2147483647, %v1189
        %v2898 = vmin.f32 %v2896, %v2897
        %v2899 = vmax.f32 %v2896, %v2897
        %v2900 = vrcp.pop %v2899
        %v2901 = vmul.f32 %v2898, %v2900
        %v2902 = vmul.f32 %v2901, %v2901
        %v2903 = vmul.f32 0.002785687, %v2902
        %v2904 = vadd.f32 %v2903, -0.015866
        %v2905 = vmul.f32 %v2904, %v2902
        %v2906 = vadd.f32 %v2905, 0.04247222
        %v2907 = vmul.f32 %v2906, %v2902
        %v2908 = vadd.f32 %v2907, -0.074975304
        %v2909 = vmul.f32 %v2908, %v2902
        %v2910 = vadd.f32 %v2909, 0.1064488
        %v2911 = vmul.f32 %v2910, %v2902
        %v2912 = vadd.f32 %v2911, -0.14207031
        %v2913 = vmul.f32 %v2912, %v2902
        %v2914 = vadd.f32 %v2913, 0.19993454
        %v2915 = vmul.f32 %v2914, %v2902
        %v2916 = vadd.f32 %v2915, -0.33333147
        %v2917 = vmul.f32 %v2916, %v2902
        %v2918 = vmul.f32 %v2917, %v2901
        %v2919 = vadd.f32 %v2918, %v2901
        %vm2920 = vcmp.gt.f32.partialorder %v2897, %v2896
        %v2921 = vsub.f32 1.5707964, %v2919
        %v2922 = vsel %vm2920, %v2921, %v2919
        %vm2923 = vcmp.lt.f32.partialorder %v421, 0.0
        %v2924 = vsub.f32 3.1415927, %v2922
        %v2925 = vsel %vm2923, %v2924, %v2922
        %vm2926 = vcmp.lt.s32.totalorder %v421, 0
        %v2927 = vsel %vm2926, 3.1415927, 0.0
        %vm2928 = vcmp.eq.f32.partialorder %v1189, 0.0
        %v2929 = vsel %vm2928, %v2927, %v2925
        %vm2930 = vcmp.ne.f32.partialorder %v421, %v421
        %vm2931 = vcmp.ne.f32.partialorder %v1189, %v1189
        %vm2932 = vmor %vm2930, %vm2931
        %v2933 = vsel %vm2932, nan, %v2929
        %vm2934 = vcmp.lt.f32.partialorder %v421, 0.0
        %v2935 = vsel %vm2934, 2.3561945, 0.7853982
        %vm2936 = vcmp.eq.s32.totalorder %v2896, inf
        %vm2937 = vcmp.eq.s32.totalorder %v2897, inf
        %vm2938 = vmand %vm2936, %vm2937
        %v2939 = vsel %vm2938, %v2935, %v2933
        %v2940 = vand.u32 2147483647, %v2939
        %v2941 = vand.u32 %v1189, 2147483648
        %v2942 = vor.u32 %v2940, %v2941
        %v2943 = vand.u32 2147483647, %v422
        %v2944 = vand.u32 2147483647, %v1196
        %v2945 = vmin.f32 %v2943, %v2944
        %v2946 = vmax.f32 %v2943, %v2944
        %v2947 = vrcp.pop %v2946
        %v2948 = vmul.f32 %v2945, %v2947
        %v2949 = vmul.f32 %v2948, %v2948
        %v2950 = vmul.f32 0.002785687, %v2949
        %v2951 = vadd.f32 %v2950, -0.015866
        %v2952 = vmul.f32 %v2951, %v2949
        %v2953 = vadd.f32 %v2952, 0.04247222
        %v2954 = vmul.f32 %v2953, %v2949
        %v2955 = vadd.f32 %v2954, -0.074975304
        %v2956 = vmul.f32 %v2955, %v2949
        %v2957 = vadd.f32 %v2956, 0.1064488
        %v2958 = vmul.f32 %v2957, %v2949
        %v2959 = vadd.f32 %v2958, -0.14207031
        %v2960 = vmul.f32 %v2959, %v2949
        %v2961 = vadd.f32 %v2960, 0.19993454
        %v2962 = vmul.f32 %v2961, %v2949
        %v2963 = vadd.f32 %v2962, -0.33333147
        %v2964 = vmul.f32 %v2963, %v2949
        %v2965 = vmul.f32 %v2964, %v2948
        %v2966 = vadd.f32 %v2965, %v2948
        %vm2967 = vcmp.gt.f32.partialorder %v2944, %v2943
        %v2968 = vsub.f32 1.5707964, %v2966
        %v2969 = vsel %vm2967, %v2968, %v2966
        %vm2970 = vcmp.lt.f32.partialorder %v422, 0.0
        %v2971 = vsub.f32 3.1415927, %v2969
        %v2972 = vsel %vm2970, %v2971, %v2969
        %vm2973 = vcmp.lt.s32.totalorder %v422, 0
        %v2974 = vsel %vm2973, 3.1415927, 0.0
        %vm2975 = vcmp.eq.f32.partialorder %v1196, 0.0
        %v2976 = vsel %vm2975, %v2974, %v2972
        %vm2977 = vcmp.ne.f32.partialorder %v422, %v422
        %vm2978 = vcmp.ne.f32.partialorder %v1196, %v1196
        %vm2979 = vmor %vm2977, %vm2978
        %v2980 = vsel %vm2979, nan, %v2976
        %vm2981 = vcmp.lt.f32.partialorder %v422, 0.0
        %v2982 = vsel %vm2981, 2.3561945, 0.7853982
        %vm2983 = vcmp.eq.s32.totalorder %v2943, inf
        %vm2984 = vcmp.eq.s32.totalorder %v2944, inf
        %vm2985 = vmand %vm2983, %vm2984
        %v2986 = vsel %vm2985, %v2982, %v2980
        %v2987 = vand.u32 2147483647, %v2986
        %v2988 = vand.u32 %v1196, 2147483648
        %v2989 = vor.u32 %v2987, %v2988
        %v2990 = vand.u32 2147483647, %v423
        %v2991 = vand.u32 2147483647, %v1203
        %v2992 = vmin.f32 %v2990, %v2991
        %v2993 = vmax.f32 %v2990, %v2991
        %v2994 = vrcp.pop %v2993
        %v2995 = vmul.f32 %v2992, %v2994
        %v2996 = vmul.f32 %v2995, %v2995
        %v2997 = vmul.f32 0.002785687, %v2996
        %v2998 = vadd.f32 %v2997, -0.015866
        %v2999 = vmul.f32 %v2998, %v2996
        %v3000 = vadd.f32 %v2999, 0.04247222
        %v3001 = vmul.f32 %v3000, %v2996
        %v3002 = vadd.f32 %v3001, -0.074975304
        %v3003 = vmul.f32 %v3002, %v2996
        %v3004 = vadd.f32 %v3003, 0.1064488
        %v3005 = vmul.f32 %v3004, %v2996
        %v3006 = vadd.f32 %v3005, -0.14207031
        %v3007 = vmul.f32 %v3006, %v2996
        %v3008 = vadd.f32 %v3007, 0.19993454
        %v3009 = vmul.f32 %v3008, %v2996
        %v3010 = vadd.f32 %v3009, -0.33333147
        %v3011 = vmul.f32 %v3010, %v2996
        %v3012 = vmul.f32 %v3011, %v2995
        %v3013 = vadd.f32 %v3012, %v2995
        %vm3014 = vcmp.gt.f32.partialorder %v2991, %v2990
        %v3015 = vsub.f32 1.5707964, %v3013
        %v3016 = vsel %vm3014, %v3015, %v3013
        %vm3017 = vcmp.lt.f32.partialorder %v423, 0.0
        %v3018 = vsub.f32 3.1415927, %v3016
        %v3019 = vsel %vm3017, %v3018, %v3016
        %vm3020 = vcmp.lt.s32.totalorder %v423, 0
        %v3021 = vsel %vm3020, 3.1415927, 0.0
        %vm3022 = vcmp.eq.f32.partialorder %v1203, 0.0
        %v3023 = vsel %vm3022, %v3021, %v3019
        %vm3024 = vcmp.ne.f32.partialorder %v423, %v423
        %vm3025 = vcmp.ne.f32.partialorder %v1203, %v1203
        %vm3026 = vmor %vm3024, %vm3025
        %v3027 = vsel %vm3026, nan, %v3023
        %vm3028 = vcmp.lt.f32.partialorder %v423, 0.0
        %v3029 = vsel %vm3028, 2.3561945, 0.7853982
        %vm3030 = vcmp.eq.s32.totalorder %v2990, inf
        %vm3031 = vcmp.eq.s32.totalorder %v2991, inf
        %vm3032 = vmand %vm3030, %vm3031
        %v3033 = vsel %vm3032, %v3029, %v3027
        %v3034 = vand.u32 2147483647, %v3033
        %v3035 = vand.u32 %v1203, 2147483648
        %v3036 = vor.u32 %v3034, %v3035
        %s3037 = scalar_lea.vmem %s171, 312 [#allocation7]
        %3038 = vst [vmem:[%s3037] sm:$0xff] %v1250
        %3039 = vst [vmem:[%s3037 + $0x8] sm:$0xff] %v1297
        %3040 = vst [vmem:[%s3037 + $0x10] sm:$0xff] %v1344
        %3041 = vst [vmem:[%s3037 + $0x18] sm:$0xff] %v1391
        %3042 = vst [vmem:[%s3037 + $0x20] sm:$0xff] %v1438
        %3043 = vst [vmem:[%s3037 + $0x28] sm:$0xff] %v1485
        %3044 = vst [vmem:[%s3037 + $0x30] sm:$0xff] %v1532
        %3045 = vst [vmem:[%s3037 + $0x38] sm:$0xff] %v1579
        %3046 = vst [vmem:[%s3037 + $0x40] sm:$0xff] %v1626
        %3047 = vst [vmem:[%s3037 + $0x48] sm:$0xff] %v1673
        %3048 = vst [vmem:[%s3037 + $0x50] sm:$0xff] %v1720
        %3049 = vst [vmem:[%s3037 + $0x58] sm:$0xff] %v1767
        %3050 = vst [vmem:[%s3037 + $0x60] sm:$0xff] %v1814
        %3051 = vst [vmem:[%s3037 + $0x68] sm:$0xff] %v1861
        %3052 = vst [vmem:[%s3037 + $0x70] sm:$0xff] %v1908
        %3053 = vst [vmem:[%s3037 + $0x78] sm:$0xff] %v1955
        %3054 = vst [vmem:[%s3037 + $0x80] sm:$0xff] %v2002
        %3055 = vst [vmem:[%s3037 + $0x88] sm:$0xff] %v2049
        %3056 = vst [vmem:[%s3037 + $0x90] sm:$0xff] %v2096
        %3057 = vst [vmem:[%s3037 + $0x98] sm:$0xff] %v2143
        %3058 = vst [vmem:[%s3037 + $0xa0] sm:$0xff] %v2190
        %3059 = vst [vmem:[%s3037 + $0xa8] sm:$0xff] %v2237
        %3060 = vst [vmem:[%s3037 + $0xb0] sm:$0xff] %v2284
        %3061 = vst [vmem:[%s3037 + $0xb8] sm:$0xff] %v2331
        %3062 = vst [vmem:[%s3037 + $0xc0] sm:$0xff] %v2378
        %3063 = vst [vmem:[%s3037 + $0xc8] sm:$0xff] %v2425
        %3064 = vst [vmem:[%s3037 + $0xd0] sm:$0xff] %v2472
        %3065 = vst [vmem:[%s3037 + $0xd8] sm:$0xff] %v2519
        %3066 = vst [vmem:[%s3037 + $0xe0] sm:$0xff] %v2566
        %3067 = vst [vmem:[%s3037 + $0xe8] sm:$0xff] %v2613
        %3068 = vst [vmem:[%s3037 + $0xf0] sm:$0xff] %v2660
        %3069 = vst [vmem:[%s3037 + $0xf8] sm:$0xff] %v2707
        %3070 = vst [vmem:[%s3037 + $0x100] sm:$0xff] %v2754
        %3071 = vst [vmem:[%s3037 + $0x108] sm:$0xff] %v2801
        %3072 = vst [vmem:[%s3037 + $0x110] sm:$0xff] %v2848
        %3073 = vst [vmem:[%s3037 + $0x118] sm:$0xff] %v2895
        %3074 = vst [vmem:[%s3037 + $0x120] sm:$0xff] %v2942
        %3075 = vst [vmem:[%s3037 + $0x128] sm:$0xff] %v2989
        %3076 = vst [vmem:[%s3037 + $0x130] sm:$0xff] %v3036
        %v3077 = vand.u32 2147483647, %v223
        %v3078 = vand.u32 2147483647, %v304
        %v3079 = vmin.f32 %v3077, %v3078
        %v3080 = vmax.f32 %v3077, %v3078
        %v3081 = vrcp.pop %v3080
        %v3082 = vmul.f32 %v3079, %v3081
        %v3083 = vmul.f32 %v3082, %v3082
        %v3084 = vmul.f32 0.002785687, %v3083
        %v3085 = vadd.f32 %v3084, -0.015866
        %v3086 = vmul.f32 %v3085, %v3083
        %v3087 = vadd.f32 %v3086, 0.04247222
        %v3088 = vmul.f32 %v3087, %v3083
        %v3089 = vadd.f32 %v3088, -0.074975304
        %v3090 = vmul.f32 %v3089, %v3083
        %v3091 = vadd.f32 %v3090, 0.1064488
        %v3092 = vmul.f32 %v3091, %v3083
        %v3093 = vadd.f32 %v3092, -0.14207031
        %v3094 = vmul.f32 %v3093, %v3083
        %v3095 = vadd.f32 %v3094, 0.19993454
        %v3096 = vmul.f32 %v3095, %v3083
        %v3097 = vadd.f32 %v3096, -0.33333147
        %v3098 = vmul.f32 %v3097, %v3083
        %v3099 = vmul.f32 %v3098, %v3082
        %v3100 = vadd.f32 %v3099, %v3082
        %vm3101 = vcmp.gt.f32.partialorder %v3078, %v3077
        %v3102 = vsub.f32 1.5707964, %v3100
        %v3103 = vsel %vm3101, %v3102, %v3100
        %vm3104 = vcmp.lt.f32.partialorder %v223, 0.0
        %v3105 = vsub.f32 3.1415927, %v3103
        %v3106 = vsel %vm3104, %v3105, %v3103
        %vm3107 = vcmp.lt.s32.totalorder %v223, 0
        %v3108 = vsel %vm3107, 3.1415927, 0.0
        %vm3109 = vcmp.eq.f32.partialorder %v304, 0.0
        %v3110 = vsel %vm3109, %v3108, %v3106
        %vm3111 = vcmp.ne.f32.partialorder %v223, %v223
        %vm3112 = vcmp.ne.f32.partialorder %v304, %v304
        %vm3113 = vmor %vm3111, %vm3112
        %v3114 = vsel %vm3113, nan, %v3110
        %vm3115 = vcmp.lt.f32.partialorder %v223, 0.0
        %v3116 = vsel %vm3115, 2.3561945, 0.7853982
        %vm3117 = vcmp.eq.s32.totalorder %v3077, inf
        %vm3118 = vcmp.eq.s32.totalorder %v3078, inf
        %vm3119 = vmand %vm3117, %vm3118
        %v3120 = vsel %vm3119, %v3116, %v3114
        %v3121 = vand.u32 2147483647, %v3120
        %v3122 = vand.u32 %v304, 2147483648
        %v3123 = vor.u32 %v3121, %v3122
        %v3124 = vand.u32 2147483647, %v224
        %v3125 = vand.u32 2147483647, %v305
        %v3126 = vmin.f32 %v3124, %v3125
        %v3127 = vmax.f32 %v3124, %v3125
        %v3128 = vrcp.pop %v3127
        %v3129 = vmul.f32 %v3126, %v3128
        %v3130 = vmul.f32 %v3129, %v3129
        %v3131 = vmul.f32 0.002785687, %v3130
        %v3132 = vadd.f32 %v3131, -0.015866
        %v3133 = vmul.f32 %v3132, %v3130
        %v3134 = vadd.f32 %v3133, 0.04247222
        %v3135 = vmul.f32 %v3134, %v3130
        %v3136 = vadd.f32 %v3135, -0.074975304
        %v3137 = vmul.f32 %v3136, %v3130
        %v3138 = vadd.f32 %v3137, 0.1064488
        %v3139 = vmul.f32 %v3138, %v3130
        %v3140 = vadd.f32 %v3139, -0.14207031
        %v3141 = vmul.f32 %v3140, %v3130
        %v3142 = vadd.f32 %v3141, 0.19993454
        %v3143 = vmul.f32 %v3142, %v3130
        %v3144 = vadd.f32 %v3143, -0.33333147
        %v3145 = vmul.f32 %v3144, %v3130
        %v3146 = vmul.f32 %v3145, %v3129
        %v3147 = vadd.f32 %v3146, %v3129
        %vm3148 = vcmp.gt.f32.partialorder %v3125, %v3124
        %v3149 = vsub.f32 1.5707964, %v3147
        %v3150 = vsel %vm3148, %v3149, %v3147
        %vm3151 = vcmp.lt.f32.partialorder %v224, 0.0
        %v3152 = vsub.f32 3.1415927, %v3150
        %v3153 = vsel %vm3151, %v3152, %v3150
        %vm3154 = vcmp.lt.s32.totalorder %v224, 0
        %v3155 = vsel %vm3154, 3.1415927, 0.0
        %vm3156 = vcmp.eq.f32.partialorder %v305, 0.0
        %v3157 = vsel %vm3156, %v3155, %v3153
        %vm3158 = vcmp.ne.f32.partialorder %v224, %v224
        %vm3159 = vcmp.ne.f32.partialorder %v305, %v305
        %vm3160 = vmor %vm3158, %vm3159
        %v3161 = vsel %vm3160, nan, %v3157
        %vm3162 = vcmp.lt.f32.partialorder %v224, 0.0
        %v3163 = vsel %vm3162, 2.3561945, 0.7853982
        %vm3164 = vcmp.eq.s32.totalorder %v3124, inf
        %vm3165 = vcmp.eq.s32.totalorder %v3125, inf
        %vm3166 = vmand %vm3164, %vm3165
        %v3167 = vsel %vm3166, %v3163, %v3161
        %v3168 = vand.u32 2147483647, %v3167
        %v3169 = vand.u32 %v305, 2147483648
        %v3170 = vor.u32 %v3168, %v3169
        %v3171 = vand.u32 2147483647, %v225
        %v3172 = vand.u32 2147483647, %v306
        %v3173 = vmin.f32 %v3171, %v3172
        %v3174 = vmax.f32 %v3171, %v3172
        %v3175 = vrcp.pop %v3174
        %v3176 = vmul.f32 %v3173, %v3175
        %v3177 = vmul.f32 %v3176, %v3176
        %v3178 = vmul.f32 0.002785687, %v3177
        %v3179 = vadd.f32 %v3178, -0.015866
        %v3180 = vmul.f32 %v3179, %v3177
        %v3181 = vadd.f32 %v3180, 0.04247222
        %v3182 = vmul.f32 %v3181, %v3177
        %v3183 = vadd.f32 %v3182, -0.074975304
        %v3184 = vmul.f32 %v3183, %v3177
        %v3185 = vadd.f32 %v3184, 0.1064488
        %v3186 = vmul.f32 %v3185, %v3177
        %v3187 = vadd.f32 %v3186, -0.14207031
        %v3188 = vmul.f32 %v3187, %v3177
        %v3189 = vadd.f32 %v3188, 0.19993454
        %v3190 = vmul.f32 %v3189, %v3177
        %v3191 = vadd.f32 %v3190, -0.33333147
        %v3192 = vmul.f32 %v3191, %v3177
        %v3193 = vmul.f32 %v3192, %v3176
        %v3194 = vadd.f32 %v3193, %v3176
        %vm3195 = vcmp.gt.f32.partialorder %v3172, %v3171
        %v3196 = vsub.f32 1.5707964, %v3194
        %v3197 = vsel %vm3195, %v3196, %v3194
        %vm3198 = vcmp.lt.f32.partialorder %v225, 0.0
        %v3199 = vsub.f32 3.1415927, %v3197
        %v3200 = vsel %vm3198, %v3199, %v3197
        %vm3201 = vcmp.lt.s32.totalorder %v225, 0
        %v3202 = vsel %vm3201, 3.1415927, 0.0
        %vm3203 = vcmp.eq.f32.partialorder %v306, 0.0
        %v3204 = vsel %vm3203, %v3202, %v3200
        %vm3205 = vcmp.ne.f32.partialorder %v225, %v225
        %vm3206 = vcmp.ne.f32.partialorder %v306, %v306
        %vm3207 = vmor %vm3205, %vm3206
        %v3208 = vsel %vm3207, nan, %v3204
        %vm3209 = vcmp.lt.f32.partialorder %v225, 0.0
        %v3210 = vsel %vm3209, 2.3561945, 0.7853982
        %vm3211 = vcmp.eq.s32.totalorder %v3171, inf
        %vm3212 = vcmp.eq.s32.totalorder %v3172, inf
        %vm3213 = vmand %vm3211, %vm3212
        %v3214 = vsel %vm3213, %v3210, %v3208
        %v3215 = vand.u32 2147483647, %v3214
        %v3216 = vand.u32 %v306, 2147483648
        %v3217 = vor.u32 %v3215, %v3216
        %v3218 = vand.u32 2147483647, %v226
        %v3219 = vand.u32 2147483647, %v307
        %v3220 = vmin.f32 %v3218, %v3219
        %v3221 = vmax.f32 %v3218, %v3219
        %v3222 = vrcp.pop %v3221
        %v3223 = vmul.f32 %v3220, %v3222
        %v3224 = vmul.f32 %v3223, %v3223
        %v3225 = vmul.f32 0.002785687, %v3224
        %v3226 = vadd.f32 %v3225, -0.015866
        %v3227 = vmul.f32 %v3226, %v3224
        %v3228 = vadd.f32 %v3227, 0.04247222
        %v3229 = vmul.f32 %v3228, %v3224
        %v3230 = vadd.f32 %v3229, -0.074975304
        %v3231 = vmul.f32 %v3230, %v3224
        %v3232 = vadd.f32 %v3231, 0.1064488
        %v3233 = vmul.f32 %v3232, %v3224
        %v3234 = vadd.f32 %v3233, -0.14207031
        %v3235 = vmul.f32 %v3234, %v3224
        %v3236 = vadd.f32 %v3235, 0.19993454
        %v3237 = vmul.f32 %v3236, %v3224
        %v3238 = vadd.f32 %v3237, -0.33333147
        %v3239 = vmul.f32 %v3238, %v3224
        %v3240 = vmul.f32 %v3239, %v3223
        %v3241 = vadd.f32 %v3240, %v3223
        %vm3242 = vcmp.gt.f32.partialorder %v3219, %v3218
        %v3243 = vsub.f32 1.5707964, %v3241
        %v3244 = vsel %vm3242, %v3243, %v3241
        %vm3245 = vcmp.lt.f32.partialorder %v226, 0.0
        %v3246 = vsub.f32 3.1415927, %v3244
        %v3247 = vsel %vm3245, %v3246, %v3244
        %vm3248 = vcmp.lt.s32.totalorder %v226, 0
        %v3249 = vsel %vm3248, 3.1415927, 0.0
        %vm3250 = vcmp.eq.f32.partialorder %v307, 0.0
        %v3251 = vsel %vm3250, %v3249, %v3247
        %vm3252 = vcmp.ne.f32.partialorder %v226, %v226
        %vm3253 = vcmp.ne.f32.partialorder %v307, %v307
        %vm3254 = vmor %vm3252, %vm3253
        %v3255 = vsel %vm3254, nan, %v3251
        %vm3256 = vcmp.lt.f32.partialorder %v226, 0.0
        %v3257 = vsel %vm3256, 2.3561945, 0.7853982
        %vm3258 = vcmp.eq.s32.totalorder %v3218, inf
        %vm3259 = vcmp.eq.s32.totalorder %v3219, inf
        %vm3260 = vmand %vm3258, %vm3259
        %v3261 = vsel %vm3260, %v3257, %v3255
        %v3262 = vand.u32 2147483647, %v3261
        %v3263 = vand.u32 %v307, 2147483648
        %v3264 = vor.u32 %v3262, %v3263
        %v3265 = vand.u32 2147483647, %v227
        %v3266 = vand.u32 2147483647, %v308
        %v3267 = vmin.f32 %v3265, %v3266
        %v3268 = vmax.f32 %v3265, %v3266
        %v3269 = vrcp.pop %v3268
        %v3270 = vmul.f32 %v3267, %v3269
        %v3271 = vmul.f32 %v3270, %v3270
        %v3272 = vmul.f32 0.002785687, %v3271
        %v3273 = vadd.f32 %v3272, -0.015866
        %v3274 = vmul.f32 %v3273, %v3271
        %v3275 = vadd.f32 %v3274, 0.04247222
        %v3276 = vmul.f32 %v3275, %v3271
        %v3277 = vadd.f32 %v3276, -0.074975304
        %v3278 = vmul.f32 %v3277, %v3271
        %v3279 = vadd.f32 %v3278, 0.1064488
        %v3280 = vmul.f32 %v3279, %v3271
        %v3281 = vadd.f32 %v3280, -0.14207031
        %v3282 = vmul.f32 %v3281, %v3271
        %v3283 = vadd.f32 %v3282, 0.19993454
        %v3284 = vmul.f32 %v3283, %v3271
        %v3285 = vadd.f32 %v3284, -0.33333147
        %v3286 = vmul.f32 %v3285, %v3271
        %v3287 = vmul.f32 %v3286, %v3270
        %v3288 = vadd.f32 %v3287, %v3270
        %vm3289 = vcmp.gt.f32.partialorder %v3266, %v3265
        %v3290 = vsub.f32 1.5707964, %v3288
        %v3291 = vsel %vm3289, %v3290, %v3288
        %vm3292 = vcmp.lt.f32.partialorder %v227, 0.0
        %v3293 = vsub.f32 3.1415927, %v3291
        %v3294 = vsel %vm3292, %v3293, %v3291
        %vm3295 = vcmp.lt.s32.totalorder %v227, 0
        %v3296 = vsel %vm3295, 3.1415927, 0.0
        %vm3297 = vcmp.eq.f32.partialorder %v308, 0.0
        %v3298 = vsel %vm3297, %v3296, %v3294
        %vm3299 = vcmp.ne.f32.partialorder %v227, %v227
        %vm3300 = vcmp.ne.f32.partialorder %v308, %v308
        %vm3301 = vmor %vm3299, %vm3300
        %v3302 = vsel %vm3301, nan, %v3298
        %vm3303 = vcmp.lt.f32.partialorder %v227, 0.0
        %v3304 = vsel %vm3303, 2.3561945, 0.7853982
        %vm3305 = vcmp.eq.s32.totalorder %v3265, inf
        %vm3306 = vcmp.eq.s32.totalorder %v3266, inf
        %vm3307 = vmand %vm3305, %vm3306
        %v3308 = vsel %vm3307, %v3304, %v3302
        %v3309 = vand.u32 2147483647, %v3308
        %v3310 = vand.u32 %v308, 2147483648
        %v3311 = vor.u32 %v3309, %v3310
        %v3312 = vand.u32 2147483647, %v228
        %v3313 = vand.u32 2147483647, %v309
        %v3314 = vmin.f32 %v3312, %v3313
        %v3315 = vmax.f32 %v3312, %v3313
        %v3316 = vrcp.pop %v3315
        %v3317 = vmul.f32 %v3314, %v3316
        %v3318 = vmul.f32 %v3317, %v3317
        %v3319 = vmul.f32 0.002785687, %v3318
        %v3320 = vadd.f32 %v3319, -0.015866
        %v3321 = vmul.f32 %v3320, %v3318
        %v3322 = vadd.f32 %v3321, 0.04247222
        %v3323 = vmul.f32 %v3322, %v3318
        %v3324 = vadd.f32 %v3323, -0.074975304
        %v3325 = vmul.f32 %v3324, %v3318
        %v3326 = vadd.f32 %v3325, 0.1064488
        %v3327 = vmul.f32 %v3326, %v3318
        %v3328 = vadd.f32 %v3327, -0.14207031
        %v3329 = vmul.f32 %v3328, %v3318
        %v3330 = vadd.f32 %v3329, 0.19993454
        %v3331 = vmul.f32 %v3330, %v3318
        %v3332 = vadd.f32 %v3331, -0.33333147
        %v3333 = vmul.f32 %v3332, %v3318
        %v3334 = vmul.f32 %v3333, %v3317
        %v3335 = vadd.f32 %v3334, %v3317
        %vm3336 = vcmp.gt.f32.partialorder %v3313, %v3312
        %v3337 = vsub.f32 1.5707964, %v3335
        %v3338 = vsel %vm3336, %v3337, %v3335
        %vm3339 = vcmp.lt.f32.partialorder %v228, 0.0
        %v3340 = vsub.f32 3.1415927, %v3338
        %v3341 = vsel %vm3339, %v3340, %v3338
        %vm3342 = vcmp.lt.s32.totalorder %v228, 0
        %v3343 = vsel %vm3342, 3.1415927, 0.0
        %vm3344 = vcmp.eq.f32.partialorder %v309, 0.0
        %v3345 = vsel %vm3344, %v3343, %v3341
        %vm3346 = vcmp.ne.f32.partialorder %v228, %v228
        %vm3347 = vcmp.ne.f32.partialorder %v309, %v309
        %vm3348 = vmor %vm3346, %vm3347
        %v3349 = vsel %vm3348, nan, %v3345
        %vm3350 = vcmp.lt.f32.partialorder %v228, 0.0
        %v3351 = vsel %vm3350, 2.3561945, 0.7853982
        %vm3352 = vcmp.eq.s32.totalorder %v3312, inf
        %vm3353 = vcmp.eq.s32.totalorder %v3313, inf
        %vm3354 = vmand %vm3352, %vm3353
        %v3355 = vsel %vm3354, %v3351, %v3349
        %v3356 = vand.u32 2147483647, %v3355
        %v3357 = vand.u32 %v309, 2147483648
        %v3358 = vor.u32 %v3356, %v3357
        %v3359 = vand.u32 2147483647, %v229
        %v3360 = vand.u32 2147483647, %v310
        %v3361 = vmin.f32 %v3359, %v3360
        %v3362 = vmax.f32 %v3359, %v3360
        %v3363 = vrcp.pop %v3362
        %v3364 = vmul.f32 %v3361, %v3363
        %v3365 = vmul.f32 %v3364, %v3364
        %v3366 = vmul.f32 0.002785687, %v3365
        %v3367 = vadd.f32 %v3366, -0.015866
        %v3368 = vmul.f32 %v3367, %v3365
        %v3369 = vadd.f32 %v3368, 0.04247222
        %v3370 = vmul.f32 %v3369, %v3365
        %v3371 = vadd.f32 %v3370, -0.074975304
        %v3372 = vmul.f32 %v3371, %v3365
        %v3373 = vadd.f32 %v3372, 0.1064488
        %v3374 = vmul.f32 %v3373, %v3365
        %v3375 = vadd.f32 %v3374, -0.14207031
        %v3376 = vmul.f32 %v3375, %v3365
        %v3377 = vadd.f32 %v3376, 0.19993454
        %v3378 = vmul.f32 %v3377, %v3365
        %v3379 = vadd.f32 %v3378, -0.33333147
        %v3380 = vmul.f32 %v3379, %v3365
        %v3381 = vmul.f32 %v3380, %v3364
        %v3382 = vadd.f32 %v3381, %v3364
        %vm3383 = vcmp.gt.f32.partialorder %v3360, %v3359
        %v3384 = vsub.f32 1.5707964, %v3382
        %v3385 = vsel %vm3383, %v3384, %v3382
        %vm3386 = vcmp.lt.f32.partialorder %v229, 0.0
        %v3387 = vsub.f32 3.1415927, %v3385
        %v3388 = vsel %vm3386, %v3387, %v3385
        %vm3389 = vcmp.lt.s32.totalorder %v229, 0
        %v3390 = vsel %vm3389, 3.1415927, 0.0
        %vm3391 = vcmp.eq.f32.partialorder %v310, 0.0
        %v3392 = vsel %vm3391, %v3390, %v3388
        %vm3393 = vcmp.ne.f32.partialorder %v229, %v229
        %vm3394 = vcmp.ne.f32.partialorder %v310, %v310
        %vm3395 = vmor %vm3393, %vm3394
        %v3396 = vsel %vm3395, nan, %v3392
        %vm3397 = vcmp.lt.f32.partialorder %v229, 0.0
        %v3398 = vsel %vm3397, 2.3561945, 0.7853982
        %vm3399 = vcmp.eq.s32.totalorder %v3359, inf
        %vm3400 = vcmp.eq.s32.totalorder %v3360, inf
        %vm3401 = vmand %vm3399, %vm3400
        %v3402 = vsel %vm3401, %v3398, %v3396
        %v3403 = vand.u32 2147483647, %v3402
        %v3404 = vand.u32 %v310, 2147483648
        %v3405 = vor.u32 %v3403, %v3404
        %v3406 = vand.u32 2147483647, %v230
        %v3407 = vand.u32 2147483647, %v311
        %v3408 = vmin.f32 %v3406, %v3407
        %v3409 = vmax.f32 %v3406, %v3407
        %v3410 = vrcp.pop %v3409
        %v3411 = vmul.f32 %v3408, %v3410
        %v3412 = vmul.f32 %v3411, %v3411
        %v3413 = vmul.f32 0.002785687, %v3412
        %v3414 = vadd.f32 %v3413, -0.015866
        %v3415 = vmul.f32 %v3414, %v3412
        %v3416 = vadd.f32 %v3415, 0.04247222
        %v3417 = vmul.f32 %v3416, %v3412
        %v3418 = vadd.f32 %v3417, -0.074975304
        %v3419 = vmul.f32 %v3418, %v3412
        %v3420 = vadd.f32 %v3419, 0.1064488
        %v3421 = vmul.f32 %v3420, %v3412
        %v3422 = vadd.f32 %v3421, -0.14207031
        %v3423 = vmul.f32 %v3422, %v3412
        %v3424 = vadd.f32 %v3423, 0.19993454
        %v3425 = vmul.f32 %v3424, %v3412
        %v3426 = vadd.f32 %v3425, -0.33333147
        %v3427 = vmul.f32 %v3426, %v3412
        %v3428 = vmul.f32 %v3427, %v3411
        %v3429 = vadd.f32 %v3428, %v3411
        %vm3430 = vcmp.gt.f32.partialorder %v3407, %v3406
        %v3431 = vsub.f32 1.5707964, %v3429
        %v3432 = vsel %vm3430, %v3431, %v3429
        %vm3433 = vcmp.lt.f32.partialorder %v230, 0.0
        %v3434 = vsub.f32 3.1415927, %v3432
        %v3435 = vsel %vm3433, %v3434, %v3432
        %vm3436 = vcmp.lt.s32.totalorder %v230, 0
        %v3437 = vsel %vm3436, 3.1415927, 0.0
        %vm3438 = vcmp.eq.f32.partialorder %v311, 0.0
        %v3439 = vsel %vm3438, %v3437, %v3435
        %vm3440 = vcmp.ne.f32.partialorder %v230, %v230
        %vm3441 = vcmp.ne.f32.partialorder %v311, %v311
        %vm3442 = vmor %vm3440, %vm3441
        %v3443 = vsel %vm3442, nan, %v3439
        %vm3444 = vcmp.lt.f32.partialorder %v230, 0.0
        %v3445 = vsel %vm3444, 2.3561945, 0.7853982
        %vm3446 = vcmp.eq.s32.totalorder %v3406, inf
        %vm3447 = vcmp.eq.s32.totalorder %v3407, inf
        %vm3448 = vmand %vm3446, %vm3447
        %v3449 = vsel %vm3448, %v3445, %v3443
        %v3450 = vand.u32 2147483647, %v3449
        %v3451 = vand.u32 %v311, 2147483648
        %v3452 = vor.u32 %v3450, %v3451
        %v3453 = vand.u32 2147483647, %v231
        %v3454 = vand.u32 2147483647, %v312
        %v3455 = vmin.f32 %v3453, %v3454
        %v3456 = vmax.f32 %v3453, %v3454
        %v3457 = vrcp.pop %v3456
        %v3458 = vmul.f32 %v3455, %v3457
        %v3459 = vmul.f32 %v3458, %v3458
        %v3460 = vmul.f32 0.002785687, %v3459
        %v3461 = vadd.f32 %v3460, -0.015866
        %v3462 = vmul.f32 %v3461, %v3459
        %v3463 = vadd.f32 %v3462, 0.04247222
        %v3464 = vmul.f32 %v3463, %v3459
        %v3465 = vadd.f32 %v3464, -0.074975304
        %v3466 = vmul.f32 %v3465, %v3459
        %v3467 = vadd.f32 %v3466, 0.1064488
        %v3468 = vmul.f32 %v3467, %v3459
        %v3469 = vadd.f32 %v3468, -0.14207031
        %v3470 = vmul.f32 %v3469, %v3459
        %v3471 = vadd.f32 %v3470, 0.19993454
        %v3472 = vmul.f32 %v3471, %v3459
        %v3473 = vadd.f32 %v3472, -0.33333147
        %v3474 = vmul.f32 %v3473, %v3459
        %v3475 = vmul.f32 %v3474, %v3458
        %v3476 = vadd.f32 %v3475, %v3458
        %vm3477 = vcmp.gt.f32.partialorder %v3454, %v3453
        %v3478 = vsub.f32 1.5707964, %v3476
        %v3479 = vsel %vm3477, %v3478, %v3476
        %vm3480 = vcmp.lt.f32.partialorder %v231, 0.0
        %v3481 = vsub.f32 3.1415927, %v3479
        %v3482 = vsel %vm3480, %v3481, %v3479
        %vm3483 = vcmp.lt.s32.totalorder %v231, 0
        %v3484 = vsel %vm3483, 3.1415927, 0.0
        %vm3485 = vcmp.eq.f32.partialorder %v312, 0.0
        %v3486 = vsel %vm3485, %v3484, %v3482
        %vm3487 = vcmp.ne.f32.partialorder %v231, %v231
        %vm3488 = vcmp.ne.f32.partialorder %v312, %v312
        %vm3489 = vmor %vm3487, %vm3488
        %v3490 = vsel %vm3489, nan, %v3486
        %vm3491 = vcmp.lt.f32.partialorder %v231, 0.0
        %v3492 = vsel %vm3491, 2.3561945, 0.7853982
        %vm3493 = vcmp.eq.s32.totalorder %v3453, inf
        %vm3494 = vcmp.eq.s32.totalorder %v3454, inf
        %vm3495 = vmand %vm3493, %vm3494
        %v3496 = vsel %vm3495, %v3492, %v3490
        %v3497 = vand.u32 2147483647, %v3496
        %v3498 = vand.u32 %v312, 2147483648
        %v3499 = vor.u32 %v3497, %v3498
        %v3500 = vand.u32 2147483647, %v232
        %v3501 = vand.u32 2147483647, %v313
        %v3502 = vmin.f32 %v3500, %v3501
        %v3503 = vmax.f32 %v3500, %v3501
        %v3504 = vrcp.pop %v3503
        %v3505 = vmul.f32 %v3502, %v3504
        %v3506 = vmul.f32 %v3505, %v3505
        %v3507 = vmul.f32 0.002785687, %v3506
        %v3508 = vadd.f32 %v3507, -0.015866
        %v3509 = vmul.f32 %v3508, %v3506
        %v3510 = vadd.f32 %v3509, 0.04247222
        %v3511 = vmul.f32 %v3510, %v3506
        %v3512 = vadd.f32 %v3511, -0.074975304
        %v3513 = vmul.f32 %v3512, %v3506
        %v3514 = vadd.f32 %v3513, 0.1064488
        %v3515 = vmul.f32 %v3514, %v3506
        %v3516 = vadd.f32 %v3515, -0.14207031
        %v3517 = vmul.f32 %v3516, %v3506
        %v3518 = vadd.f32 %v3517, 0.19993454
        %v3519 = vmul.f32 %v3518, %v3506
        %v3520 = vadd.f32 %v3519, -0.33333147
        %v3521 = vmul.f32 %v3520, %v3506
        %v3522 = vmul.f32 %v3521, %v3505
        %v3523 = vadd.f32 %v3522, %v3505
        %vm3524 = vcmp.gt.f32.partialorder %v3501, %v3500
        %v3525 = vsub.f32 1.5707964, %v3523
        %v3526 = vsel %vm3524, %v3525, %v3523
        %vm3527 = vcmp.lt.f32.partialorder %v232, 0.0
        %v3528 = vsub.f32 3.1415927, %v3526
        %v3529 = vsel %vm3527, %v3528, %v3526
        %vm3530 = vcmp.lt.s32.totalorder %v232, 0
        %v3531 = vsel %vm3530, 3.1415927, 0.0
        %vm3532 = vcmp.eq.f32.partialorder %v313, 0.0
        %v3533 = vsel %vm3532, %v3531, %v3529
        %vm3534 = vcmp.ne.f32.partialorder %v232, %v232
        %vm3535 = vcmp.ne.f32.partialorder %v313, %v313
        %vm3536 = vmor %vm3534, %vm3535
        %v3537 = vsel %vm3536, nan, %v3533
        %vm3538 = vcmp.lt.f32.partialorder %v232, 0.0
        %v3539 = vsel %vm3538, 2.3561945, 0.7853982
        %vm3540 = vcmp.eq.s32.totalorder %v3500, inf
        %vm3541 = vcmp.eq.s32.totalorder %v3501, inf
        %vm3542 = vmand %vm3540, %vm3541
        %v3543 = vsel %vm3542, %v3539, %v3537
        %v3544 = vand.u32 2147483647, %v3543
        %v3545 = vand.u32 %v313, 2147483648
        %v3546 = vor.u32 %v3544, %v3545
        %v3547 = vand.u32 2147483647, %v233
        %v3548 = vand.u32 2147483647, %v314
        %v3549 = vmin.f32 %v3547, %v3548
        %v3550 = vmax.f32 %v3547, %v3548
        %v3551 = vrcp.pop %v3550
        %v3552 = vmul.f32 %v3549, %v3551
        %v3553 = vmul.f32 %v3552, %v3552
        %v3554 = vmul.f32 0.002785687, %v3553
        %v3555 = vadd.f32 %v3554, -0.015866
        %v3556 = vmul.f32 %v3555, %v3553
        %v3557 = vadd.f32 %v3556, 0.04247222
        %v3558 = vmul.f32 %v3557, %v3553
        %v3559 = vadd.f32 %v3558, -0.074975304
        %v3560 = vmul.f32 %v3559, %v3553
        %v3561 = vadd.f32 %v3560, 0.1064488
        %v3562 = vmul.f32 %v3561, %v3553
        %v3563 = vadd.f32 %v3562, -0.14207031
        %v3564 = vmul.f32 %v3563, %v3553
        %v3565 = vadd.f32 %v3564, 0.19993454
        %v3566 = vmul.f32 %v3565, %v3553
        %v3567 = vadd.f32 %v3566, -0.33333147
        %v3568 = vmul.f32 %v3567, %v3553
        %v3569 = vmul.f32 %v3568, %v3552
        %v3570 = vadd.f32 %v3569, %v3552
        %vm3571 = vcmp.gt.f32.partialorder %v3548, %v3547
        %v3572 = vsub.f32 1.5707964, %v3570
        %v3573 = vsel %vm3571, %v3572, %v3570
        %vm3574 = vcmp.lt.f32.partialorder %v233, 0.0
        %v3575 = vsub.f32 3.1415927, %v3573
        %v3576 = vsel %vm3574, %v3575, %v3573
        %vm3577 = vcmp.lt.s32.totalorder %v233, 0
        %v3578 = vsel %vm3577, 3.1415927, 0.0
        %vm3579 = vcmp.eq.f32.partialorder %v314, 0.0
        %v3580 = vsel %vm3579, %v3578, %v3576
        %vm3581 = vcmp.ne.f32.partialorder %v233, %v233
        %vm3582 = vcmp.ne.f32.partialorder %v314, %v314
        %vm3583 = vmor %vm3581, %vm3582
        %v3584 = vsel %vm3583, nan, %v3580
        %vm3585 = vcmp.lt.f32.partialorder %v233, 0.0
        %v3586 = vsel %vm3585, 2.3561945, 0.7853982
        %vm3587 = vcmp.eq.s32.totalorder %v3547, inf
        %vm3588 = vcmp.eq.s32.totalorder %v3548, inf
        %vm3589 = vmand %vm3587, %vm3588
        %v3590 = vsel %vm3589, %v3586, %v3584
        %v3591 = vand.u32 2147483647, %v3590
        %v3592 = vand.u32 %v314, 2147483648
        %v3593 = vor.u32 %v3591, %v3592
        %v3594 = vand.u32 2147483647, %v234
        %v3595 = vand.u32 2147483647, %v315
        %v3596 = vmin.f32 %v3594, %v3595
        %v3597 = vmax.f32 %v3594, %v3595
        %v3598 = vrcp.pop %v3597
        %v3599 = vmul.f32 %v3596, %v3598
        %v3600 = vmul.f32 %v3599, %v3599
        %v3601 = vmul.f32 0.002785687, %v3600
        %v3602 = vadd.f32 %v3601, -0.015866
        %v3603 = vmul.f32 %v3602, %v3600
        %v3604 = vadd.f32 %v3603, 0.04247222
        %v3605 = vmul.f32 %v3604, %v3600
        %v3606 = vadd.f32 %v3605, -0.074975304
        %v3607 = vmul.f32 %v3606, %v3600
        %v3608 = vadd.f32 %v3607, 0.1064488
        %v3609 = vmul.f32 %v3608, %v3600
        %v3610 = vadd.f32 %v3609, -0.14207031
        %v3611 = vmul.f32 %v3610, %v3600
        %v3612 = vadd.f32 %v3611, 0.19993454
        %v3613 = vmul.f32 %v3612, %v3600
        %v3614 = vadd.f32 %v3613, -0.33333147
        %v3615 = vmul.f32 %v3614, %v3600
        %v3616 = vmul.f32 %v3615, %v3599
        %v3617 = vadd.f32 %v3616, %v3599
        %vm3618 = vcmp.gt.f32.partialorder %v3595, %v3594
        %v3619 = vsub.f32 1.5707964, %v3617
        %v3620 = vsel %vm3618, %v3619, %v3617
        %vm3621 = vcmp.lt.f32.partialorder %v234, 0.0
        %v3622 = vsub.f32 3.1415927, %v3620
        %v3623 = vsel %vm3621, %v3622, %v3620
        %vm3624 = vcmp.lt.s32.totalorder %v234, 0
        %v3625 = vsel %vm3624, 3.1415927, 0.0
        %vm3626 = vcmp.eq.f32.partialorder %v315, 0.0
        %v3627 = vsel %vm3626, %v3625, %v3623
        %vm3628 = vcmp.ne.f32.partialorder %v234, %v234
        %vm3629 = vcmp.ne.f32.partialorder %v315, %v315
        %vm3630 = vmor %vm3628, %vm3629
        %v3631 = vsel %vm3630, nan, %v3627
        %vm3632 = vcmp.lt.f32.partialorder %v234, 0.0
        %v3633 = vsel %vm3632, 2.3561945, 0.7853982
        %vm3634 = vcmp.eq.s32.totalorder %v3594, inf
        %vm3635 = vcmp.eq.s32.totalorder %v3595, inf
        %vm3636 = vmand %vm3634, %vm3635
        %v3637 = vsel %vm3636, %v3633, %v3631
        %v3638 = vand.u32 2147483647, %v3637
        %v3639 = vand.u32 %v315, 2147483648
        %v3640 = vor.u32 %v3638, %v3639
        %v3641 = vand.u32 2147483647, %v235
        %v3642 = vand.u32 2147483647, %v316
        %v3643 = vmin.f32 %v3641, %v3642
        %v3644 = vmax.f32 %v3641, %v3642
        %v3645 = vrcp.pop %v3644
        %v3646 = vmul.f32 %v3643, %v3645
        %v3647 = vmul.f32 %v3646, %v3646
        %v3648 = vmul.f32 0.002785687, %v3647
        %v3649 = vadd.f32 %v3648, -0.015866
        %v3650 = vmul.f32 %v3649, %v3647
        %v3651 = vadd.f32 %v3650, 0.04247222
        %v3652 = vmul.f32 %v3651, %v3647
        %v3653 = vadd.f32 %v3652, -0.074975304
        %v3654 = vmul.f32 %v3653, %v3647
        %v3655 = vadd.f32 %v3654, 0.1064488
        %v3656 = vmul.f32 %v3655, %v3647
        %v3657 = vadd.f32 %v3656, -0.14207031
        %v3658 = vmul.f32 %v3657, %v3647
        %v3659 = vadd.f32 %v3658, 0.19993454
        %v3660 = vmul.f32 %v3659, %v3647
        %v3661 = vadd.f32 %v3660, -0.33333147
        %v3662 = vmul.f32 %v3661, %v3647
        %v3663 = vmul.f32 %v3662, %v3646
        %v3664 = vadd.f32 %v3663, %v3646
        %vm3665 = vcmp.gt.f32.partialorder %v3642, %v3641
        %v3666 = vsub.f32 1.5707964, %v3664
        %v3667 = vsel %vm3665, %v3666, %v3664
        %vm3668 = vcmp.lt.f32.partialorder %v235, 0.0
        %v3669 = vsub.f32 3.1415927, %v3667
        %v3670 = vsel %vm3668, %v3669, %v3667
        %vm3671 = vcmp.lt.s32.totalorder %v235, 0
        %v3672 = vsel %vm3671, 3.1415927, 0.0
        %vm3673 = vcmp.eq.f32.partialorder %v316, 0.0
        %v3674 = vsel %vm3673, %v3672, %v3670
        %vm3675 = vcmp.ne.f32.partialorder %v235, %v235
        %vm3676 = vcmp.ne.f32.partialorder %v316, %v316
        %vm3677 = vmor %vm3675, %vm3676
        %v3678 = vsel %vm3677, nan, %v3674
        %vm3679 = vcmp.lt.f32.partialorder %v235, 0.0
        %v3680 = vsel %vm3679, 2.3561945, 0.7853982
        %vm3681 = vcmp.eq.s32.totalorder %v3641, inf
        %vm3682 = vcmp.eq.s32.totalorder %v3642, inf
        %vm3683 = vmand %vm3681, %vm3682
        %v3684 = vsel %vm3683, %v3680, %v3678
        %v3685 = vand.u32 2147483647, %v3684
        %v3686 = vand.u32 %v316, 2147483648
        %v3687 = vor.u32 %v3685, %v3686
        %v3688 = vand.u32 2147483647, %v236
        %v3689 = vand.u32 2147483647, %v317
        %v3690 = vmin.f32 %v3688, %v3689
        %v3691 = vmax.f32 %v3688, %v3689
        %v3692 = vrcp.pop %v3691
        %v3693 = vmul.f32 %v3690, %v3692
        %v3694 = vmul.f32 %v3693, %v3693
        %v3695 = vmul.f32 0.002785687, %v3694
        %v3696 = vadd.f32 %v3695, -0.015866
        %v3697 = vmul.f32 %v3696, %v3694
        %v3698 = vadd.f32 %v3697, 0.04247222
        %v3699 = vmul.f32 %v3698, %v3694
        %v3700 = vadd.f32 %v3699, -0.074975304
        %v3701 = vmul.f32 %v3700, %v3694
        %v3702 = vadd.f32 %v3701, 0.1064488
        %v3703 = vmul.f32 %v3702, %v3694
        %v3704 = vadd.f32 %v3703, -0.14207031
        %v3705 = vmul.f32 %v3704, %v3694
        %v3706 = vadd.f32 %v3705, 0.19993454
        %v3707 = vmul.f32 %v3706, %v3694
        %v3708 = vadd.f32 %v3707, -0.33333147
        %v3709 = vmul.f32 %v3708, %v3694
        %v3710 = vmul.f32 %v3709, %v3693
        %v3711 = vadd.f32 %v3710, %v3693
        %vm3712 = vcmp.gt.f32.partialorder %v3689, %v3688
        %v3713 = vsub.f32 1.5707964, %v3711
        %v3714 = vsel %vm3712, %v3713, %v3711
        %vm3715 = vcmp.lt.f32.partialorder %v236, 0.0
        %v3716 = vsub.f32 3.1415927, %v3714
        %v3717 = vsel %vm3715, %v3716, %v3714
        %vm3718 = vcmp.lt.s32.totalorder %v236, 0
        %v3719 = vsel %vm3718, 3.1415927, 0.0
        %vm3720 = vcmp.eq.f32.partialorder %v317, 0.0
        %v3721 = vsel %vm3720, %v3719, %v3717
        %vm3722 = vcmp.ne.f32.partialorder %v236, %v236
        %vm3723 = vcmp.ne.f32.partialorder %v317, %v317
        %vm3724 = vmor %vm3722, %vm3723
        %v3725 = vsel %vm3724, nan, %v3721
        %vm3726 = vcmp.lt.f32.partialorder %v236, 0.0
        %v3727 = vsel %vm3726, 2.3561945, 0.7853982
        %vm3728 = vcmp.eq.s32.totalorder %v3688, inf
        %vm3729 = vcmp.eq.s32.totalorder %v3689, inf
        %vm3730 = vmand %vm3728, %vm3729
        %v3731 = vsel %vm3730, %v3727, %v3725
        %v3732 = vand.u32 2147483647, %v3731
        %v3733 = vand.u32 %v317, 2147483648
        %v3734 = vor.u32 %v3732, %v3733
        %v3735 = vand.u32 2147483647, %v237
        %v3736 = vand.u32 2147483647, %v318
        %v3737 = vmin.f32 %v3735, %v3736
        %v3738 = vmax.f32 %v3735, %v3736
        %v3739 = vrcp.pop %v3738
        %v3740 = vmul.f32 %v3737, %v3739
        %v3741 = vmul.f32 %v3740, %v3740
        %v3742 = vmul.f32 0.002785687, %v3741
        %v3743 = vadd.f32 %v3742, -0.015866
        %v3744 = vmul.f32 %v3743, %v3741
        %v3745 = vadd.f32 %v3744, 0.04247222
        %v3746 = vmul.f32 %v3745, %v3741
        %v3747 = vadd.f32 %v3746, -0.074975304
        %v3748 = vmul.f32 %v3747, %v3741
        %v3749 = vadd.f32 %v3748, 0.1064488
        %v3750 = vmul.f32 %v3749, %v3741
        %v3751 = vadd.f32 %v3750, -0.14207031
        %v3752 = vmul.f32 %v3751, %v3741
        %v3753 = vadd.f32 %v3752, 0.19993454
        %v3754 = vmul.f32 %v3753, %v3741
        %v3755 = vadd.f32 %v3754, -0.33333147
        %v3756 = vmul.f32 %v3755, %v3741
        %v3757 = vmul.f32 %v3756, %v3740
        %v3758 = vadd.f32 %v3757, %v3740
        %vm3759 = vcmp.gt.f32.partialorder %v3736, %v3735
        %v3760 = vsub.f32 1.5707964, %v3758
        %v3761 = vsel %vm3759, %v3760, %v3758
        %vm3762 = vcmp.lt.f32.partialorder %v237, 0.0
        %v3763 = vsub.f32 3.1415927, %v3761
        %v3764 = vsel %vm3762, %v3763, %v3761
        %vm3765 = vcmp.lt.s32.totalorder %v237, 0
        %v3766 = vsel %vm3765, 3.1415927, 0.0
        %vm3767 = vcmp.eq.f32.partialorder %v318, 0.0
        %v3768 = vsel %vm3767, %v3766, %v3764
        %vm3769 = vcmp.ne.f32.partialorder %v237, %v237
        %vm3770 = vcmp.ne.f32.partialorder %v318, %v318
        %vm3771 = vmor %vm3769, %vm3770
        %v3772 = vsel %vm3771, nan, %v3768
        %vm3773 = vcmp.lt.f32.partialorder %v237, 0.0
        %v3774 = vsel %vm3773, 2.3561945, 0.7853982
        %vm3775 = vcmp.eq.s32.totalorder %v3735, inf
        %vm3776 = vcmp.eq.s32.totalorder %v3736, inf
        %vm3777 = vmand %vm3775, %vm3776
        %v3778 = vsel %vm3777, %v3774, %v3772
        %v3779 = vand.u32 2147483647, %v3778
        %v3780 = vand.u32 %v318, 2147483648
        %v3781 = vor.u32 %v3779, %v3780
        %v3782 = vand.u32 2147483647, %v238
        %v3783 = vand.u32 2147483647, %v319
        %v3784 = vmin.f32 %v3782, %v3783
        %v3785 = vmax.f32 %v3782, %v3783
        %v3786 = vrcp.pop %v3785
        %v3787 = vmul.f32 %v3784, %v3786
        %v3788 = vmul.f32 %v3787, %v3787
        %v3789 = vmul.f32 0.002785687, %v3788
        %v3790 = vadd.f32 %v3789, -0.015866
        %v3791 = vmul.f32 %v3790, %v3788
        %v3792 = vadd.f32 %v3791, 0.04247222
        %v3793 = vmul.f32 %v3792, %v3788
        %v3794 = vadd.f32 %v3793, -0.074975304
        %v3795 = vmul.f32 %v3794, %v3788
        %v3796 = vadd.f32 %v3795, 0.1064488
        %v3797 = vmul.f32 %v3796, %v3788
        %v3798 = vadd.f32 %v3797, -0.14207031
        %v3799 = vmul.f32 %v3798, %v3788
        %v3800 = vadd.f32 %v3799, 0.19993454
        %v3801 = vmul.f32 %v3800, %v3788
        %v3802 = vadd.f32 %v3801, -0.33333147
        %v3803 = vmul.f32 %v3802, %v3788
        %v3804 = vmul.f32 %v3803, %v3787
        %v3805 = vadd.f32 %v3804, %v3787
        %vm3806 = vcmp.gt.f32.partialorder %v3783, %v3782
        %v3807 = vsub.f32 1.5707964, %v3805
        %v3808 = vsel %vm3806, %v3807, %v3805
        %vm3809 = vcmp.lt.f32.partialorder %v238, 0.0
        %v3810 = vsub.f32 3.1415927, %v3808
        %v3811 = vsel %vm3809, %v3810, %v3808
        %vm3812 = vcmp.lt.s32.totalorder %v238, 0
        %v3813 = vsel %vm3812, 3.1415927, 0.0
        %vm3814 = vcmp.eq.f32.partialorder %v319, 0.0
        %v3815 = vsel %vm3814, %v3813, %v3811
        %vm3816 = vcmp.ne.f32.partialorder %v238, %v238
        %vm3817 = vcmp.ne.f32.partialorder %v319, %v319
        %vm3818 = vmor %vm3816, %vm3817
        %v3819 = vsel %vm3818, nan, %v3815
        %vm3820 = vcmp.lt.f32.partialorder %v238, 0.0
        %v3821 = vsel %vm3820, 2.3561945, 0.7853982
        %vm3822 = vcmp.eq.s32.totalorder %v3782, inf
        %vm3823 = vcmp.eq.s32.totalorder %v3783, inf
        %vm3824 = vmand %vm3822, %vm3823
        %v3825 = vsel %vm3824, %v3821, %v3819
        %v3826 = vand.u32 2147483647, %v3825
        %v3827 = vand.u32 %v319, 2147483648
        %v3828 = vor.u32 %v3826, %v3827
        %v3829 = vand.u32 2147483647, %v239
        %v3830 = vand.u32 2147483647, %v320
        %v3831 = vmin.f32 %v3829, %v3830
        %v3832 = vmax.f32 %v3829, %v3830
        %v3833 = vrcp.pop %v3832
        %v3834 = vmul.f32 %v3831, %v3833
        %v3835 = vmul.f32 %v3834, %v3834
        %v3836 = vmul.f32 0.002785687, %v3835
        %v3837 = vadd.f32 %v3836, -0.015866
        %v3838 = vmul.f32 %v3837, %v3835
        %v3839 = vadd.f32 %v3838, 0.04247222
        %v3840 = vmul.f32 %v3839, %v3835
        %v3841 = vadd.f32 %v3840, -0.074975304
        %v3842 = vmul.f32 %v3841, %v3835
        %v3843 = vadd.f32 %v3842, 0.1064488
        %v3844 = vmul.f32 %v3843, %v3835
        %v3845 = vadd.f32 %v3844, -0.14207031
        %v3846 = vmul.f32 %v3845, %v3835
        %v3847 = vadd.f32 %v3846, 0.19993454
        %v3848 = vmul.f32 %v3847, %v3835
        %v3849 = vadd.f32 %v3848, -0.33333147
        %v3850 = vmul.f32 %v3849, %v3835
        %v3851 = vmul.f32 %v3850, %v3834
        %v3852 = vadd.f32 %v3851, %v3834
        %vm3853 = vcmp.gt.f32.partialorder %v3830, %v3829
        %v3854 = vsub.f32 1.5707964, %v3852
        %v3855 = vsel %vm3853, %v3854, %v3852
        %vm3856 = vcmp.lt.f32.partialorder %v239, 0.0
        %v3857 = vsub.f32 3.1415927, %v3855
        %v3858 = vsel %vm3856, %v3857, %v3855
        %vm3859 = vcmp.lt.s32.totalorder %v239, 0
        %v3860 = vsel %vm3859, 3.1415927, 0.0
        %vm3861 = vcmp.eq.f32.partialorder %v320, 0.0
        %v3862 = vsel %vm3861, %v3860, %v3858
        %vm3863 = vcmp.ne.f32.partialorder %v239, %v239
        %vm3864 = vcmp.ne.f32.partialorder %v320, %v320
        %vm3865 = vmor %vm3863, %vm3864
        %v3866 = vsel %vm3865, nan, %v3862
        %vm3867 = vcmp.lt.f32.partialorder %v239, 0.0
        %v3868 = vsel %vm3867, 2.3561945, 0.7853982
        %vm3869 = vcmp.eq.s32.totalorder %v3829, inf
        %vm3870 = vcmp.eq.s32.totalorder %v3830, inf
        %vm3871 = vmand %vm3869, %vm3870
        %v3872 = vsel %vm3871, %v3868, %v3866
        %v3873 = vand.u32 2147483647, %v3872
        %v3874 = vand.u32 %v320, 2147483648
        %v3875 = vor.u32 %v3873, %v3874
        %v3876 = vand.u32 2147483647, %v240
        %v3877 = vand.u32 2147483647, %v321
        %v3878 = vmin.f32 %v3876, %v3877
        %v3879 = vmax.f32 %v3876, %v3877
        %v3880 = vrcp.pop %v3879
        %v3881 = vmul.f32 %v3878, %v3880
        %v3882 = vmul.f32 %v3881, %v3881
        %v3883 = vmul.f32 0.002785687, %v3882
        %v3884 = vadd.f32 %v3883, -0.015866
        %v3885 = vmul.f32 %v3884, %v3882
        %v3886 = vadd.f32 %v3885, 0.04247222
        %v3887 = vmul.f32 %v3886, %v3882
        %v3888 = vadd.f32 %v3887, -0.074975304
        %v3889 = vmul.f32 %v3888, %v3882
        %v3890 = vadd.f32 %v3889, 0.1064488
        %v3891 = vmul.f32 %v3890, %v3882
        %v3892 = vadd.f32 %v3891, -0.14207031
        %v3893 = vmul.f32 %v3892, %v3882
        %v3894 = vadd.f32 %v3893, 0.19993454
        %v3895 = vmul.f32 %v3894, %v3882
        %v3896 = vadd.f32 %v3895, -0.33333147
        %v3897 = vmul.f32 %v3896, %v3882
        %v3898 = vmul.f32 %v3897, %v3881
        %v3899 = vadd.f32 %v3898, %v3881
        %vm3900 = vcmp.gt.f32.partialorder %v3877, %v3876
        %v3901 = vsub.f32 1.5707964, %v3899
        %v3902 = vsel %vm3900, %v3901, %v3899
        %vm3903 = vcmp.lt.f32.partialorder %v240, 0.0
        %v3904 = vsub.f32 3.1415927, %v3902
        %v3905 = vsel %vm3903, %v3904, %v3902
        %vm3906 = vcmp.lt.s32.totalorder %v240, 0
        %v3907 = vsel %vm3906, 3.1415927, 0.0
        %vm3908 = vcmp.eq.f32.partialorder %v321, 0.0
        %v3909 = vsel %vm3908, %v3907, %v3905
        %vm3910 = vcmp.ne.f32.partialorder %v240, %v240
        %vm3911 = vcmp.ne.f32.partialorder %v321, %v321
        %vm3912 = vmor %vm3910, %vm3911
        %v3913 = vsel %vm3912, nan, %v3909
        %vm3914 = vcmp.lt.f32.partialorder %v240, 0.0
        %v3915 = vsel %vm3914, 2.3561945, 0.7853982
        %vm3916 = vcmp.eq.s32.totalorder %v3876, inf
        %vm3917 = vcmp.eq.s32.totalorder %v3877, inf
        %vm3918 = vmand %vm3916, %vm3917
        %v3919 = vsel %vm3918, %v3915, %v3913
        %v3920 = vand.u32 2147483647, %v3919
        %v3921 = vand.u32 %v321, 2147483648
        %v3922 = vor.u32 %v3920, %v3921
        %v3923 = vand.u32 2147483647, %v241
        %v3924 = vand.u32 2147483647, %v322
        %v3925 = vmin.f32 %v3923, %v3924
        %v3926 = vmax.f32 %v3923, %v3924
        %v3927 = vrcp.pop %v3926
        %v3928 = vmul.f32 %v3925, %v3927
        %v3929 = vmul.f32 %v3928, %v3928
        %v3930 = vmul.f32 0.002785687, %v3929
        %v3931 = vadd.f32 %v3930, -0.015866
        %v3932 = vmul.f32 %v3931, %v3929
        %v3933 = vadd.f32 %v3932, 0.04247222
        %v3934 = vmul.f32 %v3933, %v3929
        %v3935 = vadd.f32 %v3934, -0.074975304
        %v3936 = vmul.f32 %v3935, %v3929
        %v3937 = vadd.f32 %v3936, 0.1064488
        %v3938 = vmul.f32 %v3937, %v3929
        %v3939 = vadd.f32 %v3938, -0.14207031
        %v3940 = vmul.f32 %v3939, %v3929
        %v3941 = vadd.f32 %v3940, 0.19993454
        %v3942 = vmul.f32 %v3941, %v3929
        %v3943 = vadd.f32 %v3942, -0.33333147
        %v3944 = vmul.f32 %v3943, %v3929
        %v3945 = vmul.f32 %v3944, %v3928
        %v3946 = vadd.f32 %v3945, %v3928
        %vm3947 = vcmp.gt.f32.partialorder %v3924, %v3923
        %v3948 = vsub.f32 1.5707964, %v3946
        %v3949 = vsel %vm3947, %v3948, %v3946
        %vm3950 = vcmp.lt.f32.partialorder %v241, 0.0
        %v3951 = vsub.f32 3.1415927, %v3949
        %v3952 = vsel %vm3950, %v3951, %v3949
        %vm3953 = vcmp.lt.s32.totalorder %v241, 0
        %v3954 = vsel %vm3953, 3.1415927, 0.0
        %vm3955 = vcmp.eq.f32.partialorder %v322, 0.0
        %v3956 = vsel %vm3955, %v3954, %v3952
        %vm3957 = vcmp.ne.f32.partialorder %v241, %v241
        %vm3958 = vcmp.ne.f32.partialorder %v322, %v322
        %vm3959 = vmor %vm3957, %vm3958
        %v3960 = vsel %vm3959, nan, %v3956
        %vm3961 = vcmp.lt.f32.partialorder %v241, 0.0
        %v3962 = vsel %vm3961, 2.3561945, 0.7853982
        %vm3963 = vcmp.eq.s32.totalorder %v3923, inf
        %vm3964 = vcmp.eq.s32.totalorder %v3924, inf
        %vm3965 = vmand %vm3963, %vm3964
        %v3966 = vsel %vm3965, %v3962, %v3960
        %v3967 = vand.u32 2147483647, %v3966
        %v3968 = vand.u32 %v322, 2147483648
        %v3969 = vor.u32 %v3967, %v3968
        %v3970 = vand.u32 2147483647, %v242
        %v3971 = vand.u32 2147483647, %v323
        %v3972 = vmin.f32 %v3970, %v3971
        %v3973 = vmax.f32 %v3970, %v3971
        %v3974 = vrcp.pop %v3973
        %v3975 = vmul.f32 %v3972, %v3974
        %v3976 = vmul.f32 %v3975, %v3975
        %v3977 = vmul.f32 0.002785687, %v3976
        %v3978 = vadd.f32 %v3977, -0.015866
        %v3979 = vmul.f32 %v3978, %v3976
        %v3980 = vadd.f32 %v3979, 0.04247222
        %v3981 = vmul.f32 %v3980, %v3976
        %v3982 = vadd.f32 %v3981, -0.074975304
        %v3983 = vmul.f32 %v3982, %v3976
        %v3984 = vadd.f32 %v3983, 0.1064488
        %v3985 = vmul.f32 %v3984, %v3976
        %v3986 = vadd.f32 %v3985, -0.14207031
        %v3987 = vmul.f32 %v3986, %v3976
        %v3988 = vadd.f32 %v3987, 0.19993454
        %v3989 = vmul.f32 %v3988, %v3976
        %v3990 = vadd.f32 %v3989, -0.33333147
        %v3991 = vmul.f32 %v3990, %v3976
        %v3992 = vmul.f32 %v3991, %v3975
        %v3993 = vadd.f32 %v3992, %v3975
        %vm3994 = vcmp.gt.f32.partialorder %v3971, %v3970
        %v3995 = vsub.f32 1.5707964, %v3993
        %v3996 = vsel %vm3994, %v3995, %v3993
        %vm3997 = vcmp.lt.f32.partialorder %v242, 0.0
        %v3998 = vsub.f32 3.1415927, %v3996
        %v3999 = vsel %vm3997, %v3998, %v3996
        %vm4000 = vcmp.lt.s32.totalorder %v242, 0
        %v4001 = vsel %vm4000, 3.1415927, 0.0
        %vm4002 = vcmp.eq.f32.partialorder %v323, 0.0
        %v4003 = vsel %vm4002, %v4001, %v3999
        %vm4004 = vcmp.ne.f32.partialorder %v242, %v242
        %vm4005 = vcmp.ne.f32.partialorder %v323, %v323
        %vm4006 = vmor %vm4004, %vm4005
        %v4007 = vsel %vm4006, nan, %v4003
        %vm4008 = vcmp.lt.f32.partialorder %v242, 0.0
        %v4009 = vsel %vm4008, 2.3561945, 0.7853982
        %vm4010 = vcmp.eq.s32.totalorder %v3970, inf
        %vm4011 = vcmp.eq.s32.totalorder %v3971, inf
        %vm4012 = vmand %vm4010, %vm4011
        %v4013 = vsel %vm4012, %v4009, %v4007
        %v4014 = vand.u32 2147483647, %v4013
        %v4015 = vand.u32 %v323, 2147483648
        %v4016 = vor.u32 %v4014, %v4015
        %v4017 = vand.u32 2147483647, %v243
        %v4018 = vand.u32 2147483647, %v324
        %v4019 = vmin.f32 %v4017, %v4018
        %v4020 = vmax.f32 %v4017, %v4018
        %v4021 = vrcp.pop %v4020
        %v4022 = vmul.f32 %v4019, %v4021
        %v4023 = vmul.f32 %v4022, %v4022
        %v4024 = vmul.f32 0.002785687, %v4023
        %v4025 = vadd.f32 %v4024, -0.015866
        %v4026 = vmul.f32 %v4025, %v4023
        %v4027 = vadd.f32 %v4026, 0.04247222
        %v4028 = vmul.f32 %v4027, %v4023
        %v4029 = vadd.f32 %v4028, -0.074975304
        %v4030 = vmul.f32 %v4029, %v4023
        %v4031 = vadd.f32 %v4030, 0.1064488
        %v4032 = vmul.f32 %v4031, %v4023
        %v4033 = vadd.f32 %v4032, -0.14207031
        %v4034 = vmul.f32 %v4033, %v4023
        %v4035 = vadd.f32 %v4034, 0.19993454
        %v4036 = vmul.f32 %v4035, %v4023
        %v4037 = vadd.f32 %v4036, -0.33333147
        %v4038 = vmul.f32 %v4037, %v4023
        %v4039 = vmul.f32 %v4038, %v4022
        %v4040 = vadd.f32 %v4039, %v4022
        %vm4041 = vcmp.gt.f32.partialorder %v4018, %v4017
        %v4042 = vsub.f32 1.5707964, %v4040
        %v4043 = vsel %vm4041, %v4042, %v4040
        %vm4044 = vcmp.lt.f32.partialorder %v243, 0.0
        %v4045 = vsub.f32 3.1415927, %v4043
        %v4046 = vsel %vm4044, %v4045, %v4043
        %vm4047 = vcmp.lt.s32.totalorder %v243, 0
        %v4048 = vsel %vm4047, 3.1415927, 0.0
        %vm4049 = vcmp.eq.f32.partialorder %v324, 0.0
        %v4050 = vsel %vm4049, %v4048, %v4046
        %vm4051 = vcmp.ne.f32.partialorder %v243, %v243
        %vm4052 = vcmp.ne.f32.partialorder %v324, %v324
        %vm4053 = vmor %vm4051, %vm4052
        %v4054 = vsel %vm4053, nan, %v4050
        %vm4055 = vcmp.lt.f32.partialorder %v243, 0.0
        %v4056 = vsel %vm4055, 2.3561945, 0.7853982
        %vm4057 = vcmp.eq.s32.totalorder %v4017, inf
        %vm4058 = vcmp.eq.s32.totalorder %v4018, inf
        %vm4059 = vmand %vm4057, %vm4058
        %v4060 = vsel %vm4059, %v4056, %v4054
        %v4061 = vand.u32 2147483647, %v4060
        %v4062 = vand.u32 %v324, 2147483648
        %v4063 = vor.u32 %v4061, %v4062
        %v4064 = vand.u32 2147483647, %v244
        %v4065 = vand.u32 2147483647, %v325
        %v4066 = vmin.f32 %v4064, %v4065
        %v4067 = vmax.f32 %v4064, %v4065
        %v4068 = vrcp.pop %v4067
        %v4069 = vmul.f32 %v4066, %v4068
        %v4070 = vmul.f32 %v4069, %v4069
        %v4071 = vmul.f32 0.002785687, %v4070
        %v4072 = vadd.f32 %v4071, -0.015866
        %v4073 = vmul.f32 %v4072, %v4070
        %v4074 = vadd.f32 %v4073, 0.04247222
        %v4075 = vmul.f32 %v4074, %v4070
        %v4076 = vadd.f32 %v4075, -0.074975304
        %v4077 = vmul.f32 %v4076, %v4070
        %v4078 = vadd.f32 %v4077, 0.1064488
        %v4079 = vmul.f32 %v4078, %v4070
        %v4080 = vadd.f32 %v4079, -0.14207031
        %v4081 = vmul.f32 %v4080, %v4070
        %v4082 = vadd.f32 %v4081, 0.19993454
        %v4083 = vmul.f32 %v4082, %v4070
        %v4084 = vadd.f32 %v4083, -0.33333147
        %v4085 = vmul.f32 %v4084, %v4070
        %v4086 = vmul.f32 %v4085, %v4069
        %v4087 = vadd.f32 %v4086, %v4069
        %vm4088 = vcmp.gt.f32.partialorder %v4065, %v4064
        %v4089 = vsub.f32 1.5707964, %v4087
        %v4090 = vsel %vm4088, %v4089, %v4087
        %vm4091 = vcmp.lt.f32.partialorder %v244, 0.0
        %v4092 = vsub.f32 3.1415927, %v4090
        %v4093 = vsel %vm4091, %v4092, %v4090
        %vm4094 = vcmp.lt.s32.totalorder %v244, 0
        %v4095 = vsel %vm4094, 3.1415927, 0.0
        %vm4096 = vcmp.eq.f32.partialorder %v325, 0.0
        %v4097 = vsel %vm4096, %v4095, %v4093
        %vm4098 = vcmp.ne.f32.partialorder %v244, %v244
        %vm4099 = vcmp.ne.f32.partialorder %v325, %v325
        %vm4100 = vmor %vm4098, %vm4099
        %v4101 = vsel %vm4100, nan, %v4097
        %vm4102 = vcmp.lt.f32.partialorder %v244, 0.0
        %v4103 = vsel %vm4102, 2.3561945, 0.7853982
        %vm4104 = vcmp.eq.s32.totalorder %v4064, inf
        %vm4105 = vcmp.eq.s32.totalorder %v4065, inf
        %vm4106 = vmand %vm4104, %vm4105
        %v4107 = vsel %vm4106, %v4103, %v4101
        %v4108 = vand.u32 2147483647, %v4107
        %v4109 = vand.u32 %v325, 2147483648
        %v4110 = vor.u32 %v4108, %v4109
        %v4111 = vand.u32 2147483647, %v245
        %v4112 = vand.u32 2147483647, %v326
        %v4113 = vmin.f32 %v4111, %v4112
        %v4114 = vmax.f32 %v4111, %v4112
        %v4115 = vrcp.pop %v4114
        %v4116 = vmul.f32 %v4113, %v4115
        %v4117 = vmul.f32 %v4116, %v4116
        %v4118 = vmul.f32 0.002785687, %v4117
        %v4119 = vadd.f32 %v4118, -0.015866
        %v4120 = vmul.f32 %v4119, %v4117
        %v4121 = vadd.f32 %v4120, 0.04247222
        %v4122 = vmul.f32 %v4121, %v4117
        %v4123 = vadd.f32 %v4122, -0.074975304
        %v4124 = vmul.f32 %v4123, %v4117
        %v4125 = vadd.f32 %v4124, 0.1064488
        %v4126 = vmul.f32 %v4125, %v4117
        %v4127 = vadd.f32 %v4126, -0.14207031
        %v4128 = vmul.f32 %v4127, %v4117
        %v4129 = vadd.f32 %v4128, 0.19993454
        %v4130 = vmul.f32 %v4129, %v4117
        %v4131 = vadd.f32 %v4130, -0.33333147
        %v4132 = vmul.f32 %v4131, %v4117
        %v4133 = vmul.f32 %v4132, %v4116
        %v4134 = vadd.f32 %v4133, %v4116
        %vm4135 = vcmp.gt.f32.partialorder %v4112, %v4111
        %v4136 = vsub.f32 1.5707964, %v4134
        %v4137 = vsel %vm4135, %v4136, %v4134
        %vm4138 = vcmp.lt.f32.partialorder %v245, 0.0
        %v4139 = vsub.f32 3.1415927, %v4137
        %v4140 = vsel %vm4138, %v4139, %v4137
        %vm4141 = vcmp.lt.s32.totalorder %v245, 0
        %v4142 = vsel %vm4141, 3.1415927, 0.0
        %vm4143 = vcmp.eq.f32.partialorder %v326, 0.0
        %v4144 = vsel %vm4143, %v4142, %v4140
        %vm4145 = vcmp.ne.f32.partialorder %v245, %v245
        %vm4146 = vcmp.ne.f32.partialorder %v326, %v326
        %vm4147 = vmor %vm4145, %vm4146
        %v4148 = vsel %vm4147, nan, %v4144
        %vm4149 = vcmp.lt.f32.partialorder %v245, 0.0
        %v4150 = vsel %vm4149, 2.3561945, 0.7853982
        %vm4151 = vcmp.eq.s32.totalorder %v4111, inf
        %vm4152 = vcmp.eq.s32.totalorder %v4112, inf
        %vm4153 = vmand %vm4151, %vm4152
        %v4154 = vsel %vm4153, %v4150, %v4148
        %v4155 = vand.u32 2147483647, %v4154
        %v4156 = vand.u32 %v326, 2147483648
        %v4157 = vor.u32 %v4155, %v4156
        %v4158 = vand.u32 2147483647, %v246
        %v4159 = vand.u32 2147483647, %v327
        %v4160 = vmin.f32 %v4158, %v4159
        %v4161 = vmax.f32 %v4158, %v4159
        %v4162 = vrcp.pop %v4161
        %v4163 = vmul.f32 %v4160, %v4162
        %v4164 = vmul.f32 %v4163, %v4163
        %v4165 = vmul.f32 0.002785687, %v4164
        %v4166 = vadd.f32 %v4165, -0.015866
        %v4167 = vmul.f32 %v4166, %v4164
        %v4168 = vadd.f32 %v4167, 0.04247222
        %v4169 = vmul.f32 %v4168, %v4164
        %v4170 = vadd.f32 %v4169, -0.074975304
        %v4171 = vmul.f32 %v4170, %v4164
        %v4172 = vadd.f32 %v4171, 0.1064488
        %v4173 = vmul.f32 %v4172, %v4164
        %v4174 = vadd.f32 %v4173, -0.14207031
        %v4175 = vmul.f32 %v4174, %v4164
        %v4176 = vadd.f32 %v4175, 0.19993454
        %v4177 = vmul.f32 %v4176, %v4164
        %v4178 = vadd.f32 %v4177, -0.33333147
        %v4179 = vmul.f32 %v4178, %v4164
        %v4180 = vmul.f32 %v4179, %v4163
        %v4181 = vadd.f32 %v4180, %v4163
        %vm4182 = vcmp.gt.f32.partialorder %v4159, %v4158
        %v4183 = vsub.f32 1.5707964, %v4181
        %v4184 = vsel %vm4182, %v4183, %v4181
        %vm4185 = vcmp.lt.f32.partialorder %v246, 0.0
        %v4186 = vsub.f32 3.1415927, %v4184
        %v4187 = vsel %vm4185, %v4186, %v4184
        %vm4188 = vcmp.lt.s32.totalorder %v246, 0
        %v4189 = vsel %vm4188, 3.1415927, 0.0
        %vm4190 = vcmp.eq.f32.partialorder %v327, 0.0
        %v4191 = vsel %vm4190, %v4189, %v4187
        %vm4192 = vcmp.ne.f32.partialorder %v246, %v246
        %vm4193 = vcmp.ne.f32.partialorder %v327, %v327
        %vm4194 = vmor %vm4192, %vm4193
        %v4195 = vsel %vm4194, nan, %v4191
        %vm4196 = vcmp.lt.f32.partialorder %v246, 0.0
        %v4197 = vsel %vm4196, 2.3561945, 0.7853982
        %vm4198 = vcmp.eq.s32.totalorder %v4158, inf
        %vm4199 = vcmp.eq.s32.totalorder %v4159, inf
        %vm4200 = vmand %vm4198, %vm4199
        %v4201 = vsel %vm4200, %v4197, %v4195
        %v4202 = vand.u32 2147483647, %v4201
        %v4203 = vand.u32 %v327, 2147483648
        %v4204 = vor.u32 %v4202, %v4203
        %v4205 = vand.u32 2147483647, %v247
        %v4206 = vand.u32 2147483647, %v328
        %v4207 = vmin.f32 %v4205, %v4206
        %v4208 = vmax.f32 %v4205, %v4206
        %v4209 = vrcp.pop %v4208
        %v4210 = vmul.f32 %v4207, %v4209
        %v4211 = vmul.f32 %v4210, %v4210
        %v4212 = vmul.f32 0.002785687, %v4211
        %v4213 = vadd.f32 %v4212, -0.015866
        %v4214 = vmul.f32 %v4213, %v4211
        %v4215 = vadd.f32 %v4214, 0.04247222
        %v4216 = vmul.f32 %v4215, %v4211
        %v4217 = vadd.f32 %v4216, -0.074975304
        %v4218 = vmul.f32 %v4217, %v4211
        %v4219 = vadd.f32 %v4218, 0.1064488
        %v4220 = vmul.f32 %v4219, %v4211
        %v4221 = vadd.f32 %v4220, -0.14207031
        %v4222 = vmul.f32 %v4221, %v4211
        %v4223 = vadd.f32 %v4222, 0.19993454
        %v4224 = vmul.f32 %v4223, %v4211
        %v4225 = vadd.f32 %v4224, -0.33333147
        %v4226 = vmul.f32 %v4225, %v4211
        %v4227 = vmul.f32 %v4226, %v4210
        %v4228 = vadd.f32 %v4227, %v4210
        %vm4229 = vcmp.gt.f32.partialorder %v4206, %v4205
        %v4230 = vsub.f32 1.5707964, %v4228
        %v4231 = vsel %vm4229, %v4230, %v4228
        %vm4232 = vcmp.lt.f32.partialorder %v247, 0.0
        %v4233 = vsub.f32 3.1415927, %v4231
        %v4234 = vsel %vm4232, %v4233, %v4231
        %vm4235 = vcmp.lt.s32.totalorder %v247, 0
        %v4236 = vsel %vm4235, 3.1415927, 0.0
        %vm4237 = vcmp.eq.f32.partialorder %v328, 0.0
        %v4238 = vsel %vm4237, %v4236, %v4234
        %vm4239 = vcmp.ne.f32.partialorder %v247, %v247
        %vm4240 = vcmp.ne.f32.partialorder %v328, %v328
        %vm4241 = vmor %vm4239, %vm4240
        %v4242 = vsel %vm4241, nan, %v4238
        %vm4243 = vcmp.lt.f32.partialorder %v247, 0.0
        %v4244 = vsel %vm4243, 2.3561945, 0.7853982
        %vm4245 = vcmp.eq.s32.totalorder %v4205, inf
        %vm4246 = vcmp.eq.s32.totalorder %v4206, inf
        %vm4247 = vmand %vm4245, %vm4246
        %v4248 = vsel %vm4247, %v4244, %v4242
        %v4249 = vand.u32 2147483647, %v4248
        %v4250 = vand.u32 %v328, 2147483648
        %v4251 = vor.u32 %v4249, %v4250
        %v4252 = vand.u32 2147483647, %v248
        %v4253 = vand.u32 2147483647, %v329
        %v4254 = vmin.f32 %v4252, %v4253
        %v4255 = vmax.f32 %v4252, %v4253
        %v4256 = vrcp.pop %v4255
        %v4257 = vmul.f32 %v4254, %v4256
        %v4258 = vmul.f32 %v4257, %v4257
        %v4259 = vmul.f32 0.002785687, %v4258
        %v4260 = vadd.f32 %v4259, -0.015866
        %v4261 = vmul.f32 %v4260, %v4258
        %v4262 = vadd.f32 %v4261, 0.04247222
        %v4263 = vmul.f32 %v4262, %v4258
        %v4264 = vadd.f32 %v4263, -0.074975304
        %v4265 = vmul.f32 %v4264, %v4258
        %v4266 = vadd.f32 %v4265, 0.1064488
        %v4267 = vmul.f32 %v4266, %v4258
        %v4268 = vadd.f32 %v4267, -0.14207031
        %v4269 = vmul.f32 %v4268, %v4258
        %v4270 = vadd.f32 %v4269, 0.19993454
        %v4271 = vmul.f32 %v4270, %v4258
        %v4272 = vadd.f32 %v4271, -0.33333147
        %v4273 = vmul.f32 %v4272, %v4258
        %v4274 = vmul.f32 %v4273, %v4257
        %v4275 = vadd.f32 %v4274, %v4257
        %vm4276 = vcmp.gt.f32.partialorder %v4253, %v4252
        %v4277 = vsub.f32 1.5707964, %v4275
        %v4278 = vsel %vm4276, %v4277, %v4275
        %vm4279 = vcmp.lt.f32.partialorder %v248, 0.0
        %v4280 = vsub.f32 3.1415927, %v4278
        %v4281 = vsel %vm4279, %v4280, %v4278
        %vm4282 = vcmp.lt.s32.totalorder %v248, 0
        %v4283 = vsel %vm4282, 3.1415927, 0.0
        %vm4284 = vcmp.eq.f32.partialorder %v329, 0.0
        %v4285 = vsel %vm4284, %v4283, %v4281
        %vm4286 = vcmp.ne.f32.partialorder %v248, %v248
        %vm4287 = vcmp.ne.f32.partialorder %v329, %v329
        %vm4288 = vmor %vm4286, %vm4287
        %v4289 = vsel %vm4288, nan, %v4285
        %vm4290 = vcmp.lt.f32.partialorder %v248, 0.0
        %v4291 = vsel %vm4290, 2.3561945, 0.7853982
        %vm4292 = vcmp.eq.s32.totalorder %v4252, inf
        %vm4293 = vcmp.eq.s32.totalorder %v4253, inf
        %vm4294 = vmand %vm4292, %vm4293
        %v4295 = vsel %vm4294, %v4291, %v4289
        %v4296 = vand.u32 2147483647, %v4295
        %v4297 = vand.u32 %v329, 2147483648
        %v4298 = vor.u32 %v4296, %v4297
        %v4299 = vand.u32 2147483647, %v249
        %v4300 = vand.u32 2147483647, %v330
        %v4301 = vmin.f32 %v4299, %v4300
        %v4302 = vmax.f32 %v4299, %v4300
        %v4303 = vrcp.pop %v4302
        %v4304 = vmul.f32 %v4301, %v4303
        %v4305 = vmul.f32 %v4304, %v4304
        %v4306 = vmul.f32 0.002785687, %v4305
        %v4307 = vadd.f32 %v4306, -0.015866
        %v4308 = vmul.f32 %v4307, %v4305
        %v4309 = vadd.f32 %v4308, 0.04247222
        %v4310 = vmul.f32 %v4309, %v4305
        %v4311 = vadd.f32 %v4310, -0.074975304
        %v4312 = vmul.f32 %v4311, %v4305
        %v4313 = vadd.f32 %v4312, 0.1064488
        %v4314 = vmul.f32 %v4313, %v4305
        %v4315 = vadd.f32 %v4314, -0.14207031
        %v4316 = vmul.f32 %v4315, %v4305
        %v4317 = vadd.f32 %v4316, 0.19993454
        %v4318 = vmul.f32 %v4317, %v4305
        %v4319 = vadd.f32 %v4318, -0.33333147
        %v4320 = vmul.f32 %v4319, %v4305
        %v4321 = vmul.f32 %v4320, %v4304
        %v4322 = vadd.f32 %v4321, %v4304
        %vm4323 = vcmp.gt.f32.partialorder %v4300, %v4299
        %v4324 = vsub.f32 1.5707964, %v4322
        %v4325 = vsel %vm4323, %v4324, %v4322
        %vm4326 = vcmp.lt.f32.partialorder %v249, 0.0
        %v4327 = vsub.f32 3.1415927, %v4325
        %v4328 = vsel %vm4326, %v4327, %v4325
        %vm4329 = vcmp.lt.s32.totalorder %v249, 0
        %v4330 = vsel %vm4329, 3.1415927, 0.0
        %vm4331 = vcmp.eq.f32.partialorder %v330, 0.0
        %v4332 = vsel %vm4331, %v4330, %v4328
        %vm4333 = vcmp.ne.f32.partialorder %v249, %v249
        %vm4334 = vcmp.ne.f32.partialorder %v330, %v330
        %vm4335 = vmor %vm4333, %vm4334
        %v4336 = vsel %vm4335, nan, %v4332
        %vm4337 = vcmp.lt.f32.partialorder %v249, 0.0
        %v4338 = vsel %vm4337, 2.3561945, 0.7853982
        %vm4339 = vcmp.eq.s32.totalorder %v4299, inf
        %vm4340 = vcmp.eq.s32.totalorder %v4300, inf
        %vm4341 = vmand %vm4339, %vm4340
        %v4342 = vsel %vm4341, %v4338, %v4336
        %v4343 = vand.u32 2147483647, %v4342
        %v4344 = vand.u32 %v330, 2147483648
        %v4345 = vor.u32 %v4343, %v4344
        %v4346 = vand.u32 2147483647, %v250
        %v4347 = vand.u32 2147483647, %v331
        %v4348 = vmin.f32 %v4346, %v4347
        %v4349 = vmax.f32 %v4346, %v4347
        %v4350 = vrcp.pop %v4349
        %v4351 = vmul.f32 %v4348, %v4350
        %v4352 = vmul.f32 %v4351, %v4351
        %v4353 = vmul.f32 0.002785687, %v4352
        %v4354 = vadd.f32 %v4353, -0.015866
        %v4355 = vmul.f32 %v4354, %v4352
        %v4356 = vadd.f32 %v4355, 0.04247222
        %v4357 = vmul.f32 %v4356, %v4352
        %v4358 = vadd.f32 %v4357, -0.074975304
        %v4359 = vmul.f32 %v4358, %v4352
        %v4360 = vadd.f32 %v4359, 0.1064488
        %v4361 = vmul.f32 %v4360, %v4352
        %v4362 = vadd.f32 %v4361, -0.14207031
        %v4363 = vmul.f32 %v4362, %v4352
        %v4364 = vadd.f32 %v4363, 0.19993454
        %v4365 = vmul.f32 %v4364, %v4352
        %v4366 = vadd.f32 %v4365, -0.33333147
        %v4367 = vmul.f32 %v4366, %v4352
        %v4368 = vmul.f32 %v4367, %v4351
        %v4369 = vadd.f32 %v4368, %v4351
        %vm4370 = vcmp.gt.f32.partialorder %v4347, %v4346
        %v4371 = vsub.f32 1.5707964, %v4369
        %v4372 = vsel %vm4370, %v4371, %v4369
        %vm4373 = vcmp.lt.f32.partialorder %v250, 0.0
        %v4374 = vsub.f32 3.1415927, %v4372
        %v4375 = vsel %vm4373, %v4374, %v4372
        %vm4376 = vcmp.lt.s32.totalorder %v250, 0
        %v4377 = vsel %vm4376, 3.1415927, 0.0
        %vm4378 = vcmp.eq.f32.partialorder %v331, 0.0
        %v4379 = vsel %vm4378, %v4377, %v4375
        %vm4380 = vcmp.ne.f32.partialorder %v250, %v250
        %vm4381 = vcmp.ne.f32.partialorder %v331, %v331
        %vm4382 = vmor %vm4380, %vm4381
        %v4383 = vsel %vm4382, nan, %v4379
        %vm4384 = vcmp.lt.f32.partialorder %v250, 0.0
        %v4385 = vsel %vm4384, 2.3561945, 0.7853982
        %vm4386 = vcmp.eq.s32.totalorder %v4346, inf
        %vm4387 = vcmp.eq.s32.totalorder %v4347, inf
        %vm4388 = vmand %vm4386, %vm4387
        %v4389 = vsel %vm4388, %v4385, %v4383
        %v4390 = vand.u32 2147483647, %v4389
        %v4391 = vand.u32 %v331, 2147483648
        %v4392 = vor.u32 %v4390, %v4391
        %v4393 = vand.u32 2147483647, %v251
        %v4394 = vand.u32 2147483647, %v332
        %v4395 = vmin.f32 %v4393, %v4394
        %v4396 = vmax.f32 %v4393, %v4394
        %v4397 = vrcp.pop %v4396
        %v4398 = vmul.f32 %v4395, %v4397
        %v4399 = vmul.f32 %v4398, %v4398
        %v4400 = vmul.f32 0.002785687, %v4399
        %v4401 = vadd.f32 %v4400, -0.015866
        %v4402 = vmul.f32 %v4401, %v4399
        %v4403 = vadd.f32 %v4402, 0.04247222
        %v4404 = vmul.f32 %v4403, %v4399
        %v4405 = vadd.f32 %v4404, -0.074975304
        %v4406 = vmul.f32 %v4405, %v4399
        %v4407 = vadd.f32 %v4406, 0.1064488
        %v4408 = vmul.f32 %v4407, %v4399
        %v4409 = vadd.f32 %v4408, -0.14207031
        %v4410 = vmul.f32 %v4409, %v4399
        %v4411 = vadd.f32 %v4410, 0.19993454
        %v4412 = vmul.f32 %v4411, %v4399
        %v4413 = vadd.f32 %v4412, -0.33333147
        %v4414 = vmul.f32 %v4413, %v4399
        %v4415 = vmul.f32 %v4414, %v4398
        %v4416 = vadd.f32 %v4415, %v4398
        %vm4417 = vcmp.gt.f32.partialorder %v4394, %v4393
        %v4418 = vsub.f32 1.5707964, %v4416
        %v4419 = vsel %vm4417, %v4418, %v4416
        %vm4420 = vcmp.lt.f32.partialorder %v251, 0.0
        %v4421 = vsub.f32 3.1415927, %v4419
        %v4422 = vsel %vm4420, %v4421, %v4419
        %vm4423 = vcmp.lt.s32.totalorder %v251, 0
        %v4424 = vsel %vm4423, 3.1415927, 0.0
        %vm4425 = vcmp.eq.f32.partialorder %v332, 0.0
        %v4426 = vsel %vm4425, %v4424, %v4422
        %vm4427 = vcmp.ne.f32.partialorder %v251, %v251
        %vm4428 = vcmp.ne.f32.partialorder %v332, %v332
        %vm4429 = vmor %vm4427, %vm4428
        %v4430 = vsel %vm4429, nan, %v4426
        %vm4431 = vcmp.lt.f32.partialorder %v251, 0.0
        %v4432 = vsel %vm4431, 2.3561945, 0.7853982
        %vm4433 = vcmp.eq.s32.totalorder %v4393, inf
        %vm4434 = vcmp.eq.s32.totalorder %v4394, inf
        %vm4435 = vmand %vm4433, %vm4434
        %v4436 = vsel %vm4435, %v4432, %v4430
        %v4437 = vand.u32 2147483647, %v4436
        %v4438 = vand.u32 %v332, 2147483648
        %v4439 = vor.u32 %v4437, %v4438
        %v4440 = vand.u32 2147483647, %v252
        %v4441 = vand.u32 2147483647, %v333
        %v4442 = vmin.f32 %v4440, %v4441
        %v4443 = vmax.f32 %v4440, %v4441
        %v4444 = vrcp.pop %v4443
        %v4445 = vmul.f32 %v4442, %v4444
        %v4446 = vmul.f32 %v4445, %v4445
        %v4447 = vmul.f32 0.002785687, %v4446
        %v4448 = vadd.f32 %v4447, -0.015866
        %v4449 = vmul.f32 %v4448, %v4446
        %v4450 = vadd.f32 %v4449, 0.04247222
        %v4451 = vmul.f32 %v4450, %v4446
        %v4452 = vadd.f32 %v4451, -0.074975304
        %v4453 = vmul.f32 %v4452, %v4446
        %v4454 = vadd.f32 %v4453, 0.1064488
        %v4455 = vmul.f32 %v4454, %v4446
        %v4456 = vadd.f32 %v4455, -0.14207031
        %v4457 = vmul.f32 %v4456, %v4446
        %v4458 = vadd.f32 %v4457, 0.19993454
        %v4459 = vmul.f32 %v4458, %v4446
        %v4460 = vadd.f32 %v4459, -0.33333147
        %v4461 = vmul.f32 %v4460, %v4446
        %v4462 = vmul.f32 %v4461, %v4445
        %v4463 = vadd.f32 %v4462, %v4445
        %vm4464 = vcmp.gt.f32.partialorder %v4441, %v4440
        %v4465 = vsub.f32 1.5707964, %v4463
        %v4466 = vsel %vm4464, %v4465, %v4463
        %vm4467 = vcmp.lt.f32.partialorder %v252, 0.0
        %v4468 = vsub.f32 3.1415927, %v4466
        %v4469 = vsel %vm4467, %v4468, %v4466
        %vm4470 = vcmp.lt.s32.totalorder %v252, 0
        %v4471 = vsel %vm4470, 3.1415927, 0.0
        %vm4472 = vcmp.eq.f32.partialorder %v333, 0.0
        %v4473 = vsel %vm4472, %v4471, %v4469
        %vm4474 = vcmp.ne.f32.partialorder %v252, %v252
        %vm4475 = vcmp.ne.f32.partialorder %v333, %v333
        %vm4476 = vmor %vm4474, %vm4475
        %v4477 = vsel %vm4476, nan, %v4473
        %vm4478 = vcmp.lt.f32.partialorder %v252, 0.0
        %v4479 = vsel %vm4478, 2.3561945, 0.7853982
        %vm4480 = vcmp.eq.s32.totalorder %v4440, inf
        %vm4481 = vcmp.eq.s32.totalorder %v4441, inf
        %vm4482 = vmand %vm4480, %vm4481
        %v4483 = vsel %vm4482, %v4479, %v4477
        %v4484 = vand.u32 2147483647, %v4483
        %v4485 = vand.u32 %v333, 2147483648
        %v4486 = vor.u32 %v4484, %v4485
        %v4487 = vand.u32 2147483647, %v253
        %v4488 = vand.u32 2147483647, %v334
        %v4489 = vmin.f32 %v4487, %v4488
        %v4490 = vmax.f32 %v4487, %v4488
        %v4491 = vrcp.pop %v4490
        %v4492 = vmul.f32 %v4489, %v4491
        %v4493 = vmul.f32 %v4492, %v4492
        %v4494 = vmul.f32 0.002785687, %v4493
        %v4495 = vadd.f32 %v4494, -0.015866
        %v4496 = vmul.f32 %v4495, %v4493
        %v4497 = vadd.f32 %v4496, 0.04247222
        %v4498 = vmul.f32 %v4497, %v4493
        %v4499 = vadd.f32 %v4498, -0.074975304
        %v4500 = vmul.f32 %v4499, %v4493
        %v4501 = vadd.f32 %v4500, 0.1064488
        %v4502 = vmul.f32 %v4501, %v4493
        %v4503 = vadd.f32 %v4502, -0.14207031
        %v4504 = vmul.f32 %v4503, %v4493
        %v4505 = vadd.f32 %v4504, 0.19993454
        %v4506 = vmul.f32 %v4505, %v4493
        %v4507 = vadd.f32 %v4506, -0.33333147
        %v4508 = vmul.f32 %v4507, %v4493
        %v4509 = vmul.f32 %v4508, %v4492
        %v4510 = vadd.f32 %v4509, %v4492
        %vm4511 = vcmp.gt.f32.partialorder %v4488, %v4487
        %v4512 = vsub.f32 1.5707964, %v4510
        %v4513 = vsel %vm4511, %v4512, %v4510
        %vm4514 = vcmp.lt.f32.partialorder %v253, 0.0
        %v4515 = vsub.f32 3.1415927, %v4513
        %v4516 = vsel %vm4514, %v4515, %v4513
        %vm4517 = vcmp.lt.s32.totalorder %v253, 0
        %v4518 = vsel %vm4517, 3.1415927, 0.0
        %vm4519 = vcmp.eq.f32.partialorder %v334, 0.0
        %v4520 = vsel %vm4519, %v4518, %v4516
        %vm4521 = vcmp.ne.f32.partialorder %v253, %v253
        %vm4522 = vcmp.ne.f32.partialorder %v334, %v334
        %vm4523 = vmor %vm4521, %vm4522
        %v4524 = vsel %vm4523, nan, %v4520
        %vm4525 = vcmp.lt.f32.partialorder %v253, 0.0
        %v4526 = vsel %vm4525, 2.3561945, 0.7853982
        %vm4527 = vcmp.eq.s32.totalorder %v4487, inf
        %vm4528 = vcmp.eq.s32.totalorder %v4488, inf
        %vm4529 = vmand %vm4527, %vm4528
        %v4530 = vsel %vm4529, %v4526, %v4524
        %v4531 = vand.u32 2147483647, %v4530
        %v4532 = vand.u32 %v334, 2147483648
        %v4533 = vor.u32 %v4531, %v4532
        %v4534 = vand.u32 2147483647, %v254
        %v4535 = vand.u32 2147483647, %v335
        %v4536 = vmin.f32 %v4534, %v4535
        %v4537 = vmax.f32 %v4534, %v4535
        %v4538 = vrcp.pop %v4537
        %v4539 = vmul.f32 %v4536, %v4538
        %v4540 = vmul.f32 %v4539, %v4539
        %v4541 = vmul.f32 0.002785687, %v4540
        %v4542 = vadd.f32 %v4541, -0.015866
        %v4543 = vmul.f32 %v4542, %v4540
        %v4544 = vadd.f32 %v4543, 0.04247222
        %v4545 = vmul.f32 %v4544, %v4540
        %v4546 = vadd.f32 %v4545, -0.074975304
        %v4547 = vmul.f32 %v4546, %v4540
        %v4548 = vadd.f32 %v4547, 0.1064488
        %v4549 = vmul.f32 %v4548, %v4540
        %v4550 = vadd.f32 %v4549, -0.14207031
        %v4551 = vmul.f32 %v4550, %v4540
        %v4552 = vadd.f32 %v4551, 0.19993454
        %v4553 = vmul.f32 %v4552, %v4540
        %v4554 = vadd.f32 %v4553, -0.33333147
        %v4555 = vmul.f32 %v4554, %v4540
        %v4556 = vmul.f32 %v4555, %v4539
        %v4557 = vadd.f32 %v4556, %v4539
        %vm4558 = vcmp.gt.f32.partialorder %v4535, %v4534
        %v4559 = vsub.f32 1.5707964, %v4557
        %v4560 = vsel %vm4558, %v4559, %v4557
        %vm4561 = vcmp.lt.f32.partialorder %v254, 0.0
        %v4562 = vsub.f32 3.1415927, %v4560
        %v4563 = vsel %vm4561, %v4562, %v4560
        %vm4564 = vcmp.lt.s32.totalorder %v254, 0
        %v4565 = vsel %vm4564, 3.1415927, 0.0
        %vm4566 = vcmp.eq.f32.partialorder %v335, 0.0
        %v4567 = vsel %vm4566, %v4565, %v4563
        %vm4568 = vcmp.ne.f32.partialorder %v254, %v254
        %vm4569 = vcmp.ne.f32.partialorder %v335, %v335
        %vm4570 = vmor %vm4568, %vm4569
        %v4571 = vsel %vm4570, nan, %v4567
        %vm4572 = vcmp.lt.f32.partialorder %v254, 0.0
        %v4573 = vsel %vm4572, 2.3561945, 0.7853982
        %vm4574 = vcmp.eq.s32.totalorder %v4534, inf
        %vm4575 = vcmp.eq.s32.totalorder %v4535, inf
        %vm4576 = vmand %vm4574, %vm4575
        %v4577 = vsel %vm4576, %v4573, %v4571
        %v4578 = vand.u32 2147483647, %v4577
        %v4579 = vand.u32 %v335, 2147483648
        %v4580 = vor.u32 %v4578, %v4579
        %v4581 = vand.u32 2147483647, %v255
        %v4582 = vand.u32 2147483647, %v336
        %v4583 = vmin.f32 %v4581, %v4582
        %v4584 = vmax.f32 %v4581, %v4582
        %v4585 = vrcp.pop %v4584
        %v4586 = vmul.f32 %v4583, %v4585
        %v4587 = vmul.f32 %v4586, %v4586
        %v4588 = vmul.f32 0.002785687, %v4587
        %v4589 = vadd.f32 %v4588, -0.015866
        %v4590 = vmul.f32 %v4589, %v4587
        %v4591 = vadd.f32 %v4590, 0.04247222
        %v4592 = vmul.f32 %v4591, %v4587
        %v4593 = vadd.f32 %v4592, -0.074975304
        %v4594 = vmul.f32 %v4593, %v4587
        %v4595 = vadd.f32 %v4594, 0.1064488
        %v4596 = vmul.f32 %v4595, %v4587
        %v4597 = vadd.f32 %v4596, -0.14207031
        %v4598 = vmul.f32 %v4597, %v4587
        %v4599 = vadd.f32 %v4598, 0.19993454
        %v4600 = vmul.f32 %v4599, %v4587
        %v4601 = vadd.f32 %v4600, -0.33333147
        %v4602 = vmul.f32 %v4601, %v4587
        %v4603 = vmul.f32 %v4602, %v4586
        %v4604 = vadd.f32 %v4603, %v4586
        %vm4605 = vcmp.gt.f32.partialorder %v4582, %v4581
        %v4606 = vsub.f32 1.5707964, %v4604
        %v4607 = vsel %vm4605, %v4606, %v4604
        %vm4608 = vcmp.lt.f32.partialorder %v255, 0.0
        %v4609 = vsub.f32 3.1415927, %v4607
        %v4610 = vsel %vm4608, %v4609, %v4607
        %vm4611 = vcmp.lt.s32.totalorder %v255, 0
        %v4612 = vsel %vm4611, 3.1415927, 0.0
        %vm4613 = vcmp.eq.f32.partialorder %v336, 0.0
        %v4614 = vsel %vm4613, %v4612, %v4610
        %vm4615 = vcmp.ne.f32.partialorder %v255, %v255
        %vm4616 = vcmp.ne.f32.partialorder %v336, %v336
        %vm4617 = vmor %vm4615, %vm4616
        %v4618 = vsel %vm4617, nan, %v4614
        %vm4619 = vcmp.lt.f32.partialorder %v255, 0.0
        %v4620 = vsel %vm4619, 2.3561945, 0.7853982
        %vm4621 = vcmp.eq.s32.totalorder %v4581, inf
        %vm4622 = vcmp.eq.s32.totalorder %v4582, inf
        %vm4623 = vmand %vm4621, %vm4622
        %v4624 = vsel %vm4623, %v4620, %v4618
        %v4625 = vand.u32 2147483647, %v4624
        %v4626 = vand.u32 %v336, 2147483648
        %v4627 = vor.u32 %v4625, %v4626
        %v4628 = vand.u32 2147483647, %v256
        %v4629 = vand.u32 2147483647, %v337
        %v4630 = vmin.f32 %v4628, %v4629
        %v4631 = vmax.f32 %v4628, %v4629
        %v4632 = vrcp.pop %v4631
        %v4633 = vmul.f32 %v4630, %v4632
        %v4634 = vmul.f32 %v4633, %v4633
        %v4635 = vmul.f32 0.002785687, %v4634
        %v4636 = vadd.f32 %v4635, -0.015866
        %v4637 = vmul.f32 %v4636, %v4634
        %v4638 = vadd.f32 %v4637, 0.04247222
        %v4639 = vmul.f32 %v4638, %v4634
        %v4640 = vadd.f32 %v4639, -0.074975304
        %v4641 = vmul.f32 %v4640, %v4634
        %v4642 = vadd.f32 %v4641, 0.1064488
        %v4643 = vmul.f32 %v4642, %v4634
        %v4644 = vadd.f32 %v4643, -0.14207031
        %v4645 = vmul.f32 %v4644, %v4634
        %v4646 = vadd.f32 %v4645, 0.19993454
        %v4647 = vmul.f32 %v4646, %v4634
        %v4648 = vadd.f32 %v4647, -0.33333147
        %v4649 = vmul.f32 %v4648, %v4634
        %v4650 = vmul.f32 %v4649, %v4633
        %v4651 = vadd.f32 %v4650, %v4633
        %vm4652 = vcmp.gt.f32.partialorder %v4629, %v4628
        %v4653 = vsub.f32 1.5707964, %v4651
        %v4654 = vsel %vm4652, %v4653, %v4651
        %vm4655 = vcmp.lt.f32.partialorder %v256, 0.0
        %v4656 = vsub.f32 3.1415927, %v4654
        %v4657 = vsel %vm4655, %v4656, %v4654
        %vm4658 = vcmp.lt.s32.totalorder %v256, 0
        %v4659 = vsel %vm4658, 3.1415927, 0.0
        %vm4660 = vcmp.eq.f32.partialorder %v337, 0.0
        %v4661 = vsel %vm4660, %v4659, %v4657
        %vm4662 = vcmp.ne.f32.partialorder %v256, %v256
        %vm4663 = vcmp.ne.f32.partialorder %v337, %v337
        %vm4664 = vmor %vm4662, %vm4663
        %v4665 = vsel %vm4664, nan, %v4661
        %vm4666 = vcmp.lt.f32.partialorder %v256, 0.0
        %v4667 = vsel %vm4666, 2.3561945, 0.7853982
        %vm4668 = vcmp.eq.s32.totalorder %v4628, inf
        %vm4669 = vcmp.eq.s32.totalorder %v4629, inf
        %vm4670 = vmand %vm4668, %vm4669
        %v4671 = vsel %vm4670, %v4667, %v4665
        %v4672 = vand.u32 2147483647, %v4671
        %v4673 = vand.u32 %v337, 2147483648
        %v4674 = vor.u32 %v4672, %v4673
        %v4675 = vand.u32 2147483647, %v257
        %v4676 = vand.u32 2147483647, %v338
        %v4677 = vmin.f32 %v4675, %v4676
        %v4678 = vmax.f32 %v4675, %v4676
        %v4679 = vrcp.pop %v4678
        %v4680 = vmul.f32 %v4677, %v4679
        %v4681 = vmul.f32 %v4680, %v4680
        %v4682 = vmul.f32 0.002785687, %v4681
        %v4683 = vadd.f32 %v4682, -0.015866
        %v4684 = vmul.f32 %v4683, %v4681
        %v4685 = vadd.f32 %v4684, 0.04247222
        %v4686 = vmul.f32 %v4685, %v4681
        %v4687 = vadd.f32 %v4686, -0.074975304
        %v4688 = vmul.f32 %v4687, %v4681
        %v4689 = vadd.f32 %v4688, 0.1064488
        %v4690 = vmul.f32 %v4689, %v4681
        %v4691 = vadd.f32 %v4690, -0.14207031
        %v4692 = vmul.f32 %v4691, %v4681
        %v4693 = vadd.f32 %v4692, 0.19993454
        %v4694 = vmul.f32 %v4693, %v4681
        %v4695 = vadd.f32 %v4694, -0.33333147
        %v4696 = vmul.f32 %v4695, %v4681
        %v4697 = vmul.f32 %v4696, %v4680
        %v4698 = vadd.f32 %v4697, %v4680
        %vm4699 = vcmp.gt.f32.partialorder %v4676, %v4675
        %v4700 = vsub.f32 1.5707964, %v4698
        %v4701 = vsel %vm4699, %v4700, %v4698
        %vm4702 = vcmp.lt.f32.partialorder %v257, 0.0
        %v4703 = vsub.f32 3.1415927, %v4701
        %v4704 = vsel %vm4702, %v4703, %v4701
        %vm4705 = vcmp.lt.s32.totalorder %v257, 0
        %v4706 = vsel %vm4705, 3.1415927, 0.0
        %vm4707 = vcmp.eq.f32.partialorder %v338, 0.0
        %v4708 = vsel %vm4707, %v4706, %v4704
        %vm4709 = vcmp.ne.f32.partialorder %v257, %v257
        %vm4710 = vcmp.ne.f32.partialorder %v338, %v338
        %vm4711 = vmor %vm4709, %vm4710
        %v4712 = vsel %vm4711, nan, %v4708
        %vm4713 = vcmp.lt.f32.partialorder %v257, 0.0
        %v4714 = vsel %vm4713, 2.3561945, 0.7853982
        %vm4715 = vcmp.eq.s32.totalorder %v4675, inf
        %vm4716 = vcmp.eq.s32.totalorder %v4676, inf
        %vm4717 = vmand %vm4715, %vm4716
        %v4718 = vsel %vm4717, %v4714, %v4712
        %v4719 = vand.u32 2147483647, %v4718
        %v4720 = vand.u32 %v338, 2147483648
        %v4721 = vor.u32 %v4719, %v4720
        %v4722 = vand.u32 2147483647, %v258
        %v4723 = vand.u32 2147483647, %v339
        %v4724 = vmin.f32 %v4722, %v4723
        %v4725 = vmax.f32 %v4722, %v4723
        %v4726 = vrcp.pop %v4725
        %v4727 = vmul.f32 %v4724, %v4726
        %v4728 = vmul.f32 %v4727, %v4727
        %v4729 = vmul.f32 0.002785687, %v4728
        %v4730 = vadd.f32 %v4729, -0.015866
        %v4731 = vmul.f32 %v4730, %v4728
        %v4732 = vadd.f32 %v4731, 0.04247222
        %v4733 = vmul.f32 %v4732, %v4728
        %v4734 = vadd.f32 %v4733, -0.074975304
        %v4735 = vmul.f32 %v4734, %v4728
        %v4736 = vadd.f32 %v4735, 0.1064488
        %v4737 = vmul.f32 %v4736, %v4728
        %v4738 = vadd.f32 %v4737, -0.14207031
        %v4739 = vmul.f32 %v4738, %v4728
        %v4740 = vadd.f32 %v4739, 0.19993454
        %v4741 = vmul.f32 %v4740, %v4728
        %v4742 = vadd.f32 %v4741, -0.33333147
        %v4743 = vmul.f32 %v4742, %v4728
        %v4744 = vmul.f32 %v4743, %v4727
        %v4745 = vadd.f32 %v4744, %v4727
        %vm4746 = vcmp.gt.f32.partialorder %v4723, %v4722
        %v4747 = vsub.f32 1.5707964, %v4745
        %v4748 = vsel %vm4746, %v4747, %v4745
        %vm4749 = vcmp.lt.f32.partialorder %v258, 0.0
        %v4750 = vsub.f32 3.1415927, %v4748
        %v4751 = vsel %vm4749, %v4750, %v4748
        %vm4752 = vcmp.lt.s32.totalorder %v258, 0
        %v4753 = vsel %vm4752, 3.1415927, 0.0
        %vm4754 = vcmp.eq.f32.partialorder %v339, 0.0
        %v4755 = vsel %vm4754, %v4753, %v4751
        %vm4756 = vcmp.ne.f32.partialorder %v258, %v258
        %vm4757 = vcmp.ne.f32.partialorder %v339, %v339
        %vm4758 = vmor %vm4756, %vm4757
        %v4759 = vsel %vm4758, nan, %v4755
        %vm4760 = vcmp.lt.f32.partialorder %v258, 0.0
        %v4761 = vsel %vm4760, 2.3561945, 0.7853982
        %vm4762 = vcmp.eq.s32.totalorder %v4722, inf
        %vm4763 = vcmp.eq.s32.totalorder %v4723, inf
        %vm4764 = vmand %vm4762, %vm4763
        %v4765 = vsel %vm4764, %v4761, %v4759
        %v4766 = vand.u32 2147483647, %v4765
        %v4767 = vand.u32 %v339, 2147483648
        %v4768 = vor.u32 %v4766, %v4767
        %v4769 = vand.u32 2147483647, %v259
        %v4770 = vand.u32 2147483647, %v340
        %v4771 = vmin.f32 %v4769, %v4770
        %v4772 = vmax.f32 %v4769, %v4770
        %v4773 = vrcp.pop %v4772
        %v4774 = vmul.f32 %v4771, %v4773
        %v4775 = vmul.f32 %v4774, %v4774
        %v4776 = vmul.f32 0.002785687, %v4775
        %v4777 = vadd.f32 %v4776, -0.015866
        %v4778 = vmul.f32 %v4777, %v4775
        %v4779 = vadd.f32 %v4778, 0.04247222
        %v4780 = vmul.f32 %v4779, %v4775
        %v4781 = vadd.f32 %v4780, -0.074975304
        %v4782 = vmul.f32 %v4781, %v4775
        %v4783 = vadd.f32 %v4782, 0.1064488
        %v4784 = vmul.f32 %v4783, %v4775
        %v4785 = vadd.f32 %v4784, -0.14207031
        %v4786 = vmul.f32 %v4785, %v4775
        %v4787 = vadd.f32 %v4786, 0.19993454
        %v4788 = vmul.f32 %v4787, %v4775
        %v4789 = vadd.f32 %v4788, -0.33333147
        %v4790 = vmul.f32 %v4789, %v4775
        %v4791 = vmul.f32 %v4790, %v4774
        %v4792 = vadd.f32 %v4791, %v4774
        %vm4793 = vcmp.gt.f32.partialorder %v4770, %v4769
        %v4794 = vsub.f32 1.5707964, %v4792
        %v4795 = vsel %vm4793, %v4794, %v4792
        %vm4796 = vcmp.lt.f32.partialorder %v259, 0.0
        %v4797 = vsub.f32 3.1415927, %v4795
        %v4798 = vsel %vm4796, %v4797, %v4795
        %vm4799 = vcmp.lt.s32.totalorder %v259, 0
        %v4800 = vsel %vm4799, 3.1415927, 0.0
        %vm4801 = vcmp.eq.f32.partialorder %v340, 0.0
        %v4802 = vsel %vm4801, %v4800, %v4798
        %vm4803 = vcmp.ne.f32.partialorder %v259, %v259
        %vm4804 = vcmp.ne.f32.partialorder %v340, %v340
        %vm4805 = vmor %vm4803, %vm4804
        %v4806 = vsel %vm4805, nan, %v4802
        %vm4807 = vcmp.lt.f32.partialorder %v259, 0.0
        %v4808 = vsel %vm4807, 2.3561945, 0.7853982
        %vm4809 = vcmp.eq.s32.totalorder %v4769, inf
        %vm4810 = vcmp.eq.s32.totalorder %v4770, inf
        %vm4811 = vmand %vm4809, %vm4810
        %v4812 = vsel %vm4811, %v4808, %v4806
        %v4813 = vand.u32 2147483647, %v4812
        %v4814 = vand.u32 %v340, 2147483648
        %v4815 = vor.u32 %v4813, %v4814
        %v4816 = vand.u32 2147483647, %v260
        %v4817 = vand.u32 2147483647, %v341
        %v4818 = vmin.f32 %v4816, %v4817
        %v4819 = vmax.f32 %v4816, %v4817
        %v4820 = vrcp.pop %v4819
        %v4821 = vmul.f32 %v4818, %v4820
        %v4822 = vmul.f32 %v4821, %v4821
        %v4823 = vmul.f32 0.002785687, %v4822
        %v4824 = vadd.f32 %v4823, -0.015866
        %v4825 = vmul.f32 %v4824, %v4822
        %v4826 = vadd.f32 %v4825, 0.04247222
        %v4827 = vmul.f32 %v4826, %v4822
        %v4828 = vadd.f32 %v4827, -0.074975304
        %v4829 = vmul.f32 %v4828, %v4822
        %v4830 = vadd.f32 %v4829, 0.1064488
        %v4831 = vmul.f32 %v4830, %v4822
        %v4832 = vadd.f32 %v4831, -0.14207031
        %v4833 = vmul.f32 %v4832, %v4822
        %v4834 = vadd.f32 %v4833, 0.19993454
        %v4835 = vmul.f32 %v4834, %v4822
        %v4836 = vadd.f32 %v4835, -0.33333147
        %v4837 = vmul.f32 %v4836, %v4822
        %v4838 = vmul.f32 %v4837, %v4821
        %v4839 = vadd.f32 %v4838, %v4821
        %vm4840 = vcmp.gt.f32.partialorder %v4817, %v4816
        %v4841 = vsub.f32 1.5707964, %v4839
        %v4842 = vsel %vm4840, %v4841, %v4839
        %vm4843 = vcmp.lt.f32.partialorder %v260, 0.0
        %v4844 = vsub.f32 3.1415927, %v4842
        %v4845 = vsel %vm4843, %v4844, %v4842
        %vm4846 = vcmp.lt.s32.totalorder %v260, 0
        %v4847 = vsel %vm4846, 3.1415927, 0.0
        %vm4848 = vcmp.eq.f32.partialorder %v341, 0.0
        %v4849 = vsel %vm4848, %v4847, %v4845
        %vm4850 = vcmp.ne.f32.partialorder %v260, %v260
        %vm4851 = vcmp.ne.f32.partialorder %v341, %v341
        %vm4852 = vmor %vm4850, %vm4851
        %v4853 = vsel %vm4852, nan, %v4849
        %vm4854 = vcmp.lt.f32.partialorder %v260, 0.0
        %v4855 = vsel %vm4854, 2.3561945, 0.7853982
        %vm4856 = vcmp.eq.s32.totalorder %v4816, inf
        %vm4857 = vcmp.eq.s32.totalorder %v4817, inf
        %vm4858 = vmand %vm4856, %vm4857
        %v4859 = vsel %vm4858, %v4855, %v4853
        %v4860 = vand.u32 2147483647, %v4859
        %v4861 = vand.u32 %v341, 2147483648
        %v4862 = vor.u32 %v4860, %v4861
        %v4863 = vand.u32 2147483647, %v261
        %v4864 = vand.u32 2147483647, %v342
        %v4865 = vmin.f32 %v4863, %v4864
        %v4866 = vmax.f32 %v4863, %v4864
        %v4867 = vrcp.pop %v4866
        %v4868 = vmul.f32 %v4865, %v4867
        %v4869 = vmul.f32 %v4868, %v4868
        %v4870 = vmul.f32 0.002785687, %v4869
        %v4871 = vadd.f32 %v4870, -0.015866
        %v4872 = vmul.f32 %v4871, %v4869
        %v4873 = vadd.f32 %v4872, 0.04247222
        %v4874 = vmul.f32 %v4873, %v4869
        %v4875 = vadd.f32 %v4874, -0.074975304
        %v4876 = vmul.f32 %v4875, %v4869
        %v4877 = vadd.f32 %v4876, 0.1064488
        %v4878 = vmul.f32 %v4877, %v4869
        %v4879 = vadd.f32 %v4878, -0.14207031
        %v4880 = vmul.f32 %v4879, %v4869
        %v4881 = vadd.f32 %v4880, 0.19993454
        %v4882 = vmul.f32 %v4881, %v4869
        %v4883 = vadd.f32 %v4882, -0.33333147
        %v4884 = vmul.f32 %v4883, %v4869
        %v4885 = vmul.f32 %v4884, %v4868
        %v4886 = vadd.f32 %v4885, %v4868
        %vm4887 = vcmp.gt.f32.partialorder %v4864, %v4863
        %v4888 = vsub.f32 1.5707964, %v4886
        %v4889 = vsel %vm4887, %v4888, %v4886
        %vm4890 = vcmp.lt.f32.partialorder %v261, 0.0
        %v4891 = vsub.f32 3.1415927, %v4889
        %v4892 = vsel %vm4890, %v4891, %v4889
        %vm4893 = vcmp.lt.s32.totalorder %v261, 0
        %v4894 = vsel %vm4893, 3.1415927, 0.0
        %vm4895 = vcmp.eq.f32.partialorder %v342, 0.0
        %v4896 = vsel %vm4895, %v4894, %v4892
        %vm4897 = vcmp.ne.f32.partialorder %v261, %v261
        %vm4898 = vcmp.ne.f32.partialorder %v342, %v342
        %vm4899 = vmor %vm4897, %vm4898
        %v4900 = vsel %vm4899, nan, %v4896
        %vm4901 = vcmp.lt.f32.partialorder %v261, 0.0
        %v4902 = vsel %vm4901, 2.3561945, 0.7853982
        %vm4903 = vcmp.eq.s32.totalorder %v4863, inf
        %vm4904 = vcmp.eq.s32.totalorder %v4864, inf
        %vm4905 = vmand %vm4903, %vm4904
        %v4906 = vsel %vm4905, %v4902, %v4900
        %v4907 = vand.u32 2147483647, %v4906
        %v4908 = vand.u32 %v342, 2147483648
        %v4909 = vor.u32 %v4907, %v4908
        %s4910 = scalar_lea.vmem %s171, 624 [#allocation7]
        %4911 = vst [vmem:[%s4910] sm:$0xff] %v3123
        %4912 = vst [vmem:[%s4910 + $0x8] sm:$0xff] %v3170
        %4913 = vst [vmem:[%s4910 + $0x10] sm:$0xff] %v3217
        %4914 = vst [vmem:[%s4910 + $0x18] sm:$0xff] %v3264
        %4915 = vst [vmem:[%s4910 + $0x20] sm:$0xff] %v3311
        %4916 = vst [vmem:[%s4910 + $0x28] sm:$0xff] %v3358
        %4917 = vst [vmem:[%s4910 + $0x30] sm:$0xff] %v3405
        %4918 = vst [vmem:[%s4910 + $0x38] sm:$0xff] %v3452
        %4919 = vst [vmem:[%s4910 + $0x40] sm:$0xff] %v3499
        %4920 = vst [vmem:[%s4910 + $0x48] sm:$0xff] %v3546
        %4921 = vst [vmem:[%s4910 + $0x50] sm:$0xff] %v3593
        %4922 = vst [vmem:[%s4910 + $0x58] sm:$0xff] %v3640
        %4923 = vst [vmem:[%s4910 + $0x60] sm:$0xff] %v3687
        %4924 = vst [vmem:[%s4910 + $0x68] sm:$0xff] %v3734
        %4925 = vst [vmem:[%s4910 + $0x70] sm:$0xff] %v3781
        %4926 = vst [vmem:[%s4910 + $0x78] sm:$0xff] %v3828
        %4927 = vst [vmem:[%s4910 + $0x80] sm:$0xff] %v3875
        %4928 = vst [vmem:[%s4910 + $0x88] sm:$0xff] %v3922
        %4929 = vst [vmem:[%s4910 + $0x90] sm:$0xff] %v3969
        %4930 = vst [vmem:[%s4910 + $0x98] sm:$0xff] %v4016
        %4931 = vst [vmem:[%s4910 + $0xa0] sm:$0xff] %v4063
        %4932 = vst [vmem:[%s4910 + $0xa8] sm:$0xff] %v4110
        %4933 = vst [vmem:[%s4910 + $0xb0] sm:$0xff] %v4157
        %4934 = vst [vmem:[%s4910 + $0xb8] sm:$0xff] %v4204
        %4935 = vst [vmem:[%s4910 + $0xc0] sm:$0xff] %v4251
        %4936 = vst [vmem:[%s4910 + $0xc8] sm:$0xff] %v4298
        %4937 = vst [vmem:[%s4910 + $0xd0] sm:$0xff] %v4345
        %4938 = vst [vmem:[%s4910 + $0xd8] sm:$0xff] %v4392
        %4939 = vst [vmem:[%s4910 + $0xe0] sm:$0xff] %v4439
        %4940 = vst [vmem:[%s4910 + $0xe8] sm:$0xff] %v4486
        %4941 = vst [vmem:[%s4910 + $0xf0] sm:$0xff] %v4533
        %4942 = vst [vmem:[%s4910 + $0xf8] sm:$0xff] %v4580
        %4943 = vst [vmem:[%s4910 + $0x100] sm:$0xff] %v4627
        %4944 = vst [vmem:[%s4910 + $0x108] sm:$0xff] %v4674
        %4945 = vst [vmem:[%s4910 + $0x110] sm:$0xff] %v4721
        %4946 = vst [vmem:[%s4910 + $0x118] sm:$0xff] %v4768
        %4947 = vst [vmem:[%s4910 + $0x120] sm:$0xff] %v4815
        %4948 = vst [vmem:[%s4910 + $0x128] sm:$0xff] %v4862
        %4949 = vst [vmem:[%s4910 + $0x130] sm:$0xff] %v4909
        %s4950 = sand.u32 %s57, 1
        %s4951 = scalar_lea.sflag [#allocation6], %s4950
        %s4952 = sand.u32 %s57, 1
        %s4953 = smul.addr %s4952, 936
        %s4954 = scalar_lea.vmem [#allocation7], %s4953
        // Predicated region
        $region29: #{tpu_custom_call.1} parent=23 // pred_check
          %p4955 = pneg %p67
        $region30: #{tpu_custom_call.1} parent=23 // pred_check_branch
          %4957 = sbr.rel (%p4955) target = $region32
        $region31: #{tpu_custom_call.1} parent=23 // pred_region
          #allocation11 [shape = 'u32[6]{0}', space=smem, size = 0x18, scoped, tag = 'DMA stride descriptor']
          %s4958 = smul.u32 39, %s23
          %s4959 = ssub.s32 40, %s4958
          %p4960 = scmp.lt.s32.totalorder %s4959, 39
          %s4961 = scalar_select %p4960, %s4959, 39
          %s4962 = smul.u32 384, %s4961
          %s4964 = ssub.s32 14976, %s4962
          %4965 = vsyncadd %s4951, %s4964
          %p4966 = scmp.ne.s32.totalorder 0, %s4962
          %s4967 = smul.addr %s4958, 128
          %s4968 = scalar_lea.hbm %s2, %s4967
          %s4969 = smul.u32 8, %s4961
          %s4970 = smul.u32 %s4969, 3
          %s4972 = sshll.u32 1, 14
          %s4973 = sxor.u32 4294967295, %s4972
          %s4976 = sshll.u32 7, 18
          %s4977 = sxor.u32 4294967295, %s4976
          %s4978 = sand.u32 0, %s4977
          %s4980 = sor.u32 %s4978, 0
          %s4982 = sshll.u32 3, 24
          %s4983 = sxor.u32 4294967295, %s4982
          %s4984 = sand.u32 %s4980, %s4983
          %s4986 = sor.u32 %s4984, 0
          %s4987 = sshll.u32 %s4954, 4
          %s4988 = int_to_ptr.vmem [resolvable:$true] %s4987
          %s4989 = sshll.u32 %s4970, 4
          %4994 = sst [smem:[#allocation11]] 4992
          %s4995 = scalar_lea.smem [#allocation11], 1
          %4996 = sst [smem:[%s4995]] 5120
          %s4997 = scalar_lea.smem [#allocation11], 2
          %4998 = sst [smem:[%s4997]] %s4961
          %s4999 = scalar_lea.smem [#allocation11], 3
          %5000 = sst [smem:[%s4999]] 128
          %s5001 = scalar_lea.smem [#allocation11], 4
          %5002 = sst [smem:[%s5001]] 128
          %s5003 = scalar_lea.smem [#allocation11], 5
          %5004 = sst [smem:[%s5003]] 8
          %5006 = dma.general (%p4966), %s4988, %s4989, %s4968, %s4951, [#allocation10], [#allocation11], %s4986, 0
        $region32: #{tpu_custom_call.1} parent=23 // pred_fallthru
          _
      $region24: #{tpu_custom_call.1} parent=5 // pred_fallthru
        _
      %p5007 = scmp.le.s32.totalorder 2, %s18
      // Predicated region
      $region33: #{tpu_custom_call.1} parent=5 // pred_check
        %p5008 = pneg %p5007
      $region34: #{tpu_custom_call.1} parent=5 // pred_check_branch
        %5010 = sbr.rel (%p5008) target = $region36
      $region35: #{tpu_custom_call.1} parent=5 // pred_region
        %s5011 = ssub.s32 %s18, 2
        // Predicated region
        $region37: #{tpu_custom_call.1} parent=35 // pred_check
          %p5012 = pneg %p73
        $region38: #{tpu_custom_call.1} parent=35 // pred_check_branch
          %5014 = sbr.rel (%p5012) target = $region40
        $region39: #{tpu_custom_call.1} parent=35 // pred_region
          %s5015 = sand.u32 %s58, 1
          %s5016 = scalar_lea.sflag [#allocation6], %s5015
          %s5017 = sand.u32 %s58, 1
          %s5018 = smul.addr %s5017, 936
          %s5019 = scalar_lea.vmem [#allocation7], %s5018
          %5020 = dma.done %s5016, 14976
        $region40: #{tpu_custom_call.1} parent=35 // pred_fallthru
          _
      $region36: #{tpu_custom_call.1} parent=5 // pred_fallthru
        _
    $region6: #{tpu_custom_call.1} parent=1 // loop_footer
      %s22 = sadd.s32 1, %s18
    $region7: #{tpu_custom_call.1} parent=1 // loop_footer_branch
      %17 = sbr.rel target = $region3
    $region8: #{tpu_custom_call.1} parent=1 // loop_exit
      _
    %5021 = vsyncpa [#allocation5], 1
    %s5022 = scalar_lea.sflag [#allocation5], 1
    %5023 = vsyncpa %s5022, 1
    %5024 = vsyncpa [#allocation6], 1
    %s5025 = scalar_lea.sflag [#allocation6], 1
    %5026 = vsyncpa %s5025, 1

</llo_original>
